<compile_context>
chip_gen: v7x
topology: tpu7x:2x2x1
jax: 0.10.0
libtpu: 0.0.40
codegen_flags: <defaults>
</compile_context>

<pallas_src>
import math
import functools

import jax
import jax.numpy as jnp
from jax.experimental import pallas as pl
from jax.experimental.pallas import tpu as pltpu


# ----------------------------------------------------------------------------
# Fused Pallas kernel: all layers, one row-block of folded (B*T1) rows per grid step.
# ----------------------------------------------------------------------------
def _fused_layers_kernel(
        x_ref, rowmask_ref,
        wq_ref, bqu_ref, bqv_ref, k_ref, v_ref, p_ref, wo_ref, bo_ref,
        gamma_ref, beta_ref,
        out_ref, attn_ref,
        *, NL, H, T1, T2, eps):
    RB, D = x_ref.shape
    DK = D // H
    Ppad = p_ref.shape[2]
    scale = 1.0 / math.sqrt(DK)
    neg = float(jnp.finfo(jnp.float32).min)

    x = x_ref[...]                                     # (RB, D) activation carried across layers
    masked = (rowmask_ref[...] > 0.5)[None, :, :]      # (1, RB, 1); True => whole query row masked

    # rel_shift amount for every row in this block: a_r = (global query position) mod T1.
    row0 = pl.program_id(0) * RB
    qpos = (row0 + jax.lax.broadcasted_iota(jnp.int32, (H, RB, Ppad), 1)) % T1
    nbits = (T1 - 1).bit_length()

    # NL is tiny (2), so the layer loop is statically unrolled.
    # TODO(synk): for large NL switch to lax.fori_loop with dynamic first-axis weight
    # indexing (bounds vreg live ranges / code size).
    for l in range(NL):
        # ---- Q projection, head-batched: (H, RB, D) x (H, D, DK) -> (H, RB, DK).
        # pos_bias_u / pos_bias_v and the Q bias are pre-folded into bqu/bqv in the wrapper,
        # so each bias add is a single full-width VALU add (no per-head broadcasts).
        xb = jnp.broadcast_to(x[None], (H, RB, D))
        qh = jnp.einsum('hrd,hdk->hrk', xb, wq_ref[l],
                        preferred_element_type=jnp.float32)
        quh = qh + bqu_ref[l]                          # (H, RB, DK)
        qvh = qh + bqv_ref[l]                          # (H, RB, DK)

        # ---- content / positional scores: head-batched MXU matmuls.
        ac = jnp.einsum('hrk,htk->hrt', quh, k_ref[l],
                        preferred_element_type=jnp.float32)         # (H, RB, T2)
        bdf = jnp.einsum('hrk,hpk->hrp', qvh, p_ref[l],
                         preferred_element_type=jnp.float32)        # (H, RB, Ppad)

        # ---- vectorized rel_shift:  bd[h, r, j] = bdf[h, r, j + T1 - 1 - (r mod T1)]
        # == right-roll row r by (r mod T1), then take lanes [T1-1, T1-1+T2).
        # Implemented as a log2(T1)-step barrel shift (constant-shift rolls + selects):
        # fully vectorized, no per-row slicing.  Wrapped-in lanes are never read because
        # Ppad >= Pn >= T1 + T2 - 1.
        shifted = bdf
        for bit in range(nbits):
            s = 1 << bit
            rolled = jnp.concatenate(
                [shifted[:, :, Ppad - s:], shifted[:, :, :Ppad - s]], axis=-1)
            shifted = jnp.where((qpos & s) != 0, rolled, shifted)
        bd = shifted[:, :, T1 - 1:T1 - 1 + T2]                      # (H, RB, T2)

        ac = jnp.clip(ac, -65504.0, 65504.0) * scale
        bd = jnp.clip(bd, -65504.0, 65504.0) * scale
        scores = jnp.where(masked, neg, ac + bd)
        scores = scores - jnp.max(scores, axis=-1, keepdims=True)
        e = jnp.exp(scores)
        inv = pl.reciprocal(jnp.sum(e, axis=-1, keepdims=True), approx=False)
        attn = jnp.where(masked, 0.0, e * inv)                      # (H, RB, T2)

        # One slab store per layer (all heads at once) instead of per-head 8-lane writes.
        attn_ref[l] = attn

        # ---- context + output projection (head-batched), residual + LayerNorm.
        ctx = jnp.einsum('hrt,htk->hrk', attn, v_ref[l],
                         preferred_element_type=jnp.float32)        # (H, RB, DK)
        y = jnp.einsum('hrk,hkd->hrd', ctx, wo_ref[l],
                       preferred_element_type=jnp.float32)          # (H, RB, D)
        y = jnp.sum(y, axis=0) + bo_ref[l]                          # (RB, D)
        y = x + y
        mu = jnp.mean(y, axis=-1, keepdims=True)
        var = jnp.mean(jnp.square(y - mu), axis=-1, keepdims=True)
        x = (y - mu) * jax.lax.rsqrt(var + eps) * gamma_ref[l] + beta_ref[l]

    out_ref[...] = x


# ----------------------------------------------------------------------------
# Relative positional encodings (RelPositionalEncoding slice for key length T2)
# ----------------------------------------------------------------------------
def make_rel_pos_emb(T2, D):
    """Rows = relative positions T2-1 .. -(T2-1)."""
    j = jnp.arange(2 * T2 - 1, dtype=jnp.float32)
    rel = (T2 - 1 - j)[:, None]                                      # (Pn, 1)
    div = jnp.exp(jnp.arange(0, D, 2, dtype=jnp.float32)
                  * (-math.log(10000.0) / D))                        # (D/2,)
    pe = jnp.zeros((2 * T2 - 1, D), jnp.float32)
    pe = pe.at[:, 0::2].set(jnp.sin(rel * div))
    pe = pe.at[:, 1::2].set(jnp.cos(rel * div))
    return pe                                                        # (Pn, D)


# ----------------------------------------------------------------------------
# Wrapper: precomputes batch-invariant tensors, folds batch into rows, one pallas_call.
# ----------------------------------------------------------------------------
def audio_bridging_forward(layers, H, visual_features, compact_audio_memory, mask,
                           *, row_block=None):
    B, T1, D = visual_features.shape
    T2 = compact_audio_memory.shape[0]
    NL = len(layers)
    if D % H != 0:
        raise ValueError("embed_size must be divisible by num_heads")
    DK = D // H
    if T1 != T2:
        # torch's mask.unsqueeze(-1) broadcast and rel_shift both require time1 == time2.
        raise ValueError("AudioBridgingModule as written requires time1 == time2")
    Pn = 2 * T2 - 1
    Ppad = ((Pn + 127) // 128) * 128     # lane-dense positional axis for the bd matmul

    R = B * T1
    if row_block is None:
        row_block = R if R <= 256 else 256
    if R % row_block != 0 or (row_block % 8 != 0 and row_block != R):
        raise ValueError("row_block must divide B*T1 and be a multiple of 8 (or == B*T1)")
    grid = (R // row_block,)

    hi = jax.lax.Precision.HIGHEST
    pos = make_rel_pos_emb(T2, D)                                    # (Pn, D)

    # ---- fold batch into rows (amortizes grid / DMA overhead at small B).
    xf = visual_features.reshape(R, D)
    row_mask = (mask[:, 0, :] == 0).astype(jnp.float32).reshape(R, 1)

    st = lambda name: jnp.stack([lp[name] for lp in layers], axis=0)
    wq_t, bq = st('wq_t'), st('bq')                                  # (NL,D,D), (NL,1,D)
    wk_t, bk = st('wk_t'), st('bk')
    wv_t, bv = st('wv_t'), st('bv')
    wpos_t = st('wpos_t')
    bu, bvb = st('pos_bias_u'), st('pos_bias_v')                     # (NL,H,DK)
    wout_t, bout = st('wout_t'), st('bout')
    gamma, beta = st('gamma'), st('beta')

    # ---- batch-invariant precompute (done once, outside the kernel):
    #   * K / V / positional projections per layer, already head-major.
    #   * Q weights head-major; Q bias + pos_bias_u/v folded into a single bias each.
    wq_h = wq_t.reshape(NL, D, H, DK).transpose(0, 2, 1, 3)          # (NL,H,D,DK)
    bq_h = bq.reshape(NL, H, DK)[:, :, None, :]                      # (NL,H,1,DK)
    bqu_h = bq_h + bu[:, :, None, :]
    bqv_h = bq_h + bvb[:, :, None, :]

    k_h = jnp.einsum('td,lde->lte', compact_audio_memory, wk_t, precision=hi) + bk
    k_h = k_h.reshape(NL, T2, H, DK).transpose(0, 2, 1, 3)           # (NL,H,T2,DK)
    v_h = jnp.einsum('td,lde->lte', compact_audio_memory, wv_t, precision=hi) + bv
    v_h = v_h.reshape(NL, T2, H, DK).transpose(0, 2, 1, 3)           # (NL,H,T2,DK)
    p_h = jnp.einsum('pd,lde->lpe', pos, wpos_t, precision=hi)       # (NL,Pn,D)
    p_h = jnp.pad(p_h, ((0, 0), (0, Ppad - Pn), (0, 0)))             # zero rows never read
    p_h = p_h.reshape(NL, Ppad, H, DK).transpose(0, 2, 1, 3)         # (NL,H,Ppad,DK)

    wo_h = wout_t.reshape(NL, H, DK, D)                              # (NL,H,DK,D)

    kernel = functools.partial(_fused_layers_kernel,
                               NL=NL, H=H, T1=T1, T2=T2, eps=1e-5)

    def row_spec(shape):      # blocks that follow the row-block grid axis (axis 0)
        return pl.BlockSpec((row_block,) + shape, lambda g: (g,) + (0,) * len(shape))

    def const_spec(shape):    # same block every grid step (weights / shared tensors)
        return pl.BlockSpec(shape, lambda g: (0,) * len(shape))

    inputs = (xf, row_mask, wq_h, bqu_h, bqv_h, k_h, v_h, p_h, wo_h, bout, gamma, beta)

    # VMEM budget (v7x has only 64 MiB): resident-block footprint, doubled for pipelining,
    # plus slack.  TODO(synk): for production NL*D, move the layer axis to the grid
    # ("arbitrary") or keep weights in HBM (pl.ANY) + pltpu.emit_pipeline so only the
    # current layer (+1 prefetched) is resident.
    io_bytes = sum(int(a.size) * a.dtype.itemsize for a in inputs)
    io_bytes += (R * D + NL * H * R * T2) * 4
    vmem_limit = int(min(64 * 2 ** 20, max(32 * 2 ** 20, 2 * io_bytes + (8 << 20))))

    out_flat, attn_out = pl.pallas_call(
        kernel,
        out_shape=(jax.ShapeDtypeStruct((R, D), jnp.float32),
                   jax.ShapeDtypeStruct((NL, H, R, T2), jnp.float32)),
        grid=grid,
        in_specs=[
            row_spec((D,)),                 # visual features, batch folded into rows
            row_spec((1,)),                 # query-row mask
            const_spec((NL, H, D, DK)),     # wq (head-major)
            const_spec((NL, H, 1, DK)),     # q bias + pos_bias_u
            const_spec((NL, H, 1, DK)),     # q bias + pos_bias_v
            const_spec((NL, H, T2, DK)),    # projected keys
            const_spec((NL, H, T2, DK)),    # projected values
            const_spec((NL, H, Ppad, DK)),  # projected (padded) positional encodings
            const_spec((NL, H, DK, D)),     # wout (head-major)
            const_spec((NL, 1, D)),         # bout
            const_spec((NL, 1, D)),         # gamma
            const_spec((NL, 1, D)),         # beta
        ],
        out_specs=(row_spec((D,)),
                   pl.BlockSpec((NL, H, row_block, T2), lambda g: (0, 0, g, 0))),
        compiler_params=pltpu.CompilerParams(
            dimension_semantics=("parallel",),       # row blocks shard over TCs (v7x)
            vmem_limit_bytes=vmem_limit),
    )(*inputs)

    out = out_flat.reshape(B, T1, D)
    attn_full = attn_out.reshape(NL, H, B, T1, T2).transpose(2, 0, 1, 3, 4)  # (B,NL,H,T1,T2)
    attn_weights = [attn_full[:, l] for l in range(NL)]
    return out, attn_weights


# ----------------------------------------------------------------------------
# Pure-JAX reference (for correctness check)
# ----------------------------------------------------------------------------
def rel_shift(x):
    """Exact torch rel_shift: zero-pad, reshape, drop, reslice."""
    B, H, T1, P = x.shape
    zero_pad = jnp.zeros((B, H, T1, 1), x.dtype)
    x_padded = jnp.concatenate([zero_pad, x], axis=-1)
    x_padded = x_padded.reshape(B, H, P + 1, T1)
    x = x_padded[:, :, 1:].reshape(B, H, T1, P)
    return x[:, :, :, : P // 2 + 1]


def _ref_layer(x, key_mem, pos, lp, mask, H):
    pe = jax.lax.Precision.HIGHEST
    B, T1, D = x.shape
    T2 = key_mem.shape[1]
    DK = D // H
    q = jnp.einsum('btd,de->bte', x, lp['wq_t'], precision=pe) + lp['bq']
    k = jnp.einsum('btd,de->bte', key_mem, lp['wk_t'], precision=pe) + lp['bk']
    v = jnp.einsum('btd,de->bte', key_mem, lp['wv_t'], precision=pe) + lp['bv']
    p = jnp.einsum('pd,de->pe', pos, lp['wpos_t'], precision=pe)
    q = q.reshape(B, T1, H, DK)
    k = k.reshape(B, T2, H, DK).transpose(0, 2, 1, 3)
    v = v.reshape(B, T2, H, DK).transpose(0, 2, 1, 3)
    p = p.reshape(-1, H, DK).transpose(1, 0, 2)
    qu = (q + lp['pos_bias_u'][None, None]).transpose(0, 2, 1, 3)
    qv = (q + lp['pos_bias_v'][None, None]).transpose(0, 2, 1, 3)
    ac = jnp.einsum('bhid,bhjd->bhij', qu, k, precision=pe)
    bd = jnp.einsum('bhid,hpd->bhip', qv, p, precision=pe)
    bd = rel_shift(bd)
    ac = jnp.clip(ac, -65504.0, 65504.0) / math.sqrt(DK)
    bd = jnp.clip(bd, -65504.0, 65504.0) / math.sqrt(DK)
    scores = ac + bd
    m = (mask[:, :, :, None] == 0)                                   # (B,1,T2,1)
    minv = float(jnp.finfo(jnp.float32).min)
    scores = jnp.where(m, minv, scores)
    scores = scores - jnp.max(scores, axis=-1, keepdims=True)
    attn = jax.nn.softmax(scores, axis=-1)
    attn = jnp.where(m, 0.0, attn)
    ctx = jnp.einsum('bhij,bhjd->bhid', attn, v, precision=pe)
    ctx = ctx.transpose(0, 2, 1, 3).reshape(B, T1, D)
    y = jnp.einsum('btd,de->bte', ctx, lp['wout_t'], precision=pe) + lp['bout']
    y = x + y
    mu = y.mean(-1, keepdims=True)
    var = ((y - mu) ** 2).mean(-1, keepdims=True)
    out = (y - mu) * jax.lax.rsqrt(var + 1e-5) * lp['gamma'] + lp['beta']
    return out, attn


def reference_forward(layers, H, vis, mem, mask):
    B, T1, D = vis.shape
    T2 = mem.shape[0]
    pos = make_rel_pos_emb(T2, D)
    key_mem = jnp.broadcast_to(mem[None], (B, T2, D))
    x = vis
    ws = []
    for lp in layers:
        x, a = _ref_layer(x, key_mem, pos, lp, mask, H)
        ws.append(a)
    return x, ws


# ----------------------------------------------------------------------------
# Deterministic parameter init
# ----------------------------------------------------------------------------
def init_params(key, D, H, num_layers):
    layers = []
    s = 1.0 / math.sqrt(D)
    xb = math.sqrt(6.0 / (H + D // H))
    for _ in range(num_layers):
        key, *ks = jax.random.split(key, 12)
        u = lambda k, shape, a: jax.random.uniform(k, shape, jnp.float32, -a, a)
        layers.append(dict(
            wq_t=u(ks[0], (D, D), s), bq=u(ks[1], (1, D), s),
            wk_t=u(ks[2], (D, D), s), bk=u(ks[3], (1, D), s),
            wv_t=u(ks[4], (D, D), s), bv=u(ks[5], (1, D), s),
            wpos_t=u(ks[6], (D, D), s),
            pos_bias_u=u(ks[7], (H, D // H), xb),
            pos_bias_v=u(ks[8], (H, D // H), xb),
            wout_t=u(ks[9], (D, D), s), bout=u(ks[10], (1, D), s),
            gamma=jnp.ones((1, D), jnp.float32),
            beta=jnp.zeros((1, D), jnp.float32),
        ))
    return layers


# ----------------------------------------------------------------------------
if __name__ == "__main__":
    B, T1, T2, D, H, NL = 2, 8, 8, 32, 4, 2   # T1 == T2 required by torch mask broadcast

    root = jax.random.PRNGKey(0)
    k_vis, k_mem, k_par = jax.random.split(root, 3)
    visual_features = jax.random.normal(k_vis, (B, T1, D), jnp.float32)
    compact_audio_memory = jax.random.normal(k_mem, (T2, D), jnp.float32)
    mask = jnp.ones((B, 1, T2), jnp.int32)
    mask = mask.at[1, 0, 6:].set(0)           # mask a couple of positions in batch 1

    layers = init_params(k_par, D, H, NL)

    out, attn_weights = audio_bridging_forward(
        layers, H, visual_features, compact_audio_memory, mask, row_block=8)
    out = jax.block_until_ready(out)
    attn_weights = [jax.block_until_ready(a) for a in attn_weights]

    ref_out, ref_ws = reference_forward(
        layers, H, visual_features, compact_audio_memory, mask)

    assert out.shape == (B, T1, D)
    assert all(a.shape == (B, H, T1, T2) for a in attn_weights)
    assert jnp.allclose(out, ref_out, atol=2e-3, rtol=2e-3), "output mismatch"
    for a, r in zip(attn_weights, ref_ws):
        assert jnp.allclose(a, r, atol=2e-3, rtol=2e-3), "attn mismatch"

    print("KERNEL_OK")
</pallas_src>

<mosaic_0001>
module attributes {stable_mosaic.version = 11 : i64} {
  func.func @_fused_layers_kernel(%arg0: i32, %arg1: memref<8x32xf32, #tpu.memory_space<vmem>>, %arg2: memref<8x1xf32, #tpu.memory_space<vmem>>, %arg3: memref<2x4x32x8xf32, #tpu.memory_space<vmem>>, %arg4: memref<2x4x1x8xf32, #tpu.memory_space<vmem>>, %arg5: memref<2x4x1x8xf32, #tpu.memory_space<vmem>>, %arg6: memref<2x4x8x8xf32, #tpu.memory_space<vmem>>, %arg7: memref<2x4x8x8xf32, #tpu.memory_space<vmem>>, %arg8: memref<2x4x128x8xf32, #tpu.memory_space<vmem>>, %arg9: memref<2x4x8x32xf32, #tpu.memory_space<vmem>>, %arg10: memref<2x1x32xf32, #tpu.memory_space<vmem>>, %arg11: memref<2x1x32xf32, #tpu.memory_space<vmem>>, %arg12: memref<2x1x32xf32, #tpu.memory_space<vmem>>, %arg13: memref<8x32xf32, #tpu.memory_space<vmem>>, %arg14: memref<2x4x8x8xf32, #tpu.memory_space<vmem>>) attributes {dimension_semantics = [#tpu.dimension_semantics<parallel>], iteration_bounds = array<i64: 2>, scalar_prefetch = 0 : i64, scratch_operands = 0 : i64, tpu.core_type = #tpu.core_type<tc>, window_params = [{transform_indices = @transform_0, window_bounds = array<i64: 8, 32>}, {transform_indices = @transform_1, window_bounds = array<i64: 8, 1>}, {pipeline_mode = #tpu.pipeline_mode<synchronous>, transform_indices = @transform_2, window_bounds = array<i64: 2, 4, 32, 8>}, {pipeline_mode = #tpu.pipeline_mode<synchronous>, transform_indices = @transform_3, window_bounds = array<i64: 2, 4, 1, 8>}, {pipeline_mode = #tpu.pipeline_mode<synchronous>, transform_indices = @transform_4, window_bounds = array<i64: 2, 4, 1, 8>}, {pipeline_mode = #tpu.pipeline_mode<synchronous>, transform_indices = @transform_5, window_bounds = array<i64: 2, 4, 8, 8>}, {pipeline_mode = #tpu.pipeline_mode<synchronous>, transform_indices = @transform_6, window_bounds = array<i64: 2, 4, 8, 8>}, {pipeline_mode = #tpu.pipeline_mode<synchronous>, transform_indices = @transform_7, window_bounds = array<i64: 2, 4, 128, 8>}, {pipeline_mode = #tpu.pipeline_mode<synchronous>, transform_indices = @transform_8, window_bounds = array<i64: 2, 4, 8, 32>}, {pipeline_mode = #tpu.pipeline_mode<synchronous>, transform_indices = @transform_9, window_bounds = array<i64: 2, 1, 32>}, {pipeline_mode = #tpu.pipeline_mode<synchronous>, transform_indices = @transform_10, window_bounds = array<i64: 2, 1, 32>}, {pipeline_mode = #tpu.pipeline_mode<synchronous>, transform_indices = @transform_11, window_bounds = array<i64: 2, 1, 32>}, {transform_indices = @transform_12, window_bounds = array<i64: 8, 32>}, {transform_indices = @transform_13, window_bounds = array<i64: 2, 4, 8, 8>}]} {
    %c0 = arith.constant 0 : index
    %c0_0 = arith.constant 0 : index
    %0 = vector.load %arg1[%c0, %c0_0] : memref<8x32xf32, #tpu.memory_space<vmem>>, vector<8x32xf32>
    %c0_1 = arith.constant 0 : index
    %c0_2 = arith.constant 0 : index
    %1 = vector.load %arg2[%c0_1, %c0_2] : memref<8x1xf32, #tpu.memory_space<vmem>>, vector<8x1xf32>
    %cst = arith.constant 5.000000e-01 : f32
    %2 = vector.broadcast %cst : f32 to vector<8x1xf32>
    %3 = arith.cmpf ogt, %1, %2 : vector<8x1xf32>
    %4 = vector.shape_cast %3 : vector<8x1xi1> to vector<1x8x1xi1>
    %c8_i32 = arith.constant 8 : i32
    %5 = arith.muli %arg0, %c8_i32 : i32
    %6 = tpu.iota {dimensions = array<i32: 1>} : vector<4x8x128xi32>
    %7 = vector.broadcast %5 : i32 to vector<4x8x128xi32>
    %8 = arith.addi %7, %6 : vector<4x8x128xi32>
    %c8_i32_3 = arith.constant 8 : i32
    %c0_i32 = arith.constant 0 : i32
    %9 = arith.cmpi eq, %c8_i32_3, %c0_i32 : i32
    %c1_i32 = arith.constant 1 : i32
    %10 = arith.select %9, %c1_i32, %c8_i32_3 : i32
    %11 = vector.broadcast %10 : i32 to vector<4x8x128xi32>
    %12 = arith.remsi %8, %11 : vector<4x8x128xi32>
    %c0_i32_4 = arith.constant 0 : i32
    %13 = vector.broadcast %c0_i32_4 : i32 to vector<4x8x128xi32>
    %14 = arith.cmpi ne, %12, %13 : vector<4x8x128xi32>
    %c0_i32_5 = arith.constant 0 : i32
    %15 = vector.broadcast %c0_i32_5 : i32 to vector<4x8x128xi32>
    %16 = arith.cmpi slt, %12, %15 : vector<4x8x128xi32>
    %c0_i32_6 = arith.constant 0 : i32
    %17 = arith.cmpi slt, %10, %c0_i32_6 : i32
    %18 = vector.broadcast %17 : i1 to vector<4x8x128xi1>
    %19 = vector.broadcast %18 : vector<4x8x128xi1> to vector<4x8x128xi1>
    %20 = arith.xori %16, %19 : vector<4x8x128xi1>
    %21 = arith.andi %20, %14 : vector<4x8x128xi1>
    %22 = vector.broadcast %10 : i32 to vector<4x8x128xi32>
    %23 = arith.addi %12, %22 : vector<4x8x128xi32>
    %24 = arith.select %21, %23, %12 : vector<4x8x128xi1>, vector<4x8x128xi32>
    %25 = vector.shape_cast %0 : vector<8x32xf32> to vector<1x8x32xf32>
    %26 = vector.shape_cast %25 : vector<1x8x32xf32> to vector<1x8x32xf32>
    %27 = vector.broadcast %26 : vector<1x8x32xf32> to vector<4x8x32xf32>
    %c0_7 = arith.constant 0 : index
    %c0_8 = arith.constant 0 : index
    %c0_9 = arith.constant 0 : index
    %c0_10 = arith.constant 0 : index
    %28 = vector.load %arg3[%c0_7, %c0_8, %c0_9, %c0_10] : memref<2x4x32x8xf32, #tpu.memory_space<vmem>>, vector<1x4x32x8xf32>
    %29 = vector.shape_cast %28 : vector<1x4x32x8xf32> to vector<4x32x8xf32>
    "tpu.trace_start"() <{level = 10 : i32, message = "hrd,hdk->hrk"}> : () -> ()
    %cst_11 = arith.constant dense<0.000000e+00> : vector<4x8x8xf32>
    %30 = tpu.matmul %27, %29, %cst_11 {dimension_numbers = #tpu.dot_dimension_numbers<[2], [1], [1], [2], [0, 0, 0, 1, 1, 2], [0], [0]>} : vector<4x8x32xf32>, vector<4x32x8xf32>, vector<4x8x8xf32> -> vector<4x8x8xf32>
    "tpu.trace_stop"() : () -> ()
    %c0_12 = arith.constant 0 : index
    %c0_13 = arith.constant 0 : index
    %c0_14 = arith.constant 0 : index
    %c0_15 = arith.constant 0 : index
    %31 = vector.load %arg4[%c0_12, %c0_13, %c0_14, %c0_15] : memref<2x4x1x8xf32, #tpu.memory_space<vmem>>, vector<1x4x1x8xf32>
    %32 = vector.shape_cast %31 : vector<1x4x1x8xf32> to vector<4x1x8xf32>
    %33 = vector.broadcast %32 : vector<4x1x8xf32> to vector<4x8x8xf32>
    %34 = arith.addf %30, %33 : vector<4x8x8xf32>
    %c0_16 = arith.constant 0 : index
    %c0_17 = arith.constant 0 : index
    %c0_18 = arith.constant 0 : index
    %c0_19 = arith.constant 0 : index
    %35 = vector.load %arg5[%c0_16, %c0_17, %c0_18, %c0_19] : memref<2x4x1x8xf32, #tpu.memory_space<vmem>>, vector<1x4x1x8xf32>
    %36 = vector.shape_cast %35 : vector<1x4x1x8xf32> to vector<4x1x8xf32>
    %37 = vector.broadcast %36 : vector<4x1x8xf32> to vector<4x8x8xf32>
    %38 = arith.addf %30, %37 : vector<4x8x8xf32>
    %c0_20 = arith.constant 0 : index
    %c0_21 = arith.constant 0 : index
    %c0_22 = arith.constant 0 : index
    %c0_23 = arith.constant 0 : index
    %39 = vector.load %arg6[%c0_20, %c0_21, %c0_22, %c0_23] : memref<2x4x8x8xf32, #tpu.memory_space<vmem>>, vector<1x4x8x8xf32>
    %40 = vector.shape_cast %39 : vector<1x4x8x8xf32> to vector<4x8x8xf32>
    "tpu.trace_start"() <{level = 10 : i32, message = "hrk,htk->hrt"}> : () -> ()
    %cst_24 = arith.constant dense<0.000000e+00> : vector<4x8x8xf32>
    %41 = tpu.matmul %34, %40, %cst_24 {dimension_numbers = #tpu.dot_dimension_numbers<[2], [2], [1], [1], [0, 0, 0, 1, 1, 1], [0], [0]>} : vector<4x8x8xf32>, vector<4x8x8xf32>, vector<4x8x8xf32> -> vector<4x8x8xf32>
    "tpu.trace_stop"() : () -> ()
    %c0_25 = arith.constant 0 : index
    %c0_26 = arith.constant 0 : index
    %c0_27 = arith.constant 0 : index
    %c0_28 = arith.constant 0 : index
    %42 = vector.load %arg8[%c0_25, %c0_26, %c0_27, %c0_28] : memref<2x4x128x8xf32, #tpu.memory_space<vmem>>, vector<1x4x128x8xf32>
    %43 = vector.shape_cast %42 : vector<1x4x128x8xf32> to vector<4x128x8xf32>
    "tpu.trace_start"() <{level = 10 : i32, message = "hrk,hpk->hrp"}> : () -> ()
    %cst_29 = arith.constant dense<0.000000e+00> : vector<4x8x128xf32>
    %44 = tpu.matmul %38, %43, %cst_29 {dimension_numbers = #tpu.dot_dimension_numbers<[2], [2], [1], [1], [0, 0, 0, 1, 1, 1], [0], [0]>} : vector<4x8x8xf32>, vector<4x128x8xf32>, vector<4x8x128xf32> -> vector<4x8x128xf32>
    "tpu.trace_stop"() : () -> ()
    %45 = vector.extract_strided_slice %44 {offsets = [0, 0, 127], sizes = [4, 8, 1], strides = [1, 1, 1]} : vector<4x8x128xf32> to vector<4x8x1xf32>
    %46 = vector.extract_strided_slice %44 {offsets = [0, 0, 0], sizes = [4, 8, 127], strides = [1, 1, 1]} : vector<4x8x128xf32> to vector<4x8x127xf32>
    %47 = tpu.concatenate %45, %46 in 2 : vector<4x8x1xf32>, vector<4x8x127xf32> -> vector<4x8x128xf32>
    %c1_i32_30 = arith.constant 1 : i32
    %48 = vector.broadcast %c1_i32_30 : i32 to vector<4x8x128xi32>
    %49 = arith.andi %24, %48 : vector<4x8x128xi32>
    %c0_i32_31 = arith.constant 0 : i32
    %50 = vector.broadcast %c0_i32_31 : i32 to vector<4x8x128xi32>
    %51 = arith.cmpi ne, %49, %50 : vector<4x8x128xi32>
    %52 = arith.select %51, %47, %44 : vector<4x8x128xi1>, vector<4x8x128xf32>
    %53 = vector.extract_strided_slice %52 {offsets = [0, 0, 126], sizes = [4, 8, 2], strides = [1, 1, 1]} : vector<4x8x128xf32> to vector<4x8x2xf32>
    %54 = vector.extract_strided_slice %52 {offsets = [0, 0, 0], sizes = [4, 8, 126], strides = [1, 1, 1]} : vector<4x8x128xf32> to vector<4x8x126xf32>
    %55 = tpu.concatenate %53, %54 in 2 : vector<4x8x2xf32>, vector<4x8x126xf32> -> vector<4x8x128xf32>
    %c2_i32 = arith.constant 2 : i32
    %56 = vector.broadcast %c2_i32 : i32 to vector<4x8x128xi32>
    %57 = arith.andi %24, %56 : vector<4x8x128xi32>
    %c0_i32_32 = arith.constant 0 : i32
    %58 = vector.broadcast %c0_i32_32 : i32 to vector<4x8x128xi32>
    %59 = arith.cmpi ne, %57, %58 : vector<4x8x128xi32>
    %60 = arith.select %59, %55, %52 : vector<4x8x128xi1>, vector<4x8x128xf32>
    %61 = vector.extract_strided_slice %60 {offsets = [0, 0, 124], sizes = [4, 8, 4], strides = [1, 1, 1]} : vector<4x8x128xf32> to vector<4x8x4xf32>
    %62 = vector.extract_strided_slice %60 {offsets = [0, 0, 0], sizes = [4, 8, 124], strides = [1, 1, 1]} : vector<4x8x128xf32> to vector<4x8x124xf32>
    %63 = tpu.concatenate %61, %62 in 2 : vector<4x8x4xf32>, vector<4x8x124xf32> -> vector<4x8x128xf32>
    %c4_i32 = arith.constant 4 : i32
    %64 = vector.broadcast %c4_i32 : i32 to vector<4x8x128xi32>
    %65 = arith.andi %24, %64 : vector<4x8x128xi32>
    %c0_i32_33 = arith.constant 0 : i32
    %66 = vector.broadcast %c0_i32_33 : i32 to vector<4x8x128xi32>
    %67 = arith.cmpi ne, %65, %66 : vector<4x8x128xi32>
    %68 = arith.select %67, %63, %60 : vector<4x8x128xi1>, vector<4x8x128xf32>
    %69 = vector.extract_strided_slice %68 {offsets = [0, 0, 7], sizes = [4, 8, 8], strides = [1, 1, 1]} : vector<4x8x128xf32> to vector<4x8x8xf32>
    %cst_34 = arith.constant -6.550400e+04 : f32
    %cst_35 = arith.constant 6.550400e+04 : f32
    %70 = vector.broadcast %cst_34 : f32 to vector<4x8x8xf32>
    %71 = arith.maximumf %70, %41 : vector<4x8x8xf32>
    %72 = vector.broadcast %cst_35 : f32 to vector<4x8x8xf32>
    %73 = arith.minimumf %72, %71 : vector<4x8x8xf32>
    %cst_36 = arith.constant 0.353553385 : f32
    %74 = vector.broadcast %cst_36 : f32 to vector<4x8x8xf32>
    %75 = arith.mulf %73, %74 : vector<4x8x8xf32>
    %cst_37 = arith.constant -6.550400e+04 : f32
    %cst_38 = arith.constant 6.550400e+04 : f32
    %76 = vector.broadcast %cst_37 : f32 to vector<4x8x8xf32>
    %77 = arith.maximumf %76, %69 : vector<4x8x8xf32>
    %78 = vector.broadcast %cst_38 : f32 to vector<4x8x8xf32>
    %79 = arith.minimumf %78, %77 : vector<4x8x8xf32>
    %cst_39 = arith.constant 0.353553385 : f32
    %80 = vector.broadcast %cst_39 : f32 to vector<4x8x8xf32>
    %81 = arith.mulf %79, %80 : vector<4x8x8xf32>
    %82 = arith.addf %75, %81 : vector<4x8x8xf32>
    %cst_40 = arith.constant -3.40282347E+38 : f32
    %83 = vector.shape_cast %4 : vector<1x8x1xi1> to vector<1x8x1xi1>
    %84 = vector.broadcast %83 : vector<1x8x1xi1> to vector<4x8x8xi1>
    %85 = vector.broadcast %cst_40 : f32 to vector<4x8x8xf32>
    %86 = arith.select %84, %85, %82 : vector<4x8x8xi1>, vector<4x8x8xf32>
    %cst_41 = arith.constant dense<0xFF800000> : vector<4x8xf32>
    %87 = vector.multi_reduction <maximumf>, %86, %cst_41 [2] : vector<4x8x8xf32> to vector<4x8xf32>
    %88 = vector.shape_cast %87 : vector<4x8xf32> to vector<4x8x1xf32>
    %89 = vector.broadcast %88 : vector<4x8x1xf32> to vector<4x8x8xf32>
    %90 = arith.subf %86, %89 : vector<4x8x8xf32>
    %91 = math.exp %90 : vector<4x8x8xf32>
    %cst_42 = arith.constant dense<0.000000e+00> : vector<4x8xf32>
    %92 = vector.multi_reduction <add>, %91, %cst_42 [2] : vector<4x8x8xf32> to vector<4x8xf32>
    %93 = vector.shape_cast %92 : vector<4x8xf32> to vector<4x8x1xf32>
    %94 = tpu.reciprocal %93 : vector<4x8x1xf32> -> vector<4x8x1xf32>
    %95 = vector.broadcast %94 : vector<4x8x1xf32> to vector<4x8x8xf32>
    %96 = arith.mulf %91, %95 : vector<4x8x8xf32>
    %cst_43 = arith.constant 0.000000e+00 : f32
    %97 = vector.shape_cast %4 : vector<1x8x1xi1> to vector<1x8x1xi1>
    %98 = vector.broadcast %97 : vector<1x8x1xi1> to vector<4x8x8xi1>
    %99 = vector.broadcast %cst_43 : f32 to vector<4x8x8xf32>
    %100 = arith.select %98, %99, %96 : vector<4x8x8xi1>, vector<4x8x8xf32>
    %c0_44 = arith.constant 0 : index
    %c0_45 = arith.constant 0 : index
    %c0_46 = arith.constant 0 : index
    %c0_47 = arith.constant 0 : index
    %101 = vector.load %arg14[%c0_44, %c0_45, %c0_46, %c0_47] : memref<2x4x8x8xf32, #tpu.memory_space<vmem>>, vector<1x4x8x8xf32>
    %102 = vector.shape_cast %101 : vector<1x4x8x8xf32> to vector<4x8x8xf32>
    %103 = vector.shape_cast %100 : vector<4x8x8xf32> to vector<1x4x8x8xf32>
    tpu.vector_store %arg14[%c0_44, %c0_45, %c0_46, %c0_47], %103 {strides = array<i32>} : memref<2x4x8x8xf32, #tpu.memory_space<vmem>>, vector<1x4x8x8xf32>,
    %c0_48 = arith.constant 0 : index
    %c0_49 = arith.constant 0 : index
    %c0_50 = arith.constant 0 : index
    %c0_51 = arith.constant 0 : index
    %104 = vector.load %arg7[%c0_48, %c0_49, %c0_50, %c0_51] : memref<2x4x8x8xf32, #tpu.memory_space<vmem>>, vector<1x4x8x8xf32>
    %105 = vector.shape_cast %104 : vector<1x4x8x8xf32> to vector<4x8x8xf32>
    "tpu.trace_start"() <{level = 10 : i32, message = "hrt,htk->hrk"}> : () -> ()
    %cst_52 = arith.constant dense<0.000000e+00> : vector<4x8x8xf32>
    %106 = tpu.matmul %100, %105, %cst_52 {dimension_numbers = #tpu.dot_dimension_numbers<[2], [1], [1], [2], [0, 0, 0, 1, 1, 2], [0], [0]>} : vector<4x8x8xf32>, vector<4x8x8xf32>, vector<4x8x8xf32> -> vector<4x8x8xf32>
    "tpu.trace_stop"() : () -> ()
    %c0_53 = arith.constant 0 : index
    %c0_54 = arith.constant 0 : index
    %c0_55 = arith.constant 0 : index
    %c0_56 = arith.constant 0 : index
    %107 = vector.load %arg9[%c0_53, %c0_54, %c0_55, %c0_56] : memref<2x4x8x32xf32, #tpu.memory_space<vmem>>, vector<1x4x8x32xf32>
    %108 = vector.shape_cast %107 : vector<1x4x8x32xf32> to vector<4x8x32xf32>
    "tpu.trace_start"() <{level = 10 : i32, message = "hrk,hkd->hrd"}> : () -> ()
    %cst_57 = arith.constant dense<0.000000e+00> : vector<4x8x32xf32>
    %109 = tpu.matmul %106, %108, %cst_57 {dimension_numbers = #tpu.dot_dimension_numbers<[2], [1], [1], [2], [0, 0, 0, 1, 1, 2], [0], [0]>} : vector<4x8x8xf32>, vector<4x8x32xf32>, vector<4x8x32xf32> -> vector<4x8x32xf32>
    "tpu.trace_stop"() : () -> ()
    %cst_58 = arith.constant dense<0.000000e+00> : vector<8x32xf32>
    %110 = vector.multi_reduction <add>, %109, %cst_58 [0] : vector<4x8x32xf32> to vector<8x32xf32>
    %c0_59 = arith.constant 0 : index
    %c0_60 = arith.constant 0 : index
    %c0_61 = arith.constant 0 : index
    %111 = vector.load %arg10[%c0_59, %c0_60, %c0_61] : memref<2x1x32xf32, #tpu.memory_space<vmem>>, vector<1x1x32xf32>
    %112 = vector.shape_cast %111 : vector<1x1x32xf32> to vector<1x32xf32>
    %113 = vector.broadcast %112 : vector<1x32xf32> to vector<8x32xf32>
    %114 = arith.addf %110, %113 : vector<8x32xf32>
    %115 = arith.addf %0, %114 : vector<8x32xf32>
    %cst_62 = arith.constant dense<0.000000e+00> : vector<8xf32>
    %116 = vector.multi_reduction <add>, %115, %cst_62 [1] : vector<8x32xf32> to vector<8xf32>
    %117 = vector.shape_cast %116 : vector<8xf32> to vector<8x1xf32>
    %cst_63 = arith.constant 3.200000e+01 : f32
    %118 = vector.broadcast %cst_63 : f32 to vector<8x1xf32>
    %119 = arith.divf %117, %118 : vector<8x1xf32>
    %120 = vector.broadcast %119 : vector<8x1xf32> to vector<8x32xf32>
    %121 = arith.subf %115, %120 : vector<8x32xf32>
    %122 = arith.mulf %121, %121 : vector<8x32xf32>
    %cst_64 = arith.constant dense<0.000000e+00> : vector<8xf32>
    %123 = vector.multi_reduction <add>, %122, %cst_64 [1] : vector<8x32xf32> to vector<8xf32>
    %124 = vector.shape_cast %123 : vector<8xf32> to vector<8x1xf32>
    %cst_65 = arith.constant 3.200000e+01 : f32
    %125 = vector.broadcast %cst_65 : f32 to vector<8x1xf32>
    %126 = arith.divf %124, %125 : vector<8x1xf32>
    %127 = vector.broadcast %119 : vector<8x1xf32> to vector<8x32xf32>
    %128 = arith.subf %115, %127 : vector<8x32xf32>
    %cst_66 = arith.constant 9.99999974E-6 : f32
    %129 = vector.broadcast %cst_66 : f32 to vector<8x1xf32>
    %130 = arith.addf %126, %129 : vector<8x1xf32>
    %131 = math.rsqrt %130 : vector<8x1xf32>
    %132 = vector.broadcast %131 : vector<8x1xf32> to vector<8x32xf32>
    %133 = arith.mulf %128, %132 : vector<8x32xf32>
    %c0_67 = arith.constant 0 : index
    %c0_68 = arith.constant 0 : index
    %c0_69 = arith.constant 0 : index
    %134 = vector.load %arg11[%c0_67, %c0_68, %c0_69] : memref<2x1x32xf32, #tpu.memory_space<vmem>>, vector<1x1x32xf32>
    %135 = vector.shape_cast %134 : vector<1x1x32xf32> to vector<1x32xf32>
    %136 = vector.broadcast %135 : vector<1x32xf32> to vector<8x32xf32>
    %137 = arith.mulf %133, %136 : vector<8x32xf32>
    %c0_70 = arith.constant 0 : index
    %c0_71 = arith.constant 0 : index
    %c0_72 = arith.constant 0 : index
    %138 = vector.load %arg12[%c0_70, %c0_71, %c0_72] : memref<2x1x32xf32, #tpu.memory_space<vmem>>, vector<1x1x32xf32>
    %139 = vector.shape_cast %138 : vector<1x1x32xf32> to vector<1x32xf32>
    %140 = vector.broadcast %139 : vector<1x32xf32> to vector<8x32xf32>
    %141 = arith.addf %137, %140 : vector<8x32xf32>
    %142 = vector.shape_cast %141 : vector<8x32xf32> to vector<1x8x32xf32>
    %143 = vector.shape_cast %142 : vector<1x8x32xf32> to vector<1x8x32xf32>
    %144 = vector.broadcast %143 : vector<1x8x32xf32> to vector<4x8x32xf32>
    %c1 = arith.constant 1 : index
    %c0_73 = arith.constant 0 : index
    %c0_74 = arith.constant 0 : index
    %c0_75 = arith.constant 0 : index
    %145 = vector.load %arg3[%c1, %c0_73, %c0_74, %c0_75] : memref<2x4x32x8xf32, #tpu.memory_space<vmem>>, vector<1x4x32x8xf32>
    %146 = vector.shape_cast %145 : vector<1x4x32x8xf32> to vector<4x32x8xf32>
    "tpu.trace_start"() <{level = 10 : i32, message = "hrd,hdk->hrk"}> : () -> ()
    %cst_76 = arith.constant dense<0.000000e+00> : vector<4x8x8xf32>
    %147 = tpu.matmul %144, %146, %cst_76 {dimension_numbers = #tpu.dot_dimension_numbers<[2], [1], [1], [2], [0, 0, 0, 1, 1, 2], [0], [0]>} : vector<4x8x32xf32>, vector<4x32x8xf32>, vector<4x8x8xf32> -> vector<4x8x8xf32>
    "tpu.trace_stop"() : () -> ()
    %c1_77 = arith.constant 1 : index
    %c0_78 = arith.constant 0 : index
    %c0_79 = arith.constant 0 : index
    %c0_80 = arith.constant 0 : index
    %148 = vector.load %arg4[%c1_77, %c0_78, %c0_79, %c0_80] : memref<2x4x1x8xf32, #tpu.memory_space<vmem>>, vector<1x4x1x8xf32>
    %149 = vector.shape_cast %148 : vector<1x4x1x8xf32> to vector<4x1x8xf32>
    %150 = vector.broadcast %149 : vector<4x1x8xf32> to vector<4x8x8xf32>
    %151 = arith.addf %147, %150 : vector<4x8x8xf32>
    %c1_81 = arith.constant 1 : index
    %c0_82 = arith.constant 0 : index
    %c0_83 = arith.constant 0 : index
    %c0_84 = arith.constant 0 : index
    %152 = vector.load %arg5[%c1_81, %c0_82, %c0_83, %c0_84] : memref<2x4x1x8xf32, #tpu.memory_space<vmem>>, vector<1x4x1x8xf32>
    %153 = vector.shape_cast %152 : vector<1x4x1x8xf32> to vector<4x1x8xf32>
    %154 = vector.broadcast %153 : vector<4x1x8xf32> to vector<4x8x8xf32>
    %155 = arith.addf %147, %154 : vector<4x8x8xf32>
    %c1_85 = arith.constant 1 : index
    %c0_86 = arith.constant 0 : index
    %c0_87 = arith.constant 0 : index
    %c0_88 = arith.constant 0 : index
    %156 = vector.load %arg6[%c1_85, %c0_86, %c0_87, %c0_88] : memref<2x4x8x8xf32, #tpu.memory_space<vmem>>, vector<1x4x8x8xf32>
    %157 = vector.shape_cast %156 : vector<1x4x8x8xf32> to vector<4x8x8xf32>
    "tpu.trace_start"() <{level = 10 : i32, message = "hrk,htk->hrt"}> : () -> ()
    %cst_89 = arith.constant dense<0.000000e+00> : vector<4x8x8xf32>
    %158 = tpu.matmul %151, %157, %cst_89 {dimension_numbers = #tpu.dot_dimension_numbers<[2], [2], [1], [1], [0, 0, 0, 1, 1, 1], [0], [0]>} : vector<4x8x8xf32>, vector<4x8x8xf32>, vector<4x8x8xf32> -> vector<4x8x8xf32>
    "tpu.trace_stop"() : () -> ()
    %c1_90 = arith.constant 1 : index
    %c0_91 = arith.constant 0 : index
    %c0_92 = arith.constant 0 : index
    %c0_93 = arith.constant 0 : index
    %159 = vector.load %arg8[%c1_90, %c0_91, %c0_92, %c0_93] : memref<2x4x128x8xf32, #tpu.memory_space<vmem>>, vector<1x4x128x8xf32>
    %160 = vector.shape_cast %159 : vector<1x4x128x8xf32> to vector<4x128x8xf32>
    "tpu.trace_start"() <{level = 10 : i32, message = "hrk,hpk->hrp"}> : () -> ()
    %cst_94 = arith.constant dense<0.000000e+00> : vector<4x8x128xf32>
    %161 = tpu.matmul %155, %160, %cst_94 {dimension_numbers = #tpu.dot_dimension_numbers<[2], [2], [1], [1], [0, 0, 0, 1, 1, 1], [0], [0]>} : vector<4x8x8xf32>, vector<4x128x8xf32>, vector<4x8x128xf32> -> vector<4x8x128xf32>
    "tpu.trace_stop"() : () -> ()
    %162 = vector.extract_strided_slice %161 {offsets = [0, 0, 127], sizes = [4, 8, 1], strides = [1, 1, 1]} : vector<4x8x128xf32> to vector<4x8x1xf32>
    %163 = vector.extract_strided_slice %161 {offsets = [0, 0, 0], sizes = [4, 8, 127], strides = [1, 1, 1]} : vector<4x8x128xf32> to vector<4x8x127xf32>
    %164 = tpu.concatenate %162, %163 in 2 : vector<4x8x1xf32>, vector<4x8x127xf32> -> vector<4x8x128xf32>
    %c1_i32_95 = arith.constant 1 : i32
    %165 = vector.broadcast %c1_i32_95 : i32 to vector<4x8x128xi32>
    %166 = arith.andi %24, %165 : vector<4x8x128xi32>
    %c0_i32_96 = arith.constant 0 : i32
    %167 = vector.broadcast %c0_i32_96 : i32 to vector<4x8x128xi32>
    %168 = arith.cmpi ne, %166, %167 : vector<4x8x128xi32>
    %169 = arith.select %168, %164, %161 : vector<4x8x128xi1>, vector<4x8x128xf32>
    %170 = vector.extract_strided_slice %169 {offsets = [0, 0, 126], sizes = [4, 8, 2], strides = [1, 1, 1]} : vector<4x8x128xf32> to vector<4x8x2xf32>
    %171 = vector.extract_strided_slice %169 {offsets = [0, 0, 0], sizes = [4, 8, 126], strides = [1, 1, 1]} : vector<4x8x128xf32> to vector<4x8x126xf32>
    %172 = tpu.concatenate %170, %171 in 2 : vector<4x8x2xf32>, vector<4x8x126xf32> -> vector<4x8x128xf32>
    %c2_i32_97 = arith.constant 2 : i32
    %173 = vector.broadcast %c2_i32_97 : i32 to vector<4x8x128xi32>
    %174 = arith.andi %24, %173 : vector<4x8x128xi32>
    %c0_i32_98 = arith.constant 0 : i32
    %175 = vector.broadcast %c0_i32_98 : i32 to vector<4x8x128xi32>
    %176 = arith.cmpi ne, %174, %175 : vector<4x8x128xi32>
    %177 = arith.select %176, %172, %169 : vector<4x8x128xi1>, vector<4x8x128xf32>
    %178 = vector.extract_strided_slice %177 {offsets = [0, 0, 124], sizes = [4, 8, 4], strides = [1, 1, 1]} : vector<4x8x128xf32> to vector<4x8x4xf32>
    %179 = vector.extract_strided_slice %177 {offsets = [0, 0, 0], sizes = [4, 8, 124], strides = [1, 1, 1]} : vector<4x8x128xf32> to vector<4x8x124xf32>
    %180 = tpu.concatenate %178, %179 in 2 : vector<4x8x4xf32>, vector<4x8x124xf32> -> vector<4x8x128xf32>
    %c4_i32_99 = arith.constant 4 : i32
    %181 = vector.broadcast %c4_i32_99 : i32 to vector<4x8x128xi32>
    %182 = arith.andi %24, %181 : vector<4x8x128xi32>
    %c0_i32_100 = arith.constant 0 : i32
    %183 = vector.broadcast %c0_i32_100 : i32 to vector<4x8x128xi32>
    %184 = arith.cmpi ne, %182, %183 : vector<4x8x128xi32>
    %185 = arith.select %184, %180, %177 : vector<4x8x128xi1>, vector<4x8x128xf32>
    %186 = vector.extract_strided_slice %185 {offsets = [0, 0, 7], sizes = [4, 8, 8], strides = [1, 1, 1]} : vector<4x8x128xf32> to vector<4x8x8xf32>
    %cst_101 = arith.constant -6.550400e+04 : f32
    %cst_102 = arith.constant 6.550400e+04 : f32
    %187 = vector.broadcast %cst_101 : f32 to vector<4x8x8xf32>
    %188 = arith.maximumf %187, %158 : vector<4x8x8xf32>
    %189 = vector.broadcast %cst_102 : f32 to vector<4x8x8xf32>
    %190 = arith.minimumf %189, %188 : vector<4x8x8xf32>
    %cst_103 = arith.constant 0.353553385 : f32
    %191 = vector.broadcast %cst_103 : f32 to vector<4x8x8xf32>
    %192 = arith.mulf %190, %191 : vector<4x8x8xf32>
    %cst_104 = arith.constant -6.550400e+04 : f32
    %cst_105 = arith.constant 6.550400e+04 : f32
    %193 = vector.broadcast %cst_104 : f32 to vector<4x8x8xf32>
    %194 = arith.maximumf %193, %186 : vector<4x8x8xf32>
    %195 = vector.broadcast %cst_105 : f32 to vector<4x8x8xf32>
    %196 = arith.minimumf %195, %194 : vector<4x8x8xf32>
    %cst_106 = arith.constant 0.353553385 : f32
    %197 = vector.broadcast %cst_106 : f32 to vector<4x8x8xf32>
    %198 = arith.mulf %196, %197 : vector<4x8x8xf32>
    %199 = arith.addf %192, %198 : vector<4x8x8xf32>
    %cst_107 = arith.constant -3.40282347E+38 : f32
    %200 = vector.shape_cast %4 : vector<1x8x1xi1> to vector<1x8x1xi1>
    %201 = vector.broadcast %200 : vector<1x8x1xi1> to vector<4x8x8xi1>
    %202 = vector.broadcast %cst_107 : f32 to vector<4x8x8xf32>
    %203 = arith.select %201, %202, %199 : vector<4x8x8xi1>, vector<4x8x8xf32>
    %cst_108 = arith.constant dense<0xFF800000> : vector<4x8xf32>
    %204 = vector.multi_reduction <maximumf>, %203, %cst_108 [2] : vector<4x8x8xf32> to vector<4x8xf32>
    %205 = vector.shape_cast %204 : vector<4x8xf32> to vector<4x8x1xf32>
    %206 = vector.broadcast %205 : vector<4x8x1xf32> to vector<4x8x8xf32>
    %207 = arith.subf %203, %206 : vector<4x8x8xf32>
    %208 = math.exp %207 : vector<4x8x8xf32>
    %cst_109 = arith.constant dense<0.000000e+00> : vector<4x8xf32>
    %209 = vector.multi_reduction <add>, %208, %cst_109 [2] : vector<4x8x8xf32> to vector<4x8xf32>
    %210 = vector.shape_cast %209 : vector<4x8xf32> to vector<4x8x1xf32>
    %211 = tpu.reciprocal %210 : vector<4x8x1xf32> -> vector<4x8x1xf32>
    %212 = vector.broadcast %211 : vector<4x8x1xf32> to vector<4x8x8xf32>
    %213 = arith.mulf %208, %212 : vector<4x8x8xf32>
    %cst_110 = arith.constant 0.000000e+00 : f32
    %214 = vector.shape_cast %4 : vector<1x8x1xi1> to vector<1x8x1xi1>
    %215 = vector.broadcast %214 : vector<1x8x1xi1> to vector<4x8x8xi1>
    %216 = vector.broadcast %cst_110 : f32 to vector<4x8x8xf32>
    %217 = arith.select %215, %216, %213 : vector<4x8x8xi1>, vector<4x8x8xf32>
    %c1_111 = arith.constant 1 : index
    %c0_112 = arith.constant 0 : index
    %c0_113 = arith.constant 0 : index
    %c0_114 = arith.constant 0 : index
    %218 = vector.load %arg14[%c1_111, %c0_112, %c0_113, %c0_114] : memref<2x4x8x8xf32, #tpu.memory_space<vmem>>, vector<1x4x8x8xf32>
    %219 = vector.shape_cast %218 : vector<1x4x8x8xf32> to vector<4x8x8xf32>
    %220 = vector.shape_cast %217 : vector<4x8x8xf32> to vector<1x4x8x8xf32>
    tpu.vector_store %arg14[%c1_111, %c0_112, %c0_113, %c0_114], %220 {strides = array<i32>} : memref<2x4x8x8xf32, #tpu.memory_space<vmem>>, vector<1x4x8x8xf32>,
    %c1_115 = arith.constant 1 : index
    %c0_116 = arith.constant 0 : index
    %c0_117 = arith.constant 0 : index
    %c0_118 = arith.constant 0 : index
    %221 = vector.load %arg7[%c1_115, %c0_116, %c0_117, %c0_118] : memref<2x4x8x8xf32, #tpu.memory_space<vmem>>, vector<1x4x8x8xf32>
    %222 = vector.shape_cast %221 : vector<1x4x8x8xf32> to vector<4x8x8xf32>
    "tpu.trace_start"() <{level = 10 : i32, message = "hrt,htk->hrk"}> : () -> ()
    %cst_119 = arith.constant dense<0.000000e+00> : vector<4x8x8xf32>
    %223 = tpu.matmul %217, %222, %cst_119 {dimension_numbers = #tpu.dot_dimension_numbers<[2], [1], [1], [2], [0, 0, 0, 1, 1, 2], [0], [0]>} : vector<4x8x8xf32>, vector<4x8x8xf32>, vector<4x8x8xf32> -> vector<4x8x8xf32>
    "tpu.trace_stop"() : () -> ()
    %c1_120 = arith.constant 1 : index
    %c0_121 = arith.constant 0 : index
    %c0_122 = arith.constant 0 : index
    %c0_123 = arith.constant 0 : index
    %224 = vector.load %arg9[%c1_120, %c0_121, %c0_122, %c0_123] : memref<2x4x8x32xf32, #tpu.memory_space<vmem>>, vector<1x4x8x32xf32>
    %225 = vector.shape_cast %224 : vector<1x4x8x32xf32> to vector<4x8x32xf32>
    "tpu.trace_start"() <{level = 10 : i32, message = "hrk,hkd->hrd"}> : () -> ()
    %cst_124 = arith.constant dense<0.000000e+00> : vector<4x8x32xf32>
    %226 = tpu.matmul %223, %225, %cst_124 {dimension_numbers = #tpu.dot_dimension_numbers<[2], [1], [1], [2], [0, 0, 0, 1, 1, 2], [0], [0]>} : vector<4x8x8xf32>, vector<4x8x32xf32>, vector<4x8x32xf32> -> vector<4x8x32xf32>
    "tpu.trace_stop"() : () -> ()
    %cst_125 = arith.constant dense<0.000000e+00> : vector<8x32xf32>
    %227 = vector.multi_reduction <add>, %226, %cst_125 [0] : vector<4x8x32xf32> to vector<8x32xf32>
    %c1_126 = arith.constant 1 : index
    %c0_127 = arith.constant 0 : index
    %c0_128 = arith.constant 0 : index
    %228 = vector.load %arg10[%c1_126, %c0_127, %c0_128] : memref<2x1x32xf32, #tpu.memory_space<vmem>>, vector<1x1x32xf32>
    %229 = vector.shape_cast %228 : vector<1x1x32xf32> to vector<1x32xf32>
    %230 = vector.broadcast %229 : vector<1x32xf32> to vector<8x32xf32>
    %231 = arith.addf %227, %230 : vector<8x32xf32>
    %232 = arith.addf %141, %231 : vector<8x32xf32>
    %cst_129 = arith.constant dense<0.000000e+00> : vector<8xf32>
    %233 = vector.multi_reduction <add>, %232, %cst_129 [1] : vector<8x32xf32> to vector<8xf32>
    %234 = vector.shape_cast %233 : vector<8xf32> to vector<8x1xf32>
    %cst_130 = arith.constant 3.200000e+01 : f32
    %235 = vector.broadcast %cst_130 : f32 to vector<8x1xf32>
    %236 = arith.divf %234, %235 : vector<8x1xf32>
    %237 = vector.broadcast %236 : vector<8x1xf32> to vector<8x32xf32>
    %238 = arith.subf %232, %237 : vector<8x32xf32>
    %239 = arith.mulf %238, %238 : vector<8x32xf32>
    %cst_131 = arith.constant dense<0.000000e+00> : vector<8xf32>
    %240 = vector.multi_reduction <add>, %239, %cst_131 [1] : vector<8x32xf32> to vector<8xf32>
    %241 = vector.shape_cast %240 : vector<8xf32> to vector<8x1xf32>
    %cst_132 = arith.constant 3.200000e+01 : f32
    %242 = vector.broadcast %cst_132 : f32 to vector<8x1xf32>
    %243 = arith.divf %241, %242 : vector<8x1xf32>
    %244 = vector.broadcast %236 : vector<8x1xf32> to vector<8x32xf32>
    %245 = arith.subf %232, %244 : vector<8x32xf32>
    %cst_133 = arith.constant 9.99999974E-6 : f32
    %246 = vector.broadcast %cst_133 : f32 to vector<8x1xf32>
    %247 = arith.addf %243, %246 : vector<8x1xf32>
    %248 = math.rsqrt %247 : vector<8x1xf32>
    %249 = vector.broadcast %248 : vector<8x1xf32> to vector<8x32xf32>
    %250 = arith.mulf %245, %249 : vector<8x32xf32>
    %c1_134 = arith.constant 1 : index
    %c0_135 = arith.constant 0 : index
    %c0_136 = arith.constant 0 : index
    %251 = vector.load %arg11[%c1_134, %c0_135, %c0_136] : memref<2x1x32xf32, #tpu.memory_space<vmem>>, vector<1x1x32xf32>
    %252 = vector.shape_cast %251 : vector<1x1x32xf32> to vector<1x32xf32>
    %253 = vector.broadcast %252 : vector<1x32xf32> to vector<8x32xf32>
    %254 = arith.mulf %250, %253 : vector<8x32xf32>
    %c1_137 = arith.constant 1 : index
    %c0_138 = arith.constant 0 : index
    %c0_139 = arith.constant 0 : index
    %255 = vector.load %arg12[%c1_137, %c0_138, %c0_139] : memref<2x1x32xf32, #tpu.memory_space<vmem>>, vector<1x1x32xf32>
    %256 = vector.shape_cast %255 : vector<1x1x32xf32> to vector<1x32xf32>
    %257 = vector.broadcast %256 : vector<1x32xf32> to vector<8x32xf32>
    %258 = arith.addf %254, %257 : vector<8x32xf32>
    %c0_140 = arith.constant 0 : index
    %c0_141 = arith.constant 0 : index
    %259 = vector.load %arg13[%c0_140, %c0_141] : memref<8x32xf32, #tpu.memory_space<vmem>>, vector<8x32xf32>
    tpu.vector_store %arg13[%c0_140, %c0_141], %258 {strides = array<i32>} : memref<8x32xf32, #tpu.memory_space<vmem>>, vector<8x32xf32>,
    return
  }
  func.func @transform_0(%arg0: i32) -> (i32, i32) {
    %c0_i32 = arith.constant 0 : i32
    %c0_i32_0 = arith.constant 0 : i32
    return %arg0, %c0_i32 : i32, i32
  }
  func.func @transform_1(%arg0: i32) -> (i32, i32) {
    %c0_i32 = arith.constant 0 : i32
    %c0_i32_0 = arith.constant 0 : i32
    return %arg0, %c0_i32 : i32, i32
  }
  func.func @transform_2(%arg0: i32) -> (i32, i32, i32, i32) {
    %c0_i32 = arith.constant 0 : i32
    %c0_i32_0 = arith.constant 0 : i32
    %c0_i32_1 = arith.constant 0 : i32
    %c0_i32_2 = arith.constant 0 : i32
    %c0_i32_3 = arith.constant 0 : i32
    return %c0_i32, %c0_i32_0, %c0_i32_1, %c0_i32_2 : i32, i32, i32, i32
  }
  func.func @transform_3(%arg0: i32) -> (i32, i32, i32, i32) {
    %c0_i32 = arith.constant 0 : i32
    %c0_i32_0 = arith.constant 0 : i32
    %c0_i32_1 = arith.constant 0 : i32
    %c0_i32_2 = arith.constant 0 : i32
    %c0_i32_3 = arith.constant 0 : i32
    return %c0_i32, %c0_i32_0, %c0_i32_1, %c0_i32_2 : i32, i32, i32, i32
  }
  func.func @transform_4(%arg0: i32) -> (i32, i32, i32, i32) {
    %c0_i32 = arith.constant 0 : i32
    %c0_i32_0 = arith.constant 0 : i32
    %c0_i32_1 = arith.constant 0 : i32
    %c0_i32_2 = arith.constant 0 : i32
    %c0_i32_3 = arith.constant 0 : i32
    return %c0_i32, %c0_i32_0, %c0_i32_1, %c0_i32_2 : i32, i32, i32, i32
  }
  func.func @transform_5(%arg0: i32) -> (i32, i32, i32, i32) {
    %c0_i32 = arith.constant 0 : i32
    %c0_i32_0 = arith.constant 0 : i32
    %c0_i32_1 = arith.constant 0 : i32
    %c0_i32_2 = arith.constant 0 : i32
    %c0_i32_3 = arith.constant 0 : i32
    return %c0_i32, %c0_i32_0, %c0_i32_1, %c0_i32_2 : i32, i32, i32, i32
  }
  func.func @transform_6(%arg0: i32) -> (i32, i32, i32, i32) {
    %c0_i32 = arith.constant 0 : i32
    %c0_i32_0 = arith.constant 0 : i32
    %c0_i32_1 = arith.constant 0 : i32
    %c0_i32_2 = arith.constant 0 : i32
    %c0_i32_3 = arith.constant 0 : i32
    return %c0_i32, %c0_i32_0, %c0_i32_1, %c0_i32_2 : i32, i32, i32, i32
  }
  func.func @transform_7(%arg0: i32) -> (i32, i32, i32, i32) {
    %c0_i32 = arith.constant 0 : i32
    %c0_i32_0 = arith.constant 0 : i32
    %c0_i32_1 = arith.constant 0 : i32
    %c0_i32_2 = arith.constant 0 : i32
    %c0_i32_3 = arith.constant 0 : i32
    return %c0_i32, %c0_i32_0, %c0_i32_1, %c0_i32_2 : i32, i32, i32, i32
  }
  func.func @transform_8(%arg0: i32) -> (i32, i32, i32, i32) {
    %c0_i32 = arith.constant 0 : i32
    %c0_i32_0 = arith.constant 0 : i32
    %c0_i32_1 = arith.constant 0 : i32
    %c0_i32_2 = arith.constant 0 : i32
    %c0_i32_3 = arith.constant 0 : i32
    return %c0_i32, %c0_i32_0, %c0_i32_1, %c0_i32_2 : i32, i32, i32, i32
  }
  func.func @transform_9(%arg0: i32) -> (i32, i32, i32) {
    %c0_i32 = arith.constant 0 : i32
    %c0_i32_0 = arith.constant 0 : i32
    %c0_i32_1 = arith.constant 0 : i32
    %c0_i32_2 = arith.constant 0 : i32
    return %c0_i32, %c0_i32_0, %c0_i32_1 : i32, i32, i32
  }
  func.func @transform_10(%arg0: i32) -> (i32, i32, i32) {
    %c0_i32 = arith.constant 0 : i32
    %c0_i32_0 = arith.constant 0 : i32
    %c0_i32_1 = arith.constant 0 : i32
    %c0_i32_2 = arith.constant 0 : i32
    return %c0_i32, %c0_i32_0, %c0_i32_1 : i32, i32, i32
  }
  func.func @transform_11(%arg0: i32) -> (i32, i32, i32) {
    %c0_i32 = arith.constant 0 : i32
    %c0_i32_0 = arith.constant 0 : i32
    %c0_i32_1 = arith.constant 0 : i32
    %c0_i32_2 = arith.constant 0 : i32
    return %c0_i32, %c0_i32_0, %c0_i32_1 : i32, i32, i32
  }
  func.func @transform_12(%arg0: i32) -> (i32, i32) {
    %c0_i32 = arith.constant 0 : i32
    %c0_i32_0 = arith.constant 0 : i32
    return %arg0, %c0_i32 : i32, i32
  }
  func.func @transform_13(%arg0: i32) -> (i32, i32, i32, i32) {
    %c0_i32 = arith.constant 0 : i32
    %c0_i32_0 = arith.constant 0 : i32
    %c0_i32_1 = arith.constant 0 : i32
    %c0_i32_2 = arith.constant 0 : i32
    return %c0_i32, %c0_i32_0, %arg0, %c0_i32_1 : i32, i32, i32, i32
  }
}

</mosaic_0001>

<llo_original>
// kernel: tpu_custom_call.1
$region0: #{tpu_custom_call.1}
  #allocation0 [shape = 'u32[]', space=smem, size = 0x4, offset = 0x4, fixed_abs, tag = 'smem constant byte address 0x4 - core index']
  #allocation1 [shape = 'u32[144,128]{1,0:T(1,128)}', space=vmem, size = 0x12000, scoped, tag = 'internal scratch']
  %s0 = inlined_call_operand.vmem [shape: f32[16,32], index: 0, kind: input, shape index: {}]
  %s1 = inlined_call_operand.vmem [shape: f32[16,1], index: 1, kind: input, shape index: {}]
  %s2 = inlined_call_operand.vmem [shape: f32[2,4,32,8], index: 2, kind: input, shape index: {}]
  %s3 = inlined_call_operand.vmem [shape: f32[2,4,1,8], index: 3, kind: input, shape index: {}]
  %s4 = inlined_call_operand.vmem [shape: f32[2,4,1,8], index: 4, kind: input, shape index: {}]
  %s5 = inlined_call_operand.vmem [shape: f32[2,4,8,8], index: 5, kind: input, shape index: {}]
  %s6 = inlined_call_operand.vmem [shape: f32[2,4,8,8], index: 6, kind: input, shape index: {}]
  %s7 = inlined_call_operand.vmem [shape: f32[2,4,128,8], index: 7, kind: input, shape index: {}]
  %s8 = inlined_call_operand.vmem [shape: f32[2,4,8,32], index: 8, kind: input, shape index: {}]
  %s9 = inlined_call_operand.vmem [shape: f32[2,1,32], index: 9, kind: input, shape index: {}]
  %s10 = inlined_call_operand.vmem [shape: f32[2,1,32], index: 10, kind: input, shape index: {}]
  %s11 = inlined_call_operand.vmem [shape: f32[2,1,32], index: 11, kind: input, shape index: {}]
  %s12 = inlined_call_operand.hbm [shape: f32[16,32], index: 12, kind: output, shape index: {0}]
  %s13 = inlined_call_operand.vmem [shape: f32[2,4,16,8], index: 13, kind: output, shape index: {1}]
  %14 = xla_tuple %s12, %s13
  %s15 = sld [smem:[#allocation0]]
  $region123: #{tpu_custom_call.1} parent=0
    _
  %s17 = ssub.s32 1, %s15
  %s18 = scalar_select 0, %s17, %s15
  $region1: #{tpu_custom_call.1} parent=0
    #allocation2 [shape = 'u8[8192]{0}', space=vmem, size = 0x2000, scoped, tag = 'output window, operand 0']
    #allocation3 [shape = 's32[2]{0}', space=sflag, size = 0x8, scoped, tag = 'scoped memory for tpu_custom_call.1']
    #allocation4 [shape = 'u8[65536]{0}', space=vmem, size = 0x10000, scoped, tag = 'output window, operand 1']
    %19 = vsyncpa [#allocation3], 0
    %s20 = scalar_lea.sflag [#allocation3], 1
    %21 = vsyncpa %s20, 0
    loop: start=0, step=1, limit=4
    $region2: #{tpu_custom_call.1} parent=1 // loop_pre_header
      _
    $region3: #{tpu_custom_call.1} parent=1 // loop_header
      %s23 = sphi 0, %s27
      %p24 = scmp.ge.s32.totalorder %s23, 4
      %s33 = sphi 0, %s35
      %s36 = sphi 0, %s33
      %s37 = sphi 0, %s36
      %s53 = sphi 0, %s37
      %s59 = sphi 0, %s61
      %s62 = sphi 0, %s59
      %s63 = sphi 0, %s62
      %s79 = sphi 0, %s63
      %s83 = sphi 0, %s83
      %s85 = sphi 0, %s83
      %s86 = sphi 0, %s85
      %s100 = sphi 0, %s86
      %s104 = sphi 0, %s104
      %s106 = sphi 0, %s104
      %s107 = sphi 0, %s106
      %s121 = sphi 0, %s107
      %s125 = sphi 0, %s125
      %s127 = sphi 0, %s125
      %s128 = sphi 0, %s127
      %s142 = sphi 0, %s128
      %s146 = sphi 0, %s146
      %s148 = sphi 0, %s146
      %s149 = sphi 0, %s148
      %s163 = sphi 0, %s149
      %s167 = sphi 0, %s167
      %s169 = sphi 0, %s167
      %s170 = sphi 0, %s169
      %s184 = sphi 0, %s170
      %s188 = sphi 0, %s188
      %s190 = sphi 0, %s188
      %s191 = sphi 0, %s190
      %s205 = sphi 0, %s191
      %s209 = sphi 0, %s209
      %s211 = sphi 0, %s209
      %s212 = sphi 0, %s211
      %s226 = sphi 0, %s212
      %s230 = sphi 0, %s230
      %s232 = sphi 0, %s230
      %s233 = sphi 0, %s232
      %s247 = sphi 0, %s233
      %s251 = sphi 0, %s251
      %s253 = sphi 0, %s251
      %s254 = sphi 0, %s253
      %s268 = sphi 0, %s254
      %s272 = sphi 0, %s272
      %s274 = sphi 0, %s272
      %s275 = sphi 0, %s274
      %s289 = sphi 0, %s275
      %s295 = sphi 0, %s297
      %s298 = sphi 0, %s295
      %s299 = sphi 0, %s298
      %s315 = sphi 0, %s299
      %s321 = sphi 0, %s323
      %s324 = sphi 0, %s321
      %s325 = sphi 0, %s324
      %s341 = sphi 0, %s325
    $region4: #{tpu_custom_call.1} parent=1 // loop_header_branch
      %26 = sbr.rel (%p24) target = $region8
    $region5: #{tpu_custom_call.1} parent=1 // loop_body
      %s28 = ssub.s32 %s23, 1
      %s29 = ssub.s32 %s23, 2
      %s30 = sadd.s32 %s23, 1
      %s31 = ssub.s32 %s23, %s30
      %p32 = scmp.eq.s32.totalorder %s31, 0
      %s34 = sadd.s32 %s33, 1
      %s35 = scalar_select %p32, %s33, %s34
      %p38 = pneg %p32
      %p39 = scmp.eq.s32.totalorder %s23, 1
      %p40 = por %p38, %p39
      %p41 = scmp.ne.s32.totalorder %s33, %s36
      %p42 = scmp.eq.s32.totalorder %s23, 0
      %p43 = por %p41, %p42
      %p44 = scmp.ne.s32.totalorder %s33, %s36
      %p45 = scmp.eq.s32.totalorder %s28, 1
      %p46 = por %p44, %p45
      %p47 = scmp.ne.s32.totalorder %s36, %s37
      %p48 = scmp.eq.s32.totalorder %s28, 0
      %p49 = por %p47, %p48
      %p50 = scmp.ne.s32.totalorder %s36, %s37
      %p51 = scmp.eq.s32.totalorder %s29, 1
      %p52 = por %p50, %p51
      %p54 = scmp.ne.s32.totalorder %s37, %s53
      %p55 = scmp.eq.s32.totalorder %s29, 0
      %p56 = por %p54, %p55
      %s57 = ssub.s32 %s23, %s30
      %p58 = scmp.eq.s32.totalorder %s57, 0
      %s60 = sadd.s32 %s59, 1
      %s61 = scalar_select %p58, %s59, %s60
      %p64 = pneg %p58
      %p65 = scmp.eq.s32.totalorder %s23, 1
      %p66 = por %p64, %p65
      %p67 = scmp.ne.s32.totalorder %s59, %s62
      %p68 = scmp.eq.s32.totalorder %s23, 0
      %p69 = por %p67, %p68
      %p70 = scmp.ne.s32.totalorder %s59, %s62
      %p71 = scmp.eq.s32.totalorder %s28, 1
      %p72 = por %p70, %p71
      %p73 = scmp.ne.s32.totalorder %s62, %s63
      %p74 = scmp.eq.s32.totalorder %s28, 0
      %p75 = por %p73, %p74
      %p76 = scmp.ne.s32.totalorder %s62, %s63
      %p77 = scmp.eq.s32.totalorder %s29, 1
      %p78 = por %p76, %p77
      %p80 = scmp.ne.s32.totalorder %s63, %s79
      %p81 = scmp.eq.s32.totalorder %s29, 0
      %p82 = por %p80, %p81
      %s84 = sadd.s32 %s83, 1
      %p87 = scmp.eq.s32.totalorder %s23, 1
      %p88 = scmp.ne.s32.totalorder %s83, %s85
      %p89 = scmp.eq.s32.totalorder %s23, 0
      %p90 = por %p88, %p89
      %p91 = scmp.ne.s32.totalorder %s83, %s85
      %p92 = scmp.eq.s32.totalorder %s28, 1
      %p93 = por %p91, %p92
      %p94 = scmp.ne.s32.totalorder %s85, %s86
      %p95 = scmp.eq.s32.totalorder %s28, 0
      %p96 = por %p94, %p95
      %p97 = scmp.ne.s32.totalorder %s85, %s86
      %p98 = scmp.eq.s32.totalorder %s29, 1
      %p99 = por %p97, %p98
      %p101 = scmp.ne.s32.totalorder %s86, %s100
      %p102 = scmp.eq.s32.totalorder %s29, 0
      %p103 = por %p101, %p102
      %s105 = sadd.s32 %s104, 1
      %p108 = scmp.eq.s32.totalorder %s23, 1
      %p109 = scmp.ne.s32.totalorder %s104, %s106
      %p110 = scmp.eq.s32.totalorder %s23, 0
      %p111 = por %p109, %p110
      %p112 = scmp.ne.s32.totalorder %s104, %s106
      %p113 = scmp.eq.s32.totalorder %s28, 1
      %p114 = por %p112, %p113
      %p115 = scmp.ne.s32.totalorder %s106, %s107
      %p116 = scmp.eq.s32.totalorder %s28, 0
      %p117 = por %p115, %p116
      %p118 = scmp.ne.s32.totalorder %s106, %s107
      %p119 = scmp.eq.s32.totalorder %s29, 1
      %p120 = por %p118, %p119
      %p122 = scmp.ne.s32.totalorder %s107, %s121
      %p123 = scmp.eq.s32.totalorder %s29, 0
      %p124 = por %p122, %p123
      %s126 = sadd.s32 %s125, 1
      %p129 = scmp.eq.s32.totalorder %s23, 1
      %p130 = scmp.ne.s32.totalorder %s125, %s127
      %p131 = scmp.eq.s32.totalorder %s23, 0
      %p132 = por %p130, %p131
      %p133 = scmp.ne.s32.totalorder %s125, %s127
      %p134 = scmp.eq.s32.totalorder %s28, 1
      %p135 = por %p133, %p134
      %p136 = scmp.ne.s32.totalorder %s127, %s128
      %p137 = scmp.eq.s32.totalorder %s28, 0
      %p138 = por %p136, %p137
      %p139 = scmp.ne.s32.totalorder %s127, %s128
      %p140 = scmp.eq.s32.totalorder %s29, 1
      %p141 = por %p139, %p140
      %p143 = scmp.ne.s32.totalorder %s128, %s142
      %p144 = scmp.eq.s32.totalorder %s29, 0
      %p145 = por %p143, %p144
      %s147 = sadd.s32 %s146, 1
      %p150 = scmp.eq.s32.totalorder %s23, 1
      %p151 = scmp.ne.s32.totalorder %s146, %s148
      %p152 = scmp.eq.s32.totalorder %s23, 0
      %p153 = por %p151, %p152
      %p154 = scmp.ne.s32.totalorder %s146, %s148
      %p155 = scmp.eq.s32.totalorder %s28, 1
      %p156 = por %p154, %p155
      %p157 = scmp.ne.s32.totalorder %s148, %s149
      %p158 = scmp.eq.s32.totalorder %s28, 0
      %p159 = por %p157, %p158
      %p160 = scmp.ne.s32.totalorder %s148, %s149
      %p161 = scmp.eq.s32.totalorder %s29, 1
      %p162 = por %p160, %p161
      %p164 = scmp.ne.s32.totalorder %s149, %s163
      %p165 = scmp.eq.s32.totalorder %s29, 0
      %p166 = por %p164, %p165
      %s168 = sadd.s32 %s167, 1
      %p171 = scmp.eq.s32.totalorder %s23, 1
      %p172 = scmp.ne.s32.totalorder %s167, %s169
      %p173 = scmp.eq.s32.totalorder %s23, 0
      %p174 = por %p172, %p173
      %p175 = scmp.ne.s32.totalorder %s167, %s169
      %p176 = scmp.eq.s32.totalorder %s28, 1
      %p177 = por %p175, %p176
      %p178 = scmp.ne.s32.totalorder %s169, %s170
      %p179 = scmp.eq.s32.totalorder %s28, 0
      %p180 = por %p178, %p179
      %p181 = scmp.ne.s32.totalorder %s169, %s170
      %p182 = scmp.eq.s32.totalorder %s29, 1
      %p183 = por %p181, %p182
      %p185 = scmp.ne.s32.totalorder %s170, %s184
      %p186 = scmp.eq.s32.totalorder %s29, 0
      %p187 = por %p185, %p186
      %s189 = sadd.s32 %s188, 1
      %p192 = scmp.eq.s32.totalorder %s23, 1
      %p193 = scmp.ne.s32.totalorder %s188, %s190
      %p194 = scmp.eq.s32.totalorder %s23, 0
      %p195 = por %p193, %p194
      %p196 = scmp.ne.s32.totalorder %s188, %s190
      %p197 = scmp.eq.s32.totalorder %s28, 1
      %p198 = por %p196, %p197
      %p199 = scmp.ne.s32.totalorder %s190, %s191
      %p200 = scmp.eq.s32.totalorder %s28, 0
      %p201 = por %p199, %p200
      %p202 = scmp.ne.s32.totalorder %s190, %s191
      %p203 = scmp.eq.s32.totalorder %s29, 1
      %p204 = por %p202, %p203
      %p206 = scmp.ne.s32.totalorder %s191, %s205
      %p207 = scmp.eq.s32.totalorder %s29, 0
      %p208 = por %p206, %p207
      %s210 = sadd.s32 %s209, 1
      %p213 = scmp.eq.s32.totalorder %s23, 1
      %p214 = scmp.ne.s32.totalorder %s209, %s211
      %p215 = scmp.eq.s32.totalorder %s23, 0
      %p216 = por %p214, %p215
      %p217 = scmp.ne.s32.totalorder %s209, %s211
      %p218 = scmp.eq.s32.totalorder %s28, 1
      %p219 = por %p217, %p218
      %p220 = scmp.ne.s32.totalorder %s211, %s212
      %p221 = scmp.eq.s32.totalorder %s28, 0
      %p222 = por %p220, %p221
      %p223 = scmp.ne.s32.totalorder %s211, %s212
      %p224 = scmp.eq.s32.totalorder %s29, 1
      %p225 = por %p223, %p224
      %p227 = scmp.ne.s32.totalorder %s212, %s226
      %p228 = scmp.eq.s32.totalorder %s29, 0
      %p229 = por %p227, %p228
      %s231 = sadd.s32 %s230, 1
      %p234 = scmp.eq.s32.totalorder %s23, 1
      %p235 = scmp.ne.s32.totalorder %s230, %s232
      %p236 = scmp.eq.s32.totalorder %s23, 0
      %p237 = por %p235, %p236
      %p238 = scmp.ne.s32.totalorder %s230, %s232
      %p239 = scmp.eq.s32.totalorder %s28, 1
      %p240 = por %p238, %p239
      %p241 = scmp.ne.s32.totalorder %s232, %s233
      %p242 = scmp.eq.s32.totalorder %s28, 0
      %p243 = por %p241, %p242
      %p244 = scmp.ne.s32.totalorder %s232, %s233
      %p245 = scmp.eq.s32.totalorder %s29, 1
      %p246 = por %p244, %p245
      %p248 = scmp.ne.s32.totalorder %s233, %s247
      %p249 = scmp.eq.s32.totalorder %s29, 0
      %p250 = por %p248, %p249
      %s252 = sadd.s32 %s251, 1
      %p255 = scmp.eq.s32.totalorder %s23, 1
      %p256 = scmp.ne.s32.totalorder %s251, %s253
      %p257 = scmp.eq.s32.totalorder %s23, 0
      %p258 = por %p256, %p257
      %p259 = scmp.ne.s32.totalorder %s251, %s253
      %p260 = scmp.eq.s32.totalorder %s28, 1
      %p261 = por %p259, %p260
      %p262 = scmp.ne.s32.totalorder %s253, %s254
      %p263 = scmp.eq.s32.totalorder %s28, 0
      %p264 = por %p262, %p263
      %p265 = scmp.ne.s32.totalorder %s253, %s254
      %p266 = scmp.eq.s32.totalorder %s29, 1
      %p267 = por %p265, %p266
      %p269 = scmp.ne.s32.totalorder %s254, %s268
      %p270 = scmp.eq.s32.totalorder %s29, 0
      %p271 = por %p269, %p270
      %s273 = sadd.s32 %s272, 1
      %p276 = scmp.eq.s32.totalorder %s23, 1
      %p277 = scmp.ne.s32.totalorder %s272, %s274
      %p278 = scmp.eq.s32.totalorder %s23, 0
      %p279 = por %p277, %p278
      %p280 = scmp.ne.s32.totalorder %s272, %s274
      %p281 = scmp.eq.s32.totalorder %s28, 1
      %p282 = por %p280, %p281
      %p283 = scmp.ne.s32.totalorder %s274, %s275
      %p284 = scmp.eq.s32.totalorder %s28, 0
      %p285 = por %p283, %p284
      %p286 = scmp.ne.s32.totalorder %s274, %s275
      %p287 = scmp.eq.s32.totalorder %s29, 1
      %p288 = por %p286, %p287
      %p290 = scmp.ne.s32.totalorder %s275, %s289
      %p291 = scmp.eq.s32.totalorder %s29, 0
      %p292 = por %p290, %p291
      %s293 = ssub.s32 %s23, %s30
      %p294 = scmp.eq.s32.totalorder %s293, 0
      %s296 = sadd.s32 %s295, 1
      %s297 = scalar_select %p294, %s295, %s296
      %p300 = pneg %p294
      %p301 = scmp.eq.s32.totalorder %s23, 1
      %p302 = por %p300, %p301
      %p303 = scmp.ne.s32.totalorder %s295, %s298
      %p304 = scmp.eq.s32.totalorder %s23, 0
      %p305 = por %p303, %p304
      %p306 = scmp.ne.s32.totalorder %s295, %s298
      %p307 = scmp.eq.s32.totalorder %s28, 1
      %p308 = por %p306, %p307
      %p309 = scmp.ne.s32.totalorder %s298, %s299
      %p310 = scmp.eq.s32.totalorder %s28, 0
      %p311 = por %p309, %p310
      %p312 = scmp.ne.s32.totalorder %s298, %s299
      %p313 = scmp.eq.s32.totalorder %s29, 1
      %p314 = por %p312, %p313
      %p316 = scmp.ne.s32.totalorder %s299, %s315
      %p317 = scmp.eq.s32.totalorder %s29, 0
      %p318 = por %p316, %p317
      %s319 = ssub.s32 %s23, %s30
      %p320 = scmp.eq.s32.totalorder %s319, 0
      %s322 = sadd.s32 %s321, 1
      %s323 = scalar_select %p320, %s321, %s322
      %p326 = pneg %p320
      %p327 = scmp.eq.s32.totalorder %s23, 1
      %p328 = por %p326, %p327
      %p329 = scmp.ne.s32.totalorder %s321, %s324
      %p330 = scmp.eq.s32.totalorder %s23, 0
      %p331 = por %p329, %p330
      %p332 = scmp.ne.s32.totalorder %s321, %s324
      %p333 = scmp.eq.s32.totalorder %s28, 1
      %p334 = por %p332, %p333
      %p335 = scmp.ne.s32.totalorder %s324, %s325
      %p336 = scmp.eq.s32.totalorder %s28, 0
      %p337 = por %p335, %p336
      %p338 = scmp.ne.s32.totalorder %s324, %s325
      %p339 = scmp.eq.s32.totalorder %s29, 1
      %p340 = por %p338, %p339
      %p342 = scmp.ne.s32.totalorder %s325, %s341
      %p343 = scmp.eq.s32.totalorder %s29, 0
      %p344 = por %p342, %p343
      %p345 = scmp.le.s32.totalorder 1, %s23
      %p346 = scmp.lt.s32.totalorder %s23, 3
      %p347 = pnand %p345, %p346
      %p348 = pneg %p347
      // Predicated region
      $region9: #{tpu_custom_call.1} parent=5 // pred_check
        _
      $region10: #{tpu_custom_call.1} parent=5 // pred_check_branch
        %350 = sbr.rel (%p347) target = $region12
      $region11: #{tpu_custom_call.1} parent=5 // pred_region
        %s351 = ssub.s32 %s23, 1
        // Predicated region
        $region13: #{tpu_custom_call.1} parent=11 // pred_check
          %p352 = pneg %p96
        $region14: #{tpu_custom_call.1} parent=11 // pred_check_branch
          %354 = sbr.rel (%p352) target = $region16
        $region15: #{tpu_custom_call.1} parent=11 // pred_region
          _
        $region16: #{tpu_custom_call.1} parent=11 // pred_fallthru
          _
        // Predicated region
        $region17: #{tpu_custom_call.1} parent=11 // pred_check
          %p355 = pneg %p117
        $region18: #{tpu_custom_call.1} parent=11 // pred_check_branch
          %357 = sbr.rel (%p355) target = $region20
        $region19: #{tpu_custom_call.1} parent=11 // pred_region
          _
        $region20: #{tpu_custom_call.1} parent=11 // pred_fallthru
          _
        // Predicated region
        $region21: #{tpu_custom_call.1} parent=11 // pred_check
          %p358 = pneg %p138
        $region22: #{tpu_custom_call.1} parent=11 // pred_check_branch
          %360 = sbr.rel (%p358) target = $region24
        $region23: #{tpu_custom_call.1} parent=11 // pred_region
          _
        $region24: #{tpu_custom_call.1} parent=11 // pred_fallthru
          _
        // Predicated region
        $region25: #{tpu_custom_call.1} parent=11 // pred_check
          %p361 = pneg %p159
        $region26: #{tpu_custom_call.1} parent=11 // pred_check_branch
          %363 = sbr.rel (%p361) target = $region28
        $region27: #{tpu_custom_call.1} parent=11 // pred_region
          _
        $region28: #{tpu_custom_call.1} parent=11 // pred_fallthru
          _
        // Predicated region
        $region29: #{tpu_custom_call.1} parent=11 // pred_check
          %p364 = pneg %p180
        $region30: #{tpu_custom_call.1} parent=11 // pred_check_branch
          %366 = sbr.rel (%p364) target = $region32
        $region31: #{tpu_custom_call.1} parent=11 // pred_region
          _
        $region32: #{tpu_custom_call.1} parent=11 // pred_fallthru
          _
        // Predicated region
        $region33: #{tpu_custom_call.1} parent=11 // pred_check
          %p367 = pneg %p201
        $region34: #{tpu_custom_call.1} parent=11 // pred_check_branch
          %369 = sbr.rel (%p367) target = $region36
        $region35: #{tpu_custom_call.1} parent=11 // pred_region
          _
        $region36: #{tpu_custom_call.1} parent=11 // pred_fallthru
          _
        // Predicated region
        $region37: #{tpu_custom_call.1} parent=11 // pred_check
          %p370 = pneg %p222
        $region38: #{tpu_custom_call.1} parent=11 // pred_check_branch
          %372 = sbr.rel (%p370) target = $region40
        $region39: #{tpu_custom_call.1} parent=11 // pred_region
          _
        $region40: #{tpu_custom_call.1} parent=11 // pred_fallthru
          _
        // Predicated region
        $region41: #{tpu_custom_call.1} parent=11 // pred_check
          %p373 = pneg %p243
        $region42: #{tpu_custom_call.1} parent=11 // pred_check_branch
          %375 = sbr.rel (%p373) target = $region44
        $region43: #{tpu_custom_call.1} parent=11 // pred_region
          _
        $region44: #{tpu_custom_call.1} parent=11 // pred_fallthru
          _
        // Predicated region
        $region45: #{tpu_custom_call.1} parent=11 // pred_check
          %p376 = pneg %p264
        $region46: #{tpu_custom_call.1} parent=11 // pred_check_branch
          %378 = sbr.rel (%p376) target = $region48
        $region47: #{tpu_custom_call.1} parent=11 // pred_region
          _
        $region48: #{tpu_custom_call.1} parent=11 // pred_fallthru
          _
        // Predicated region
        $region49: #{tpu_custom_call.1} parent=11 // pred_check
          %p379 = pneg %p285
        $region50: #{tpu_custom_call.1} parent=11 // pred_check_branch
          %381 = sbr.rel (%p379) target = $region52
        $region51: #{tpu_custom_call.1} parent=11 // pred_region
          _
        $region52: #{tpu_custom_call.1} parent=11 // pred_fallthru
          _
      $region12: #{tpu_custom_call.1} parent=5 // pred_fallthru
        _
      %p382 = scmp.lt.s32.totalorder %s23, 2
      // Predicated region
      $region53: #{tpu_custom_call.1} parent=5 // pred_check
        %p383 = pneg %p382
      $region54: #{tpu_custom_call.1} parent=5 // pred_check_branch
        %385 = sbr.rel (%p383) target = $region56
      $region55: #{tpu_custom_call.1} parent=5 // pred_region
        // Predicated region
        $region57: #{tpu_custom_call.1} parent=55 // pred_check
          %p386 = pneg %p43
        $region58: #{tpu_custom_call.1} parent=55 // pred_check_branch
          %388 = sbr.rel (%p386) target = $region60
        $region59: #{tpu_custom_call.1} parent=55 // pred_region
          %p389 = scmp.lt.s32.totalorder %s23, 1
          %s390 = scalar_select %p389, %s23, 1
          %s391 = smul.addr %s390, 8
          %s392 = scalar_lea.vmem %s0, %s391
        $region60: #{tpu_custom_call.1} parent=55 // pred_fallthru
          _
        // Predicated region
        $region61: #{tpu_custom_call.1} parent=55 // pred_check
          %p393 = pneg %p69
        $region62: #{tpu_custom_call.1} parent=55 // pred_check_branch
          %395 = sbr.rel (%p393) target = $region64
        $region63: #{tpu_custom_call.1} parent=55 // pred_region
          %p396 = scmp.lt.s32.totalorder %s23, 1
          %s397 = scalar_select %p396, %s23, 1
          %s398 = smul.addr %s397, 8
          %s399 = scalar_lea.vmem %s1, %s398
        $region64: #{tpu_custom_call.1} parent=55 // pred_fallthru
          _
      $region56: #{tpu_custom_call.1} parent=5 // pred_fallthru
        _
      %p400 = scmp.le.s32.totalorder 1, %s23
      %p401 = scmp.lt.s32.totalorder %s23, 3
      %p402 = pnand %p400, %p401
      %p403 = pneg %p402
      // Predicated region
      $region65: #{tpu_custom_call.1} parent=5 // pred_check
        _
      $region66: #{tpu_custom_call.1} parent=5 // pred_check_branch
        %405 = sbr.rel (%p402) target = $region68
      $region67: #{tpu_custom_call.1} parent=5 // pred_region
        %s406 = ssub.s32 %s23, 1
        %p407 = scmp.lt.s32.totalorder %s28, 1
        %s408 = scalar_select %p407, %s28, 1
        %s409 = smul.addr %s408, 8
        %s410 = scalar_lea.vmem %s0, %s409
        %p411 = pneg %p49
        %p412 = pneg %p46
        %p413 = scmp.lt.s32.totalorder %s28, 1
        %s414 = scalar_select %p413, %s28, 1
        %s415 = smul.addr %s414, 8
        %s416 = scalar_lea.vmem %s1, %s415
        %p417 = pneg %p75
        %p418 = pneg %p72
        %p419 = pneg %p96
        %p420 = pneg %p93
        %p421 = pneg %p117
        %p422 = pneg %p114
        %p423 = pneg %p138
        %p424 = pneg %p135
        %p425 = pneg %p159
        %p426 = pneg %p156
        %p427 = pneg %p180
        %p428 = pneg %p177
        %p429 = pneg %p201
        %p430 = pneg %p198
        %p431 = pneg %p222
        %p432 = pneg %p219
        %p433 = pneg %p243
        %p434 = pneg %p240
        %p435 = pneg %p264
        %p436 = pneg %p261
        %p437 = pneg %p285
        %p438 = pneg %p282
        %p439 = pneg %p311
        %p440 = pneg %p308
        %s441 = sand.u32 %s298, 1
        %s442 = scalar_lea.sflag [#allocation3], %s441
        %s443 = sand.u32 %s298, 1
        %s444 = smul.addr %s443, 8
        %s445 = scalar_lea.vmem [#allocation2], %s444
        %p446 = pneg %p337
        %p447 = pneg %p334
        %s448 = sand.u32 %s324, 1
        %s449 = sand.u32 %s324, 1
        %s450 = smul.addr %s449, 64
        %s451 = scalar_lea.vmem [#allocation4], %s450
        %p452 = scmp.lt.s32.totalorder %s28, 1
        %s453 = scalar_select %p452, %s28, 1
        %s454 = smul.addr %s453, 8
        %s455 = scalar_lea.vmem %s0, %s454
        %p456 = scmp.lt.s32.totalorder %s28, 1
        %s457 = scalar_select %p456, %s28, 1
        %s458 = smul.addr %s457, 8
        %s459 = scalar_lea.vmem %s1, %s458
        %v460 = vld [vmem:[%s455] sm:$0xff]
        %v461 = vld [vmem:[%s459] sm:$0xff]
        %vm462 = vcmp.gt.f32.partialorder %v461, 0.5
        %s463 = smul.u32 %s28, 8
        %v464 = vlaneseq
        %v465 = vshrl.u32 %v464, 7
        %v466 = vstv %s463
        %v467 = vadd.s32 %v466, %v465
        %vm468 = vcmp.lt.s32.totalorder %v467, 0
        %v469 = vsub.s32 0, %v467
        %v470 = vsel %vm468, %v469, %v467
        %v471 = vshrl.u32 %v470, 3
        %v472 = vand.u32 %v470, 7
        %v473 = vsub.s32 0, %v472
        %v474 = vsel %vm468, %v473, %v472
        %vm475 = vcmp.ne.s32.totalorder %v474, 0
        %vm476 = vcmp.lt.s32.totalorder %v474, 0
        %vm477 = vmand %vm476, %vm475
        %v478 = vadd.s32 %v474, 8
        %v479 = vsel %vm477, %v478, %v474
        %v480 = vld [vmem:[%s2] sm:$0xff]
        %v481 = vld [vmem:[%s2 + $0x8] sm:$0xff]
        %v482 = vld [vmem:[%s2 + $0x10] sm:$0xff]
        %v483 = vld [vmem:[%s2 + $0x18] sm:$0xff]
        %v484 = vld [vmem:[%s2 + $0x20] sm:$0xff]
        %v485 = vld [vmem:[%s2 + $0x28] sm:$0xff]
        %v486 = vld [vmem:[%s2 + $0x30] sm:$0xff]
        %v487 = vld [vmem:[%s2 + $0x38] sm:$0xff]
        %v488 = vld [vmem:[%s2 + $0x40] sm:$0xff]
        %v489 = vld [vmem:[%s2 + $0x48] sm:$0xff]
        %v490 = vld [vmem:[%s2 + $0x50] sm:$0xff]
        %v491 = vld [vmem:[%s2 + $0x58] sm:$0xff]
        %v492 = vld [vmem:[%s2 + $0x60] sm:$0xff]
        %v493 = vld [vmem:[%s2 + $0x68] sm:$0xff]
        %v494 = vld [vmem:[%s2 + $0x70] sm:$0xff]
        %v495 = vld [vmem:[%s2 + $0x78] sm:$0xff]
        %vm496 = vcmask 261120
        %v498 = vsel %vm496, %v460, 0
        %500 = vmatprep.subr.mxu0 0.0
        %501 = vmatpush1.msra.mxu0 %v480
        %502 = vmatprep.subr.mxu0 0.0
        %503 = vmatpush1.msra.mxu0 %v481
        %504 = vmatprep.subr.mxu0 0.0
        %505 = vmatpush1.msra.mxu0 %v482
        %506 = vmatprep.subr.mxu0 0.0
        %507 = vmatpush1.msra.mxu0 %v483
        %508 = vmatprep.subr.mxu0 0.0
        %509 = vmatpush1.msra.mxu0 0.0
        %510 = vmatprep.subr.mxu0 0.0
        %511 = vmatpush1.msra.mxu0 0.0
        %512 = vmatprep.subr.mxu0 0.0
        %513 = vmatpush1.msra.mxu0 0.0
        %514 = vmatprep.subr.mxu0 0.0
        %515 = vmatpush1.msra.mxu0 0.0
        %516 = vmatprep.subr.mxu0 0.0
        %517 = vmatpush1.msra.mxu0 0.0
        %518 = vmatprep.subr.mxu0 0.0
        %519 = vmatpush1.msra.mxu0 0.0
        %520 = vmatprep.subr.mxu0 0.0
        %521 = vmatpush1.msra.mxu0 0.0
        %522 = vmatprep.subr.mxu0 0.0
        %523 = vmatpush1.msra.mxu0 0.0
        %524 = vmatprep.subr.mxu0 0.0
        %525 = vmatpush1.msra.mxu0 0.0
        %526 = vmatprep.subr.mxu0 0.0
        %527 = vmatpush1.msra.mxu0 0.0
        %528 = vmatprep.subr.mxu0 0.0
        %529 = vmatpush1.msra.mxu0 0.0
        %530 = vmatprep.subr.mxu0 0.0
        %531 = vmatpush1.msra.mxu0 0.0
        %532 = vmatprep.subr.mxu0 0.0
        %533 = vmatpush1.msra.mxu0 0.0
        %534 = vmatprep.subr.mxu0 0.0
        %535 = vmatpush1.msra.mxu0 0.0
        %536 = vmatprep.subr.mxu0 0.0
        %537 = vmatpush1.msra.mxu0 0.0
        %538 = vmatprep.subr.mxu0 0.0
        %539 = vmatpush1.msra.mxu0 0.0
        %540 = vmatprep.subr.mxu0 0.0
        %541 = vmatpush1.msra.mxu0 0.0
        %542 = vmatprep.subr.mxu0 0.0
        %543 = vmatpush1.msra.mxu0 0.0
        %544 = vmatprep.subr.mxu0 0.0
        %545 = vmatpush1.msra.mxu0 0.0
        %546 = vmatprep.subr.mxu0 0.0
        %547 = vmatpush1.msra.mxu0 0.0
        %548 = vmatprep.subr.mxu0 0.0
        %549 = vmatpush1.msra.mxu0 0.0
        %550 = vmatprep.subr.mxu0 0.0
        %551 = vmatpush1.msra.mxu0 0.0
        %552 = vmatprep.subr.mxu0 0.0
        %553 = vmatpush1.msra.mxu0 0.0
        %554 = vmatprep.subr.mxu0 0.0
        %555 = vmatpush1.msra.mxu0 0.0
        %556 = vmatprep.subr.mxu0 0.0
        %557 = vmatpush1.msra.mxu0 0.0
        %558 = vmatprep.subr.mxu0 0.0
        %559 = vmatpush1.msra.mxu0 0.0
        %560 = vmatprep.subr.mxu0 0.0
        %561 = vmatpush1.msra.mxu0 0.0
        %562 = vmatprep.subr.mxu0 0.0
        %563 = vmatpush1.msra.mxu0 0.0
        %564 = vmatprep.mubr.f32.mxu0 0.0
        %565 = vmatmul.mubr.f32.gmra.mrb[0].mxu0 %v498
        %v566 = vpop.f32.mrb[0].mxu0
        %v567 = vadd.f32 0.0, %v566
        %v568 = vpop.f32.mrb[0].mxu0
        %569 = vdwg.mxu0
        %570 = vmatprep.subr.mxu0 0.0
        %571 = vmatpush1.msra.mxu0 %v484
        %572 = vmatprep.subr.mxu0 0.0
        %573 = vmatpush1.msra.mxu0 %v485
        %574 = vmatprep.subr.mxu0 0.0
        %575 = vmatpush1.msra.mxu0 %v486
        %576 = vmatprep.subr.mxu0 0.0
        %577 = vmatpush1.msra.mxu0 %v487
        %578 = vmatprep.subr.mxu0 0.0
        %579 = vmatpush1.msra.mxu0 0.0
        %580 = vmatprep.subr.mxu0 0.0
        %581 = vmatpush1.msra.mxu0 0.0
        %582 = vmatprep.subr.mxu0 0.0
        %583 = vmatpush1.msra.mxu0 0.0
        %584 = vmatprep.subr.mxu0 0.0
        %585 = vmatpush1.msra.mxu0 0.0
        %586 = vmatprep.subr.mxu0 0.0
        %587 = vmatpush1.msra.mxu0 0.0
        %588 = vmatprep.subr.mxu0 0.0
        %589 = vmatpush1.msra.mxu0 0.0
        %590 = vmatprep.subr.mxu0 0.0
        %591 = vmatpush1.msra.mxu0 0.0
        %592 = vmatprep.subr.mxu0 0.0
        %593 = vmatpush1.msra.mxu0 0.0
        %594 = vmatprep.subr.mxu0 0.0
        %595 = vmatpush1.msra.mxu0 0.0
        %596 = vmatprep.subr.mxu0 0.0
        %597 = vmatpush1.msra.mxu0 0.0
        %598 = vmatprep.subr.mxu0 0.0
        %599 = vmatpush1.msra.mxu0 0.0
        %600 = vmatprep.subr.mxu0 0.0
        %601 = vmatpush1.msra.mxu0 0.0
        %602 = vmatprep.subr.mxu0 0.0
        %603 = vmatpush1.msra.mxu0 0.0
        %604 = vmatprep.subr.mxu0 0.0
        %605 = vmatpush1.msra.mxu0 0.0
        %606 = vmatprep.subr.mxu0 0.0
        %607 = vmatpush1.msra.mxu0 0.0
        %608 = vmatprep.subr.mxu0 0.0
        %609 = vmatpush1.msra.mxu0 0.0
        %610 = vmatprep.subr.mxu0 0.0
        %611 = vmatpush1.msra.mxu0 0.0
        %612 = vmatprep.subr.mxu0 0.0
        %613 = vmatpush1.msra.mxu0 0.0
        %614 = vmatprep.subr.mxu0 0.0
        %615 = vmatpush1.msra.mxu0 0.0
        %616 = vmatprep.subr.mxu0 0.0
        %617 = vmatpush1.msra.mxu0 0.0
        %618 = vmatprep.subr.mxu0 0.0
        %619 = vmatpush1.msra.mxu0 0.0
        %620 = vmatprep.subr.mxu0 0.0
        %621 = vmatpush1.msra.mxu0 0.0
        %622 = vmatprep.subr.mxu0 0.0
        %623 = vmatpush1.msra.mxu0 0.0
        %624 = vmatprep.subr.mxu0 0.0
        %625 = vmatpush1.msra.mxu0 0.0
        %626 = vmatprep.subr.mxu0 0.0
        %627 = vmatpush1.msra.mxu0 0.0
        %628 = vmatprep.subr.mxu0 0.0
        %629 = vmatpush1.msra.mxu0 0.0
        %630 = vmatprep.subr.mxu0 0.0
        %631 = vmatpush1.msra.mxu0 0.0
        %632 = vmatprep.subr.mxu0 0.0
        %633 = vmatpush1.msra.mxu0 0.0
        %634 = vmatprep.mubr.f32.mxu0 0.0
        %635 = vmatmul.mubr.f32.gmra.mrb[0].mxu0 %v498
        %v636 = vpop.f32.mrb[0].mxu0
        %v637 = vadd.f32 0.0, %v636
        %v638 = vpop.f32.mrb[0].mxu0
        %639 = vdwg.mxu0
        %640 = vmatprep.subr.mxu0 0.0
        %641 = vmatpush1.msra.mxu0 %v488
        %642 = vmatprep.subr.mxu0 0.0
        %643 = vmatpush1.msra.mxu0 %v489
        %644 = vmatprep.subr.mxu0 0.0
        %645 = vmatpush1.msra.mxu0 %v490
        %646 = vmatprep.subr.mxu0 0.0
        %647 = vmatpush1.msra.mxu0 %v491
        %648 = vmatprep.subr.mxu0 0.0
        %649 = vmatpush1.msra.mxu0 0.0
        %650 = vmatprep.subr.mxu0 0.0
        %651 = vmatpush1.msra.mxu0 0.0
        %652 = vmatprep.subr.mxu0 0.0
        %653 = vmatpush1.msra.mxu0 0.0
        %654 = vmatprep.subr.mxu0 0.0
        %655 = vmatpush1.msra.mxu0 0.0
        %656 = vmatprep.subr.mxu0 0.0
        %657 = vmatpush1.msra.mxu0 0.0
        %658 = vmatprep.subr.mxu0 0.0
        %659 = vmatpush1.msra.mxu0 0.0
        %660 = vmatprep.subr.mxu0 0.0
        %661 = vmatpush1.msra.mxu0 0.0
        %662 = vmatprep.subr.mxu0 0.0
        %663 = vmatpush1.msra.mxu0 0.0
        %664 = vmatprep.subr.mxu0 0.0
        %665 = vmatpush1.msra.mxu0 0.0
        %666 = vmatprep.subr.mxu0 0.0
        %667 = vmatpush1.msra.mxu0 0.0
        %668 = vmatprep.subr.mxu0 0.0
        %669 = vmatpush1.msra.mxu0 0.0
        %670 = vmatprep.subr.mxu0 0.0
        %671 = vmatpush1.msra.mxu0 0.0
        %672 = vmatprep.subr.mxu0 0.0
        %673 = vmatpush1.msra.mxu0 0.0
        %674 = vmatprep.subr.mxu0 0.0
        %675 = vmatpush1.msra.mxu0 0.0
        %676 = vmatprep.subr.mxu0 0.0
        %677 = vmatpush1.msra.mxu0 0.0
        %678 = vmatprep.subr.mxu0 0.0
        %679 = vmatpush1.msra.mxu0 0.0
        %680 = vmatprep.subr.mxu0 0.0
        %681 = vmatpush1.msra.mxu0 0.0
        %682 = vmatprep.subr.mxu0 0.0
        %683 = vmatpush1.msra.mxu0 0.0
        %684 = vmatprep.subr.mxu0 0.0
        %685 = vmatpush1.msra.mxu0 0.0
        %686 = vmatprep.subr.mxu0 0.0
        %687 = vmatpush1.msra.mxu0 0.0
        %688 = vmatprep.subr.mxu0 0.0
        %689 = vmatpush1.msra.mxu0 0.0
        %690 = vmatprep.subr.mxu0 0.0
        %691 = vmatpush1.msra.mxu0 0.0
        %692 = vmatprep.subr.mxu0 0.0
        %693 = vmatpush1.msra.mxu0 0.0
        %694 = vmatprep.subr.mxu0 0.0
        %695 = vmatpush1.msra.mxu0 0.0
        %696 = vmatprep.subr.mxu0 0.0
        %697 = vmatpush1.msra.mxu0 0.0
        %698 = vmatprep.subr.mxu0 0.0
        %699 = vmatpush1.msra.mxu0 0.0
        %700 = vmatprep.subr.mxu0 0.0
        %701 = vmatpush1.msra.mxu0 0.0
        %702 = vmatprep.subr.mxu0 0.0
        %703 = vmatpush1.msra.mxu0 0.0
        %704 = vmatprep.mubr.f32.mxu0 0.0
        %705 = vmatmul.mubr.f32.gmra.mrb[0].mxu0 %v498
        %v706 = vpop.f32.mrb[0].mxu0
        %v707 = vadd.f32 0.0, %v706
        %v708 = vpop.f32.mrb[0].mxu0
        %709 = vdwg.mxu0
        %710 = vmatprep.subr.mxu0 0.0
        %711 = vmatpush1.msra.mxu0 %v492
        %712 = vmatprep.subr.mxu0 0.0
        %713 = vmatpush1.msra.mxu0 %v493
        %714 = vmatprep.subr.mxu0 0.0
        %715 = vmatpush1.msra.mxu0 %v494
        %716 = vmatprep.subr.mxu0 0.0
        %717 = vmatpush1.msra.mxu0 %v495
        %718 = vmatprep.subr.mxu0 0.0
        %719 = vmatpush1.msra.mxu0 0.0
        %720 = vmatprep.subr.mxu0 0.0
        %721 = vmatpush1.msra.mxu0 0.0
        %722 = vmatprep.subr.mxu0 0.0
        %723 = vmatpush1.msra.mxu0 0.0
        %724 = vmatprep.subr.mxu0 0.0
        %725 = vmatpush1.msra.mxu0 0.0
        %726 = vmatprep.subr.mxu0 0.0
        %727 = vmatpush1.msra.mxu0 0.0
        %728 = vmatprep.subr.mxu0 0.0
        %729 = vmatpush1.msra.mxu0 0.0
        %730 = vmatprep.subr.mxu0 0.0
        %731 = vmatpush1.msra.mxu0 0.0
        %732 = vmatprep.subr.mxu0 0.0
        %733 = vmatpush1.msra.mxu0 0.0
        %734 = vmatprep.subr.mxu0 0.0
        %735 = vmatpush1.msra.mxu0 0.0
        %736 = vmatprep.subr.mxu0 0.0
        %737 = vmatpush1.msra.mxu0 0.0
        %738 = vmatprep.subr.mxu0 0.0
        %739 = vmatpush1.msra.mxu0 0.0
        %740 = vmatprep.subr.mxu0 0.0
        %741 = vmatpush1.msra.mxu0 0.0
        %742 = vmatprep.subr.mxu0 0.0
        %743 = vmatpush1.msra.mxu0 0.0
        %744 = vmatprep.subr.mxu0 0.0
        %745 = vmatpush1.msra.mxu0 0.0
        %746 = vmatprep.subr.mxu0 0.0
        %747 = vmatpush1.msra.mxu0 0.0
        %748 = vmatprep.subr.mxu0 0.0
        %749 = vmatpush1.msra.mxu0 0.0
        %750 = vmatprep.subr.mxu0 0.0
        %751 = vmatpush1.msra.mxu0 0.0
        %752 = vmatprep.subr.mxu0 0.0
        %753 = vmatpush1.msra.mxu0 0.0
        %754 = vmatprep.subr.mxu0 0.0
        %755 = vmatpush1.msra.mxu0 0.0
        %756 = vmatprep.subr.mxu0 0.0
        %757 = vmatpush1.msra.mxu0 0.0
        %758 = vmatprep.subr.mxu0 0.0
        %759 = vmatpush1.msra.mxu0 0.0
        %760 = vmatprep.subr.mxu0 0.0
        %761 = vmatpush1.msra.mxu0 0.0
        %762 = vmatprep.subr.mxu0 0.0
        %763 = vmatpush1.msra.mxu0 0.0
        %764 = vmatprep.subr.mxu0 0.0
        %765 = vmatpush1.msra.mxu0 0.0
        %766 = vmatprep.subr.mxu0 0.0
        %767 = vmatpush1.msra.mxu0 0.0
        %768 = vmatprep.subr.mxu0 0.0
        %769 = vmatpush1.msra.mxu0 0.0
        %770 = vmatprep.subr.mxu0 0.0
        %771 = vmatpush1.msra.mxu0 0.0
        %772 = vmatprep.subr.mxu0 0.0
        %773 = vmatpush1.msra.mxu0 0.0
        %774 = vmatprep.mubr.f32.mxu0 0.0
        %775 = vmatmul.mubr.f32.gmra.mrb[0].mxu0 %v498
        %v776 = vpop.f32.mrb[0].mxu0
        %v777 = vadd.f32 0.0, %v776
        %v778 = vpop.f32.mrb[0].mxu0
        %779 = vdwg.mxu0
        %v780 = vld [vmem:[%s3] sm:$0x1]
        %v781 = vld [vmem:[%s3 + $0x1] sm:$0x1]
        %v782 = vld [vmem:[%s3 + $0x2] sm:$0x1]
        %v783 = vld [vmem:[%s3 + $0x3] sm:$0x1]
        %v788 = vlaneseq
        %v789 = vshrl.u32 %v788, 7
        %v790 = vsub.s32 0, %v789
        %v791 = vrot.slane %v780, %v790
        %v792 = vlaneseq
        %v793 = vshrl.u32 %v792, 7
        %v794 = vsub.s32 0, %v793
        %v795 = vrot.slane %v781, %v794
        %v796 = vlaneseq
        %v797 = vshrl.u32 %v796, 7
        %v798 = vsub.s32 0, %v797
        %v799 = vrot.slane %v782, %v798
        %v800 = vlaneseq
        %v801 = vshrl.u32 %v800, 7
        %v802 = vsub.s32 0, %v801
        %v803 = vrot.slane %v783, %v802
        %v808 = vadd.f32 %v567, %v791
        %v809 = vadd.f32 %v637, %v795
        %v810 = vadd.f32 %v707, %v799
        %v811 = vadd.f32 %v777, %v803
        %v812 = vld [vmem:[%s4] sm:$0x1]
        %v813 = vld [vmem:[%s4 + $0x1] sm:$0x1]
        %v814 = vld [vmem:[%s4 + $0x2] sm:$0x1]
        %v815 = vld [vmem:[%s4 + $0x3] sm:$0x1]
        %v820 = vlaneseq
        %v821 = vshrl.u32 %v820, 7
        %v822 = vsub.s32 0, %v821
        %v823 = vrot.slane %v812, %v822
        %v824 = vlaneseq
        %v825 = vshrl.u32 %v824, 7
        %v826 = vsub.s32 0, %v825
        %v827 = vrot.slane %v813, %v826
        %v828 = vlaneseq
        %v829 = vshrl.u32 %v828, 7
        %v830 = vsub.s32 0, %v829
        %v831 = vrot.slane %v814, %v830
        %v832 = vlaneseq
        %v833 = vshrl.u32 %v832, 7
        %v834 = vsub.s32 0, %v833
        %v835 = vrot.slane %v815, %v834
        %v840 = vadd.f32 %v567, %v823
        %v841 = vadd.f32 %v637, %v827
        %v842 = vadd.f32 %v707, %v831
        %v843 = vadd.f32 %v777, %v835
        %v844 = vld [vmem:[%s5] sm:$0xff]
        %v845 = vld [vmem:[%s5 + $0x8] sm:$0xff]
        %v846 = vld [vmem:[%s5 + $0x10] sm:$0xff]
        %v847 = vld [vmem:[%s5 + $0x18] sm:$0xff]
        %vm848 = vcmask 64512
        %v850 = vsel %vm848, %v808, 0
        %v853 = vsel %vm848, %v844, 0
        %855 = vmatprep.subr.mxu0 0.0
        %856 = vmatpush1.xpose.msra.mxu0 %v853
        %857 = vmatprep.subr.mxu0 0.0
        %858 = vmatpush1.xpose.msra.mxu0 0.0
        %859 = vmatprep.subr.mxu0 0.0
        %860 = vmatpush1.xpose.msra.mxu0 0.0
        %861 = vmatprep.subr.mxu0 0.0
        %862 = vmatpush1.xpose.msra.mxu0 0.0
        %863 = vmatprep.subr.mxu0 0.0
        %864 = vmatpush1.xpose.msra.mxu0 0.0
        %865 = vmatprep.subr.mxu0 0.0
        %866 = vmatpush1.xpose.msra.mxu0 0.0
        %867 = vmatprep.subr.mxu0 0.0
        %868 = vmatpush1.xpose.msra.mxu0 0.0
        %869 = vmatprep.subr.mxu0 0.0
        %870 = vmatpush1.xpose.msra.mxu0 0.0
        %871 = vmatprep.subr.mxu0 0.0
        %872 = vmatpush1.xpose.msra.mxu0 0.0
        %873 = vmatprep.subr.mxu0 0.0
        %874 = vmatpush1.xpose.msra.mxu0 0.0
        %875 = vmatprep.subr.mxu0 0.0
        %876 = vmatpush1.xpose.msra.mxu0 0.0
        %877 = vmatprep.subr.mxu0 0.0
        %878 = vmatpush1.xpose.msra.mxu0 0.0
        %879 = vmatprep.subr.mxu0 0.0
        %880 = vmatpush1.xpose.msra.mxu0 0.0
        %881 = vmatprep.subr.mxu0 0.0
        %882 = vmatpush1.xpose.msra.mxu0 0.0
        %883 = vmatprep.subr.mxu0 0.0
        %884 = vmatpush1.xpose.msra.mxu0 0.0
        %885 = vmatprep.subr.mxu0 0.0
        %886 = vmatpush1.xpose.msra.mxu0 0.0
        %887 = vmatprep.subr.mxu0 0.0
        %888 = vmatpush1.xpose.msra.mxu0 0.0
        %889 = vmatprep.subr.mxu0 0.0
        %890 = vmatpush1.xpose.msra.mxu0 0.0
        %891 = vmatprep.subr.mxu0 0.0
        %892 = vmatpush1.xpose.msra.mxu0 0.0
        %893 = vmatprep.subr.mxu0 0.0
        %894 = vmatpush1.xpose.msra.mxu0 0.0
        %895 = vmatprep.subr.mxu0 0.0
        %896 = vmatpush1.xpose.msra.mxu0 0.0
        %897 = vmatprep.subr.mxu0 0.0
        %898 = vmatpush1.xpose.msra.mxu0 0.0
        %899 = vmatprep.subr.mxu0 0.0
        %900 = vmatpush1.xpose.msra.mxu0 0.0
        %901 = vmatprep.subr.mxu0 0.0
        %902 = vmatpush1.xpose.msra.mxu0 0.0
        %903 = vmatprep.subr.mxu0 0.0
        %904 = vmatpush1.xpose.msra.mxu0 0.0
        %905 = vmatprep.subr.mxu0 0.0
        %906 = vmatpush1.xpose.msra.mxu0 0.0
        %907 = vmatprep.subr.mxu0 0.0
        %908 = vmatpush1.xpose.msra.mxu0 0.0
        %909 = vmatprep.subr.mxu0 0.0
        %910 = vmatpush1.xpose.msra.mxu0 0.0
        %911 = vmatprep.subr.mxu0 0.0
        %912 = vmatpush1.xpose.msra.mxu0 0.0
        %913 = vmatprep.subr.mxu0 0.0
        %914 = vmatpush1.xpose.msra.mxu0 0.0
        %915 = vmatprep.subr.mxu0 0.0
        %916 = vmatpush1.xpose.msra.mxu0 0.0
        %917 = vmatprep.subr.mxu0 0.0
        %918 = vmatpush1.xpose.msra.mxu0 0.0
        %919 = vmatprep.mubr.f32.mxu0 0.0
        %920 = vmatmul.mubr.f32.gmra.mrb[0].mxu0 %v850
        %v921 = vpop.f32.mrb[0].mxu0
        %v922 = vadd.f32 0.0, %v921
        %v923 = vpop.f32.mrb[0].mxu0
        %924 = vdwg.mxu0
        %v926 = vsel %vm848, %v809, 0
        %v929 = vsel %vm848, %v845, 0
        %931 = vmatprep.subr.mxu0 0.0
        %932 = vmatpush1.xpose.msra.mxu0 %v929
        %933 = vmatprep.subr.mxu0 0.0
        %934 = vmatpush1.xpose.msra.mxu0 0.0
        %935 = vmatprep.subr.mxu0 0.0
        %936 = vmatpush1.xpose.msra.mxu0 0.0
        %937 = vmatprep.subr.mxu0 0.0
        %938 = vmatpush1.xpose.msra.mxu0 0.0
        %939 = vmatprep.subr.mxu0 0.0
        %940 = vmatpush1.xpose.msra.mxu0 0.0
        %941 = vmatprep.subr.mxu0 0.0
        %942 = vmatpush1.xpose.msra.mxu0 0.0
        %943 = vmatprep.subr.mxu0 0.0
        %944 = vmatpush1.xpose.msra.mxu0 0.0
        %945 = vmatprep.subr.mxu0 0.0
        %946 = vmatpush1.xpose.msra.mxu0 0.0
        %947 = vmatprep.subr.mxu0 0.0
        %948 = vmatpush1.xpose.msra.mxu0 0.0
        %949 = vmatprep.subr.mxu0 0.0
        %950 = vmatpush1.xpose.msra.mxu0 0.0
        %951 = vmatprep.subr.mxu0 0.0
        %952 = vmatpush1.xpose.msra.mxu0 0.0
        %953 = vmatprep.subr.mxu0 0.0
        %954 = vmatpush1.xpose.msra.mxu0 0.0
        %955 = vmatprep.subr.mxu0 0.0
        %956 = vmatpush1.xpose.msra.mxu0 0.0
        %957 = vmatprep.subr.mxu0 0.0
        %958 = vmatpush1.xpose.msra.mxu0 0.0
        %959 = vmatprep.subr.mxu0 0.0
        %960 = vmatpush1.xpose.msra.mxu0 0.0
        %961 = vmatprep.subr.mxu0 0.0
        %962 = vmatpush1.xpose.msra.mxu0 0.0
        %963 = vmatprep.subr.mxu0 0.0
        %964 = vmatpush1.xpose.msra.mxu0 0.0
        %965 = vmatprep.subr.mxu0 0.0
        %966 = vmatpush1.xpose.msra.mxu0 0.0
        %967 = vmatprep.subr.mxu0 0.0
        %968 = vmatpush1.xpose.msra.mxu0 0.0
        %969 = vmatprep.subr.mxu0 0.0
        %970 = vmatpush1.xpose.msra.mxu0 0.0
        %971 = vmatprep.subr.mxu0 0.0
        %972 = vmatpush1.xpose.msra.mxu0 0.0
        %973 = vmatprep.subr.mxu0 0.0
        %974 = vmatpush1.xpose.msra.mxu0 0.0
        %975 = vmatprep.subr.mxu0 0.0
        %976 = vmatpush1.xpose.msra.mxu0 0.0
        %977 = vmatprep.subr.mxu0 0.0
        %978 = vmatpush1.xpose.msra.mxu0 0.0
        %979 = vmatprep.subr.mxu0 0.0
        %980 = vmatpush1.xpose.msra.mxu0 0.0
        %981 = vmatprep.subr.mxu0 0.0
        %982 = vmatpush1.xpose.msra.mxu0 0.0
        %983 = vmatprep.subr.mxu0 0.0
        %984 = vmatpush1.xpose.msra.mxu0 0.0
        %985 = vmatprep.subr.mxu0 0.0
        %986 = vmatpush1.xpose.msra.mxu0 0.0
        %987 = vmatprep.subr.mxu0 0.0
        %988 = vmatpush1.xpose.msra.mxu0 0.0
        %989 = vmatprep.subr.mxu0 0.0
        %990 = vmatpush1.xpose.msra.mxu0 0.0
        %991 = vmatprep.subr.mxu0 0.0
        %992 = vmatpush1.xpose.msra.mxu0 0.0
        %993 = vmatprep.subr.mxu0 0.0
        %994 = vmatpush1.xpose.msra.mxu0 0.0
        %995 = vmatprep.mubr.f32.mxu0 0.0
        %996 = vmatmul.mubr.f32.gmra.mrb[0].mxu0 %v926
        %v997 = vpop.f32.mrb[0].mxu0
        %v998 = vadd.f32 0.0, %v997
        %v999 = vpop.f32.mrb[0].mxu0
        %1000 = vdwg.mxu0
        %v1002 = vsel %vm848, %v810, 0
        %v1005 = vsel %vm848, %v846, 0
        %1007 = vmatprep.subr.mxu0 0.0
        %1008 = vmatpush1.xpose.msra.mxu0 %v1005
        %1009 = vmatprep.subr.mxu0 0.0
        %1010 = vmatpush1.xpose.msra.mxu0 0.0
        %1011 = vmatprep.subr.mxu0 0.0
        %1012 = vmatpush1.xpose.msra.mxu0 0.0
        %1013 = vmatprep.subr.mxu0 0.0
        %1014 = vmatpush1.xpose.msra.mxu0 0.0
        %1015 = vmatprep.subr.mxu0 0.0
        %1016 = vmatpush1.xpose.msra.mxu0 0.0
        %1017 = vmatprep.subr.mxu0 0.0
        %1018 = vmatpush1.xpose.msra.mxu0 0.0
        %1019 = vmatprep.subr.mxu0 0.0
        %1020 = vmatpush1.xpose.msra.mxu0 0.0
        %1021 = vmatprep.subr.mxu0 0.0
        %1022 = vmatpush1.xpose.msra.mxu0 0.0
        %1023 = vmatprep.subr.mxu0 0.0
        %1024 = vmatpush1.xpose.msra.mxu0 0.0
        %1025 = vmatprep.subr.mxu0 0.0
        %1026 = vmatpush1.xpose.msra.mxu0 0.0
        %1027 = vmatprep.subr.mxu0 0.0
        %1028 = vmatpush1.xpose.msra.mxu0 0.0
        %1029 = vmatprep.subr.mxu0 0.0
        %1030 = vmatpush1.xpose.msra.mxu0 0.0
        %1031 = vmatprep.subr.mxu0 0.0
        %1032 = vmatpush1.xpose.msra.mxu0 0.0
        %1033 = vmatprep.subr.mxu0 0.0
        %1034 = vmatpush1.xpose.msra.mxu0 0.0
        %1035 = vmatprep.subr.mxu0 0.0
        %1036 = vmatpush1.xpose.msra.mxu0 0.0
        %1037 = vmatprep.subr.mxu0 0.0
        %1038 = vmatpush1.xpose.msra.mxu0 0.0
        %1039 = vmatprep.subr.mxu0 0.0
        %1040 = vmatpush1.xpose.msra.mxu0 0.0
        %1041 = vmatprep.subr.mxu0 0.0
        %1042 = vmatpush1.xpose.msra.mxu0 0.0
        %1043 = vmatprep.subr.mxu0 0.0
        %1044 = vmatpush1.xpose.msra.mxu0 0.0
        %1045 = vmatprep.subr.mxu0 0.0
        %1046 = vmatpush1.xpose.msra.mxu0 0.0
        %1047 = vmatprep.subr.mxu0 0.0
        %1048 = vmatpush1.xpose.msra.mxu0 0.0
        %1049 = vmatprep.subr.mxu0 0.0
        %1050 = vmatpush1.xpose.msra.mxu0 0.0
        %1051 = vmatprep.subr.mxu0 0.0
        %1052 = vmatpush1.xpose.msra.mxu0 0.0
        %1053 = vmatprep.subr.mxu0 0.0
        %1054 = vmatpush1.xpose.msra.mxu0 0.0
        %1055 = vmatprep.subr.mxu0 0.0
        %1056 = vmatpush1.xpose.msra.mxu0 0.0
        %1057 = vmatprep.subr.mxu0 0.0
        %1058 = vmatpush1.xpose.msra.mxu0 0.0
        %1059 = vmatprep.subr.mxu0 0.0
        %1060 = vmatpush1.xpose.msra.mxu0 0.0
        %1061 = vmatprep.subr.mxu0 0.0
        %1062 = vmatpush1.xpose.msra.mxu0 0.0
        %1063 = vmatprep.subr.mxu0 0.0
        %1064 = vmatpush1.xpose.msra.mxu0 0.0
        %1065 = vmatprep.subr.mxu0 0.0
        %1066 = vmatpush1.xpose.msra.mxu0 0.0
        %1067 = vmatprep.subr.mxu0 0.0
        %1068 = vmatpush1.xpose.msra.mxu0 0.0
        %1069 = vmatprep.subr.mxu0 0.0
        %1070 = vmatpush1.xpose.msra.mxu0 0.0
        %1071 = vmatprep.mubr.f32.mxu0 0.0
        %1072 = vmatmul.mubr.f32.gmra.mrb[0].mxu0 %v1002
        %v1073 = vpop.f32.mrb[0].mxu0
        %v1074 = vadd.f32 0.0, %v1073
        %v1075 = vpop.f32.mrb[0].mxu0
        %1076 = vdwg.mxu0
        %v1078 = vsel %vm848, %v811, 0
        %v1081 = vsel %vm848, %v847, 0
        %1083 = vmatprep.subr.mxu0 0.0
        %1084 = vmatpush1.xpose.msra.mxu0 %v1081
        %1085 = vmatprep.subr.mxu0 0.0
        %1086 = vmatpush1.xpose.msra.mxu0 0.0
        %1087 = vmatprep.subr.mxu0 0.0
        %1088 = vmatpush1.xpose.msra.mxu0 0.0
        %1089 = vmatprep.subr.mxu0 0.0
        %1090 = vmatpush1.xpose.msra.mxu0 0.0
        %1091 = vmatprep.subr.mxu0 0.0
        %1092 = vmatpush1.xpose.msra.mxu0 0.0
        %1093 = vmatprep.subr.mxu0 0.0
        %1094 = vmatpush1.xpose.msra.mxu0 0.0
        %1095 = vmatprep.subr.mxu0 0.0
        %1096 = vmatpush1.xpose.msra.mxu0 0.0
        %1097 = vmatprep.subr.mxu0 0.0
        %1098 = vmatpush1.xpose.msra.mxu0 0.0
        %1099 = vmatprep.subr.mxu0 0.0
        %1100 = vmatpush1.xpose.msra.mxu0 0.0
        %1101 = vmatprep.subr.mxu0 0.0
        %1102 = vmatpush1.xpose.msra.mxu0 0.0
        %1103 = vmatprep.subr.mxu0 0.0
        %1104 = vmatpush1.xpose.msra.mxu0 0.0
        %1105 = vmatprep.subr.mxu0 0.0
        %1106 = vmatpush1.xpose.msra.mxu0 0.0
        %1107 = vmatprep.subr.mxu0 0.0
        %1108 = vmatpush1.xpose.msra.mxu0 0.0
        %1109 = vmatprep.subr.mxu0 0.0
        %1110 = vmatpush1.xpose.msra.mxu0 0.0
        %1111 = vmatprep.subr.mxu0 0.0
        %1112 = vmatpush1.xpose.msra.mxu0 0.0
        %1113 = vmatprep.subr.mxu0 0.0
        %1114 = vmatpush1.xpose.msra.mxu0 0.0
        %1115 = vmatprep.subr.mxu0 0.0
        %1116 = vmatpush1.xpose.msra.mxu0 0.0
        %1117 = vmatprep.subr.mxu0 0.0
        %1118 = vmatpush1.xpose.msra.mxu0 0.0
        %1119 = vmatprep.subr.mxu0 0.0
        %1120 = vmatpush1.xpose.msra.mxu0 0.0
        %1121 = vmatprep.subr.mxu0 0.0
        %1122 = vmatpush1.xpose.msra.mxu0 0.0
        %1123 = vmatprep.subr.mxu0 0.0
        %1124 = vmatpush1.xpose.msra.mxu0 0.0
        %1125 = vmatprep.subr.mxu0 0.0
        %1126 = vmatpush1.xpose.msra.mxu0 0.0
        %1127 = vmatprep.subr.mxu0 0.0
        %1128 = vmatpush1.xpose.msra.mxu0 0.0
        %1129 = vmatprep.subr.mxu0 0.0
        %1130 = vmatpush1.xpose.msra.mxu0 0.0
        %1131 = vmatprep.subr.mxu0 0.0
        %1132 = vmatpush1.xpose.msra.mxu0 0.0
        %1133 = vmatprep.subr.mxu0 0.0
        %1134 = vmatpush1.xpose.msra.mxu0 0.0
        %1135 = vmatprep.subr.mxu0 0.0
        %1136 = vmatpush1.xpose.msra.mxu0 0.0
        %1137 = vmatprep.subr.mxu0 0.0
        %1138 = vmatpush1.xpose.msra.mxu0 0.0
        %1139 = vmatprep.subr.mxu0 0.0
        %1140 = vmatpush1.xpose.msra.mxu0 0.0
        %1141 = vmatprep.subr.mxu0 0.0
        %1142 = vmatpush1.xpose.msra.mxu0 0.0
        %1143 = vmatprep.subr.mxu0 0.0
        %1144 = vmatpush1.xpose.msra.mxu0 0.0
        %1145 = vmatprep.subr.mxu0 0.0
        %1146 = vmatpush1.xpose.msra.mxu0 0.0
        %1147 = vmatprep.mubr.f32.mxu0 0.0
        %1148 = vmatmul.mubr.f32.gmra.mrb[0].mxu0 %v1078
        %v1149 = vpop.f32.mrb[0].mxu0
        %v1150 = vadd.f32 0.0, %v1149
        %v1151 = vpop.f32.mrb[0].mxu0
        %1152 = vdwg.mxu0
        %v1153 = vld [vmem:[%s7] sm:$0xff]
        %v1154 = vld [vmem:[%s7 + $0x8] sm:$0xff]
        %v1155 = vld [vmem:[%s7 + $0x10] sm:$0xff]
        %v1156 = vld [vmem:[%s7 + $0x18] sm:$0xff]
        %v1157 = vld [vmem:[%s7 + $0x20] sm:$0xff]
        %v1158 = vld [vmem:[%s7 + $0x28] sm:$0xff]
        %v1159 = vld [vmem:[%s7 + $0x30] sm:$0xff]
        %v1160 = vld [vmem:[%s7 + $0x38] sm:$0xff]
        %v1161 = vld [vmem:[%s7 + $0x40] sm:$0xff]
        %v1162 = vld [vmem:[%s7 + $0x48] sm:$0xff]
        %v1163 = vld [vmem:[%s7 + $0x50] sm:$0xff]
        %v1164 = vld [vmem:[%s7 + $0x58] sm:$0xff]
        %v1165 = vld [vmem:[%s7 + $0x60] sm:$0xff]
        %v1166 = vld [vmem:[%s7 + $0x68] sm:$0xff]
        %v1167 = vld [vmem:[%s7 + $0x70] sm:$0xff]
        %v1168 = vld [vmem:[%s7 + $0x78] sm:$0xff]
        %v1169 = vld [vmem:[%s7 + $0x80] sm:$0xff]
        %v1170 = vld [vmem:[%s7 + $0x88] sm:$0xff]
        %v1171 = vld [vmem:[%s7 + $0x90] sm:$0xff]
        %v1172 = vld [vmem:[%s7 + $0x98] sm:$0xff]
        %v1173 = vld [vmem:[%s7 + $0xa0] sm:$0xff]
        %v1174 = vld [vmem:[%s7 + $0xa8] sm:$0xff]
        %v1175 = vld [vmem:[%s7 + $0xb0] sm:$0xff]
        %v1176 = vld [vmem:[%s7 + $0xb8] sm:$0xff]
        %v1177 = vld [vmem:[%s7 + $0xc0] sm:$0xff]
        %v1178 = vld [vmem:[%s7 + $0xc8] sm:$0xff]
        %v1179 = vld [vmem:[%s7 + $0xd0] sm:$0xff]
        %v1180 = vld [vmem:[%s7 + $0xd8] sm:$0xff]
        %v1181 = vld [vmem:[%s7 + $0xe0] sm:$0xff]
        %v1182 = vld [vmem:[%s7 + $0xe8] sm:$0xff]
        %v1183 = vld [vmem:[%s7 + $0xf0] sm:$0xff]
        %v1184 = vld [vmem:[%s7 + $0xf8] sm:$0xff]
        %v1185 = vld [vmem:[%s7 + $0x100] sm:$0xff]
        %v1186 = vld [vmem:[%s7 + $0x108] sm:$0xff]
        %v1187 = vld [vmem:[%s7 + $0x110] sm:$0xff]
        %v1188 = vld [vmem:[%s7 + $0x118] sm:$0xff]
        %v1189 = vld [vmem:[%s7 + $0x120] sm:$0xff]
        %v1190 = vld [vmem:[%s7 + $0x128] sm:$0xff]
        %v1191 = vld [vmem:[%s7 + $0x130] sm:$0xff]
        %v1192 = vld [vmem:[%s7 + $0x138] sm:$0xff]
        %v1193 = vld [vmem:[%s7 + $0x140] sm:$0xff]
        %v1194 = vld [vmem:[%s7 + $0x148] sm:$0xff]
        %v1195 = vld [vmem:[%s7 + $0x150] sm:$0xff]
        %v1196 = vld [vmem:[%s7 + $0x158] sm:$0xff]
        %v1197 = vld [vmem:[%s7 + $0x160] sm:$0xff]
        %v1198 = vld [vmem:[%s7 + $0x168] sm:$0xff]
        %v1199 = vld [vmem:[%s7 + $0x170] sm:$0xff]
        %v1200 = vld [vmem:[%s7 + $0x178] sm:$0xff]
        %v1201 = vld [vmem:[%s7 + $0x180] sm:$0xff]
        %v1202 = vld [vmem:[%s7 + $0x188] sm:$0xff]
        %v1203 = vld [vmem:[%s7 + $0x190] sm:$0xff]
        %v1204 = vld [vmem:[%s7 + $0x198] sm:$0xff]
        %v1205 = vld [vmem:[%s7 + $0x1a0] sm:$0xff]
        %v1206 = vld [vmem:[%s7 + $0x1a8] sm:$0xff]
        %v1207 = vld [vmem:[%s7 + $0x1b0] sm:$0xff]
        %v1208 = vld [vmem:[%s7 + $0x1b8] sm:$0xff]
        %v1209 = vld [vmem:[%s7 + $0x1c0] sm:$0xff]
        %v1210 = vld [vmem:[%s7 + $0x1c8] sm:$0xff]
        %v1211 = vld [vmem:[%s7 + $0x1d0] sm:$0xff]
        %v1212 = vld [vmem:[%s7 + $0x1d8] sm:$0xff]
        %v1213 = vld [vmem:[%s7 + $0x1e0] sm:$0xff]
        %v1214 = vld [vmem:[%s7 + $0x1e8] sm:$0xff]
        %v1215 = vld [vmem:[%s7 + $0x1f0] sm:$0xff]
        %v1216 = vld [vmem:[%s7 + $0x1f8] sm:$0xff]
        %v1218 = vsel %vm848, %v840, 0
        %v1221 = vsel %vm848, %v1153, 0
        %v1224 = vsel %vm848, %v1154, 0
        %v1227 = vsel %vm848, %v1155, 0
        %v1230 = vsel %vm848, %v1156, 0
        %v1233 = vsel %vm848, %v1157, 0
        %v1236 = vsel %vm848, %v1158, 0
        %v1239 = vsel %vm848, %v1159, 0
        %v1242 = vsel %vm848, %v1160, 0
        %v1245 = vsel %vm848, %v1161, 0
        %v1248 = vsel %vm848, %v1162, 0
        %v1251 = vsel %vm848, %v1163, 0
        %v1254 = vsel %vm848, %v1164, 0
        %v1257 = vsel %vm848, %v1165, 0
        %v1260 = vsel %vm848, %v1166, 0
        %v1263 = vsel %vm848, %v1167, 0
        %v1266 = vsel %vm848, %v1168, 0
        %1268 = vmatprep.subr.mxu0 0.0
        %1269 = vmatpush1.xpose.msra.mxu0 %v1221
        %1270 = vmatprep.subr.mxu0 0.0
        %1271 = vmatpush1.xpose.msra.mxu0 %v1224
        %1272 = vmatprep.subr.mxu0 0.0
        %1273 = vmatpush1.xpose.msra.mxu0 %v1227
        %1274 = vmatprep.subr.mxu0 0.0
        %1275 = vmatpush1.xpose.msra.mxu0 %v1230
        %1276 = vmatprep.subr.mxu0 0.0
        %1277 = vmatpush1.xpose.msra.mxu0 %v1233
        %1278 = vmatprep.subr.mxu0 0.0
        %1279 = vmatpush1.xpose.msra.mxu0 %v1236
        %1280 = vmatprep.subr.mxu0 0.0
        %1281 = vmatpush1.xpose.msra.mxu0 %v1239
        %1282 = vmatprep.subr.mxu0 0.0
        %1283 = vmatpush1.xpose.msra.mxu0 %v1242
        %1284 = vmatprep.subr.mxu0 0.0
        %1285 = vmatpush1.xpose.msra.mxu0 %v1245
        %1286 = vmatprep.subr.mxu0 0.0
        %1287 = vmatpush1.xpose.msra.mxu0 %v1248
        %1288 = vmatprep.subr.mxu0 0.0
        %1289 = vmatpush1.xpose.msra.mxu0 %v1251
        %1290 = vmatprep.subr.mxu0 0.0
        %1291 = vmatpush1.xpose.msra.mxu0 %v1254
        %1292 = vmatprep.subr.mxu0 0.0
        %1293 = vmatpush1.xpose.msra.mxu0 %v1257
        %1294 = vmatprep.subr.mxu0 0.0
        %1295 = vmatpush1.xpose.msra.mxu0 %v1260
        %1296 = vmatprep.subr.mxu0 0.0
        %1297 = vmatpush1.xpose.msra.mxu0 %v1263
        %1298 = vmatprep.subr.mxu0 0.0
        %1299 = vmatpush1.xpose.msra.mxu0 %v1266
        %1300 = vmatprep.subr.mxu0 0.0
        %1301 = vmatpush1.xpose.msra.mxu0 0.0
        %1302 = vmatprep.subr.mxu0 0.0
        %1303 = vmatpush1.xpose.msra.mxu0 0.0
        %1304 = vmatprep.subr.mxu0 0.0
        %1305 = vmatpush1.xpose.msra.mxu0 0.0
        %1306 = vmatprep.subr.mxu0 0.0
        %1307 = vmatpush1.xpose.msra.mxu0 0.0
        %1308 = vmatprep.subr.mxu0 0.0
        %1309 = vmatpush1.xpose.msra.mxu0 0.0
        %1310 = vmatprep.subr.mxu0 0.0
        %1311 = vmatpush1.xpose.msra.mxu0 0.0
        %1312 = vmatprep.subr.mxu0 0.0
        %1313 = vmatpush1.xpose.msra.mxu0 0.0
        %1314 = vmatprep.subr.mxu0 0.0
        %1315 = vmatpush1.xpose.msra.mxu0 0.0
        %1316 = vmatprep.subr.mxu0 0.0
        %1317 = vmatpush1.xpose.msra.mxu0 0.0
        %1318 = vmatprep.subr.mxu0 0.0
        %1319 = vmatpush1.xpose.msra.mxu0 0.0
        %1320 = vmatprep.subr.mxu0 0.0
        %1321 = vmatpush1.xpose.msra.mxu0 0.0
        %1322 = vmatprep.subr.mxu0 0.0
        %1323 = vmatpush1.xpose.msra.mxu0 0.0
        %1324 = vmatprep.subr.mxu0 0.0
        %1325 = vmatpush1.xpose.msra.mxu0 0.0
        %1326 = vmatprep.subr.mxu0 0.0
        %1327 = vmatpush1.xpose.msra.mxu0 0.0
        %1328 = vmatprep.subr.mxu0 0.0
        %1329 = vmatpush1.xpose.msra.mxu0 0.0
        %1330 = vmatprep.subr.mxu0 0.0
        %1331 = vmatpush1.xpose.msra.mxu0 0.0
        %1332 = vmatprep.mubr.f32.mxu0 0.0
        %1333 = vmatmul.mubr.f32.gmra.mrb[0].mxu0 %v1218
        %v1334 = vpop.f32.mrb[0].mxu0
        %v1335 = vadd.f32 0.0, %v1334
        %v1336 = vpop.f32.mrb[0].mxu0
        %1337 = vdwg.mxu0
        %v1339 = vsel %vm848, %v841, 0
        %v1342 = vsel %vm848, %v1169, 0
        %v1345 = vsel %vm848, %v1170, 0
        %v1348 = vsel %vm848, %v1171, 0
        %v1351 = vsel %vm848, %v1172, 0
        %v1354 = vsel %vm848, %v1173, 0
        %v1357 = vsel %vm848, %v1174, 0
        %v1360 = vsel %vm848, %v1175, 0
        %v1363 = vsel %vm848, %v1176, 0
        %v1366 = vsel %vm848, %v1177, 0
        %v1369 = vsel %vm848, %v1178, 0
        %v1372 = vsel %vm848, %v1179, 0
        %v1375 = vsel %vm848, %v1180, 0
        %v1378 = vsel %vm848, %v1181, 0
        %v1381 = vsel %vm848, %v1182, 0
        %v1384 = vsel %vm848, %v1183, 0
        %v1387 = vsel %vm848, %v1184, 0
        %1389 = vmatprep.subr.mxu0 0.0
        %1390 = vmatpush1.xpose.msra.mxu0 %v1342
        %1391 = vmatprep.subr.mxu0 0.0
        %1392 = vmatpush1.xpose.msra.mxu0 %v1345
        %1393 = vmatprep.subr.mxu0 0.0
        %1394 = vmatpush1.xpose.msra.mxu0 %v1348
        %1395 = vmatprep.subr.mxu0 0.0
        %1396 = vmatpush1.xpose.msra.mxu0 %v1351
        %1397 = vmatprep.subr.mxu0 0.0
        %1398 = vmatpush1.xpose.msra.mxu0 %v1354
        %1399 = vmatprep.subr.mxu0 0.0
        %1400 = vmatpush1.xpose.msra.mxu0 %v1357
        %1401 = vmatprep.subr.mxu0 0.0
        %1402 = vmatpush1.xpose.msra.mxu0 %v1360
        %1403 = vmatprep.subr.mxu0 0.0
        %1404 = vmatpush1.xpose.msra.mxu0 %v1363
        %1405 = vmatprep.subr.mxu0 0.0
        %1406 = vmatpush1.xpose.msra.mxu0 %v1366
        %1407 = vmatprep.subr.mxu0 0.0
        %1408 = vmatpush1.xpose.msra.mxu0 %v1369
        %1409 = vmatprep.subr.mxu0 0.0
        %1410 = vmatpush1.xpose.msra.mxu0 %v1372
        %1411 = vmatprep.subr.mxu0 0.0
        %1412 = vmatpush1.xpose.msra.mxu0 %v1375
        %1413 = vmatprep.subr.mxu0 0.0
        %1414 = vmatpush1.xpose.msra.mxu0 %v1378
        %1415 = vmatprep.subr.mxu0 0.0
        %1416 = vmatpush1.xpose.msra.mxu0 %v1381
        %1417 = vmatprep.subr.mxu0 0.0
        %1418 = vmatpush1.xpose.msra.mxu0 %v1384
        %1419 = vmatprep.subr.mxu0 0.0
        %1420 = vmatpush1.xpose.msra.mxu0 %v1387
        %1421 = vmatprep.subr.mxu0 0.0
        %1422 = vmatpush1.xpose.msra.mxu0 0.0
        %1423 = vmatprep.subr.mxu0 0.0
        %1424 = vmatpush1.xpose.msra.mxu0 0.0
        %1425 = vmatprep.subr.mxu0 0.0
        %1426 = vmatpush1.xpose.msra.mxu0 0.0
        %1427 = vmatprep.subr.mxu0 0.0
        %1428 = vmatpush1.xpose.msra.mxu0 0.0
        %1429 = vmatprep.subr.mxu0 0.0
        %1430 = vmatpush1.xpose.msra.mxu0 0.0
        %1431 = vmatprep.subr.mxu0 0.0
        %1432 = vmatpush1.xpose.msra.mxu0 0.0
        %1433 = vmatprep.subr.mxu0 0.0
        %1434 = vmatpush1.xpose.msra.mxu0 0.0
        %1435 = vmatprep.subr.mxu0 0.0
        %1436 = vmatpush1.xpose.msra.mxu0 0.0
        %1437 = vmatprep.subr.mxu0 0.0
        %1438 = vmatpush1.xpose.msra.mxu0 0.0
        %1439 = vmatprep.subr.mxu0 0.0
        %1440 = vmatpush1.xpose.msra.mxu0 0.0
        %1441 = vmatprep.subr.mxu0 0.0
        %1442 = vmatpush1.xpose.msra.mxu0 0.0
        %1443 = vmatprep.subr.mxu0 0.0
        %1444 = vmatpush1.xpose.msra.mxu0 0.0
        %1445 = vmatprep.subr.mxu0 0.0
        %1446 = vmatpush1.xpose.msra.mxu0 0.0
        %1447 = vmatprep.subr.mxu0 0.0
        %1448 = vmatpush1.xpose.msra.mxu0 0.0
        %1449 = vmatprep.subr.mxu0 0.0
        %1450 = vmatpush1.xpose.msra.mxu0 0.0
        %1451 = vmatprep.subr.mxu0 0.0
        %1452 = vmatpush1.xpose.msra.mxu0 0.0
        %1453 = vmatprep.mubr.f32.mxu0 0.0
        %1454 = vmatmul.mubr.f32.gmra.mrb[0].mxu0 %v1339
        %v1455 = vpop.f32.mrb[0].mxu0
        %v1456 = vadd.f32 0.0, %v1455
        %v1457 = vpop.f32.mrb[0].mxu0
        %1458 = vdwg.mxu0
        %v1460 = vsel %vm848, %v842, 0
        %v1463 = vsel %vm848, %v1185, 0
        %v1466 = vsel %vm848, %v1186, 0
        %v1469 = vsel %vm848, %v1187, 0
        %v1472 = vsel %vm848, %v1188, 0
        %v1475 = vsel %vm848, %v1189, 0
        %v1478 = vsel %vm848, %v1190, 0
        %v1481 = vsel %vm848, %v1191, 0
        %v1484 = vsel %vm848, %v1192, 0
        %v1487 = vsel %vm848, %v1193, 0
        %v1490 = vsel %vm848, %v1194, 0
        %v1493 = vsel %vm848, %v1195, 0
        %v1496 = vsel %vm848, %v1196, 0
        %v1499 = vsel %vm848, %v1197, 0
        %v1502 = vsel %vm848, %v1198, 0
        %v1505 = vsel %vm848, %v1199, 0
        %v1508 = vsel %vm848, %v1200, 0
        %1510 = vmatprep.subr.mxu0 0.0
        %1511 = vmatpush1.xpose.msra.mxu0 %v1463
        %1512 = vmatprep.subr.mxu0 0.0
        %1513 = vmatpush1.xpose.msra.mxu0 %v1466
        %1514 = vmatprep.subr.mxu0 0.0
        %1515 = vmatpush1.xpose.msra.mxu0 %v1469
        %1516 = vmatprep.subr.mxu0 0.0
        %1517 = vmatpush1.xpose.msra.mxu0 %v1472
        %1518 = vmatprep.subr.mxu0 0.0
        %1519 = vmatpush1.xpose.msra.mxu0 %v1475
        %1520 = vmatprep.subr.mxu0 0.0
        %1521 = vmatpush1.xpose.msra.mxu0 %v1478
        %1522 = vmatprep.subr.mxu0 0.0
        %1523 = vmatpush1.xpose.msra.mxu0 %v1481
        %1524 = vmatprep.subr.mxu0 0.0
        %1525 = vmatpush1.xpose.msra.mxu0 %v1484
        %1526 = vmatprep.subr.mxu0 0.0
        %1527 = vmatpush1.xpose.msra.mxu0 %v1487
        %1528 = vmatprep.subr.mxu0 0.0
        %1529 = vmatpush1.xpose.msra.mxu0 %v1490
        %1530 = vmatprep.subr.mxu0 0.0
        %1531 = vmatpush1.xpose.msra.mxu0 %v1493
        %1532 = vmatprep.subr.mxu0 0.0
        %1533 = vmatpush1.xpose.msra.mxu0 %v1496
        %1534 = vmatprep.subr.mxu0 0.0
        %1535 = vmatpush1.xpose.msra.mxu0 %v1499
        %1536 = vmatprep.subr.mxu0 0.0
        %1537 = vmatpush1.xpose.msra.mxu0 %v1502
        %1538 = vmatprep.subr.mxu0 0.0
        %1539 = vmatpush1.xpose.msra.mxu0 %v1505
        %1540 = vmatprep.subr.mxu0 0.0
        %1541 = vmatpush1.xpose.msra.mxu0 %v1508
        %1542 = vmatprep.subr.mxu0 0.0
        %1543 = vmatpush1.xpose.msra.mxu0 0.0
        %1544 = vmatprep.subr.mxu0 0.0
        %1545 = vmatpush1.xpose.msra.mxu0 0.0
        %1546 = vmatprep.subr.mxu0 0.0
        %1547 = vmatpush1.xpose.msra.mxu0 0.0
        %1548 = vmatprep.subr.mxu0 0.0
        %1549 = vmatpush1.xpose.msra.mxu0 0.0
        %1550 = vmatprep.subr.mxu0 0.0
        %1551 = vmatpush1.xpose.msra.mxu0 0.0
        %1552 = vmatprep.subr.mxu0 0.0
        %1553 = vmatpush1.xpose.msra.mxu0 0.0
        %1554 = vmatprep.subr.mxu0 0.0
        %1555 = vmatpush1.xpose.msra.mxu0 0.0
        %1556 = vmatprep.subr.mxu0 0.0
        %1557 = vmatpush1.xpose.msra.mxu0 0.0
        %1558 = vmatprep.subr.mxu0 0.0
        %1559 = vmatpush1.xpose.msra.mxu0 0.0
        %1560 = vmatprep.subr.mxu0 0.0
        %1561 = vmatpush1.xpose.msra.mxu0 0.0
        %1562 = vmatprep.subr.mxu0 0.0
        %1563 = vmatpush1.xpose.msra.mxu0 0.0
        %1564 = vmatprep.subr.mxu0 0.0
        %1565 = vmatpush1.xpose.msra.mxu0 0.0
        %1566 = vmatprep.subr.mxu0 0.0
        %1567 = vmatpush1.xpose.msra.mxu0 0.0
        %1568 = vmatprep.subr.mxu0 0.0
        %1569 = vmatpush1.xpose.msra.mxu0 0.0
        %1570 = vmatprep.subr.mxu0 0.0
        %1571 = vmatpush1.xpose.msra.mxu0 0.0
        %1572 = vmatprep.subr.mxu0 0.0
        %1573 = vmatpush1.xpose.msra.mxu0 0.0
        %1574 = vmatprep.mubr.f32.mxu0 0.0
        %1575 = vmatmul.mubr.f32.gmra.mrb[0].mxu0 %v1460
        %v1576 = vpop.f32.mrb[0].mxu0
        %v1577 = vadd.f32 0.0, %v1576
        %v1578 = vpop.f32.mrb[0].mxu0
        %1579 = vdwg.mxu0
        %v1581 = vsel %vm848, %v843, 0
        %v1584 = vsel %vm848, %v1201, 0
        %v1587 = vsel %vm848, %v1202, 0
        %v1590 = vsel %vm848, %v1203, 0
        %v1593 = vsel %vm848, %v1204, 0
        %v1596 = vsel %vm848, %v1205, 0
        %v1599 = vsel %vm848, %v1206, 0
        %v1602 = vsel %vm848, %v1207, 0
        %v1605 = vsel %vm848, %v1208, 0
        %v1608 = vsel %vm848, %v1209, 0
        %v1611 = vsel %vm848, %v1210, 0
        %v1614 = vsel %vm848, %v1211, 0
        %v1617 = vsel %vm848, %v1212, 0
        %v1620 = vsel %vm848, %v1213, 0
        %v1623 = vsel %vm848, %v1214, 0
        %v1626 = vsel %vm848, %v1215, 0
        %v1629 = vsel %vm848, %v1216, 0
        %1631 = vmatprep.subr.mxu0 0.0
        %1632 = vmatpush1.xpose.msra.mxu0 %v1584
        %1633 = vmatprep.subr.mxu0 0.0
        %1634 = vmatpush1.xpose.msra.mxu0 %v1587
        %1635 = vmatprep.subr.mxu0 0.0
        %1636 = vmatpush1.xpose.msra.mxu0 %v1590
        %1637 = vmatprep.subr.mxu0 0.0
        %1638 = vmatpush1.xpose.msra.mxu0 %v1593
        %1639 = vmatprep.subr.mxu0 0.0
        %1640 = vmatpush1.xpose.msra.mxu0 %v1596
        %1641 = vmatprep.subr.mxu0 0.0
        %1642 = vmatpush1.xpose.msra.mxu0 %v1599
        %1643 = vmatprep.subr.mxu0 0.0
        %1644 = vmatpush1.xpose.msra.mxu0 %v1602
        %1645 = vmatprep.subr.mxu0 0.0
        %1646 = vmatpush1.xpose.msra.mxu0 %v1605
        %1647 = vmatprep.subr.mxu0 0.0
        %1648 = vmatpush1.xpose.msra.mxu0 %v1608
        %1649 = vmatprep.subr.mxu0 0.0
        %1650 = vmatpush1.xpose.msra.mxu0 %v1611
        %1651 = vmatprep.subr.mxu0 0.0
        %1652 = vmatpush1.xpose.msra.mxu0 %v1614
        %1653 = vmatprep.subr.mxu0 0.0
        %1654 = vmatpush1.xpose.msra.mxu0 %v1617
        %1655 = vmatprep.subr.mxu0 0.0
        %1656 = vmatpush1.xpose.msra.mxu0 %v1620
        %1657 = vmatprep.subr.mxu0 0.0
        %1658 = vmatpush1.xpose.msra.mxu0 %v1623
        %1659 = vmatprep.subr.mxu0 0.0
        %1660 = vmatpush1.xpose.msra.mxu0 %v1626
        %1661 = vmatprep.subr.mxu0 0.0
        %1662 = vmatpush1.xpose.msra.mxu0 %v1629
        %1663 = vmatprep.subr.mxu0 0.0
        %1664 = vmatpush1.xpose.msra.mxu0 0.0
        %1665 = vmatprep.subr.mxu0 0.0
        %1666 = vmatpush1.xpose.msra.mxu0 0.0
        %1667 = vmatprep.subr.mxu0 0.0
        %1668 = vmatpush1.xpose.msra.mxu0 0.0
        %1669 = vmatprep.subr.mxu0 0.0
        %1670 = vmatpush1.xpose.msra.mxu0 0.0
        %1671 = vmatprep.subr.mxu0 0.0
        %1672 = vmatpush1.xpose.msra.mxu0 0.0
        %1673 = vmatprep.subr.mxu0 0.0
        %1674 = vmatpush1.xpose.msra.mxu0 0.0
        %1675 = vmatprep.subr.mxu0 0.0
        %1676 = vmatpush1.xpose.msra.mxu0 0.0
        %1677 = vmatprep.subr.mxu0 0.0
        %1678 = vmatpush1.xpose.msra.mxu0 0.0
        %1679 = vmatprep.subr.mxu0 0.0
        %1680 = vmatpush1.xpose.msra.mxu0 0.0
        %1681 = vmatprep.subr.mxu0 0.0
        %1682 = vmatpush1.xpose.msra.mxu0 0.0
        %1683 = vmatprep.subr.mxu0 0.0
        %1684 = vmatpush1.xpose.msra.mxu0 0.0
        %1685 = vmatprep.subr.mxu0 0.0
        %1686 = vmatpush1.xpose.msra.mxu0 0.0
        %1687 = vmatprep.subr.mxu0 0.0
        %1688 = vmatpush1.xpose.msra.mxu0 0.0
        %1689 = vmatprep.subr.mxu0 0.0
        %1690 = vmatpush1.xpose.msra.mxu0 0.0
        %1691 = vmatprep.subr.mxu0 0.0
        %1692 = vmatpush1.xpose.msra.mxu0 0.0
        %1693 = vmatprep.subr.mxu0 0.0
        %1694 = vmatpush1.xpose.msra.mxu0 0.0
        %1695 = vmatprep.mubr.f32.mxu0 0.0
        %1696 = vmatmul.mubr.f32.gmra.mrb[0].mxu0 %v1581
        %v1697 = vpop.f32.mrb[0].mxu0
        %v1698 = vadd.f32 0.0, %v1697
        %v1699 = vpop.f32.mrb[0].mxu0
        %1700 = vdwg.mxu0
        %1705 = vrot.lane.b32.xlu0 %v1335, 1
        %v1706 = vpop.permute.xlu0 %1705
        %1707 = vrot.lane.b32.xlu0 %v1456, 1
        %v1708 = vpop.permute.xlu0 %1707
        %1709 = vrot.lane.b32.xlu0 %v1577, 1
        %v1710 = vpop.permute.xlu0 %1709
        %1711 = vrot.lane.b32.xlu0 %v1698, 1
        %v1712 = vpop.permute.xlu0 %1711
        %v1717 = vand.u32 %v479, 1
        %vm1718 = vcmp.ne.s32.totalorder %v1717, 0
        %v1719 = vsel %vm1718, %v1706, %v1335
        %v1720 = vsel %vm1718, %v1708, %v1456
        %v1721 = vsel %vm1718, %v1710, %v1577
        %v1722 = vsel %vm1718, %v1712, %v1698
        %1727 = vrot.lane.b32.xlu0 %v1719, 2
        %v1728 = vpop.permute.xlu0 %1727
        %1729 = vrot.lane.b32.xlu0 %v1720, 2
        %v1730 = vpop.permute.xlu0 %1729
        %1731 = vrot.lane.b32.xlu0 %v1721, 2
        %v1732 = vpop.permute.xlu0 %1731
        %1733 = vrot.lane.b32.xlu0 %v1722, 2
        %v1734 = vpop.permute.xlu0 %1733
        %v1739 = vand.u32 %v479, 2
        %vm1740 = vcmp.ne.s32.totalorder %v1739, 0
        %v1741 = vsel %vm1740, %v1728, %v1719
        %v1742 = vsel %vm1740, %v1730, %v1720
        %v1743 = vsel %vm1740, %v1732, %v1721
        %v1744 = vsel %vm1740, %v1734, %v1722
        %1749 = vrot.lane.b32.xlu0 %v1741, 4
        %v1750 = vpop.permute.xlu0 %1749
        %1751 = vrot.lane.b32.xlu0 %v1742, 4
        %v1752 = vpop.permute.xlu0 %1751
        %1753 = vrot.lane.b32.xlu0 %v1743, 4
        %v1754 = vpop.permute.xlu0 %1753
        %1755 = vrot.lane.b32.xlu0 %v1744, 4
        %v1756 = vpop.permute.xlu0 %1755
        %v1761 = vand.u32 %v479, 4
        %vm1762 = vcmp.ne.s32.totalorder %v1761, 0
        %v1763 = vsel %vm1762, %v1750, %v1741
        %v1764 = vsel %vm1762, %v1752, %v1742
        %v1765 = vsel %vm1762, %v1754, %v1743
        %v1766 = vsel %vm1762, %v1756, %v1744
        %v1767 = vmax.f32 %v922, -65504.0
        %v1768 = vmax.f32 %v998, -65504.0
        %v1769 = vmax.f32 %v1074, -65504.0
        %v1770 = vmax.f32 %v1150, -65504.0
        %v1771 = vmin.f32 %v1767, 65504.0
        %v1772 = vmin.f32 %v1768, 65504.0
        %v1773 = vmin.f32 %v1769, 65504.0
        %v1774 = vmin.f32 %v1770, 65504.0
        %v1775 = vmul.f32 %v1771, 0.35355338
        %v1776 = vmul.f32 %v1772, 0.35355338
        %v1777 = vmul.f32 %v1773, 0.35355338
        %v1778 = vmul.f32 %v1774, 0.35355338
        %v1779 = vmax.f32 %v1763, -65504.0
        %v1780 = vmax.f32 %v1764, -65504.0
        %v1781 = vmax.f32 %v1765, -65504.0
        %v1782 = vmax.f32 %v1766, -65504.0
        %v1783 = vmin.f32 %v1779, 65504.0
        %v1784 = vmin.f32 %v1780, 65504.0
        %v1785 = vmin.f32 %v1781, 65504.0
        %v1786 = vmin.f32 %v1782, 65504.0
        %v1787 = vmul.f32 %v1783, 0.35355338
        %v1788 = vmul.f32 %v1784, 0.35355338
        %v1789 = vmul.f32 %v1785, 0.35355338
        %v1790 = vmul.f32 %v1786, 0.35355338
        %1795 = vrot.lane.b32.xlu0 %v1787, 121
        %v1796 = vpop.permute.xlu0 %1795
        %1797 = vrot.lane.b32.xlu0 %v1788, 121
        %v1798 = vpop.permute.xlu0 %1797
        %1799 = vrot.lane.b32.xlu0 %v1789, 121
        %v1800 = vpop.permute.xlu0 %1799
        %1801 = vrot.lane.b32.xlu0 %v1790, 121
        %v1802 = vpop.permute.xlu0 %1801
        %v1807 = vadd.f32 %v1775, %v1796
        %v1808 = vadd.f32 %v1776, %v1798
        %v1809 = vadd.f32 %v1777, %v1800
        %v1810 = vadd.f32 %v1778, %v1802
        %v1811 = vsel %vm462, 1, 0
        %1812 = vset.pattern.permute.xlu0 0
        %1813 = vperm.xlu0 %1812, %v1811
        %v1814 = vpop.permute.xlu0 %1813
        %vm1815 = vcmp.eq.s32.totalorder %v1814, 1
        %v1816 = vsel %vm1815, -3.4028235e+38, %v1807
        %v1817 = vsel %vm1815, -3.4028235e+38, %v1808
        %v1818 = vsel %vm1815, -3.4028235e+38, %v1809
        %v1819 = vsel %vm1815, -3.4028235e+38, %v1810
        %v1820 = vsel %vm848, %v1816, -inf
        %1821 = vmax.xlane.f32.xlu0 %v1820
        %v1822 = vpop.xlane.xlu0 %1821
        %v1823 = vsel %vm848, %v1817, -inf
        %1824 = vmax.xlane.f32.xlu0 %v1823
        %v1825 = vpop.xlane.xlu0 %1824
        %v1826 = vsel %vm848, %v1818, -inf
        %1827 = vmax.xlane.f32.xlu0 %v1826
        %v1828 = vpop.xlane.xlu0 %1827
        %v1829 = vsel %vm848, %v1819, -inf
        %1830 = vmax.xlane.f32.xlu0 %v1829
        %v1831 = vpop.xlane.xlu0 %1830
        %v1832 = vsub.f32 %v1816, %v1822
        %v1833 = vsub.f32 %v1817, %v1825
        %v1834 = vsub.f32 %v1818, %v1828
        %v1835 = vsub.f32 %v1819, %v1831
        %v1836 = vmul.f32 %v1832, 1.442695
        %v1837 = vpow.pop %v1836
        %v1838 = vmul.f32 %v1833, 1.442695
        %v1839 = vpow.pop %v1838
        %v1840 = vmul.f32 %v1834, 1.442695
        %v1841 = vpow.pop %v1840
        %v1842 = vmul.f32 %v1835, 1.442695
        %v1843 = vpow.pop %v1842
        %v1844 = vsel %vm848, %v1837, 0.0
        %1845 = vadd.xlane.f32.xlu0 %v1844
        %v1846 = vpop.xlane.xlu0 %1845
        %v1847 = vsel %vm848, %v1839, 0.0
        %1848 = vadd.xlane.f32.xlu0 %v1847
        %v1849 = vpop.xlane.xlu0 %1848
        %v1850 = vsel %vm848, %v1841, 0.0
        %1851 = vadd.xlane.f32.xlu0 %v1850
        %v1852 = vpop.xlane.xlu0 %1851
        %v1853 = vsel %vm848, %v1843, 0.0
        %1854 = vadd.xlane.f32.xlu0 %v1853
        %v1855 = vpop.xlane.xlu0 %1854
        %v1856 = vrcp.pop %v1846
        %v1857 = vrcp.pop %v1849
        %v1858 = vrcp.pop %v1852
        %v1859 = vrcp.pop %v1855
        %v1860 = vmul.f32 %v1837, %v1856
        %v1861 = vmul.f32 %v1839, %v1857
        %v1862 = vmul.f32 %v1841, %v1858
        %v1863 = vmul.f32 %v1843, %v1859
        %v1864 = vsel %vm1815, 0.0, %v1860
        %v1865 = vsel %vm1815, 0.0, %v1861
        %v1866 = vsel %vm1815, 0.0, %v1862
        %v1867 = vsel %vm1815, 0.0, %v1863
        %1868 = vst.msk [vmem:[%s451] sm:$0xff] %vm848, %v1864
        %1869 = vst.msk [vmem:[%s451 + $0x8] sm:$0xff] %vm848, %v1865
        %1870 = vst.msk [vmem:[%s451 + $0x10] sm:$0xff] %vm848, %v1866
        %1871 = vst.msk [vmem:[%s451 + $0x18] sm:$0xff] %vm848, %v1867
        %v1872 = vld [vmem:[%s6] sm:$0xff]
        %v1873 = vld [vmem:[%s6 + $0x8] sm:$0xff]
        %v1874 = vld [vmem:[%s6 + $0x10] sm:$0xff]
        %v1875 = vld [vmem:[%s6 + $0x18] sm:$0xff]
        %v1877 = vsel %vm848, %v1864, 0
        %1879 = vmatprep.subr.mxu0 0.0
        %1880 = vmatpush1.msra.mxu0 %v1872
        %1881 = vmatprep.subr.mxu0 0.0
        %1882 = vmatpush1.msra.mxu0 0.0
        %1883 = vmatprep.subr.mxu0 0.0
        %1884 = vmatpush1.msra.mxu0 0.0
        %1885 = vmatprep.subr.mxu0 0.0
        %1886 = vmatpush1.msra.mxu0 0.0
        %1887 = vmatprep.subr.mxu0 0.0
        %1888 = vmatpush1.msra.mxu0 0.0
        %1889 = vmatprep.subr.mxu0 0.0
        %1890 = vmatpush1.msra.mxu0 0.0
        %1891 = vmatprep.subr.mxu0 0.0
        %1892 = vmatpush1.msra.mxu0 0.0
        %1893 = vmatprep.subr.mxu0 0.0
        %1894 = vmatpush1.msra.mxu0 0.0
        %1895 = vmatprep.subr.mxu0 0.0
        %1896 = vmatpush1.msra.mxu0 0.0
        %1897 = vmatprep.subr.mxu0 0.0
        %1898 = vmatpush1.msra.mxu0 0.0
        %1899 = vmatprep.subr.mxu0 0.0
        %1900 = vmatpush1.msra.mxu0 0.0
        %1901 = vmatprep.subr.mxu0 0.0
        %1902 = vmatpush1.msra.mxu0 0.0
        %1903 = vmatprep.subr.mxu0 0.0
        %1904 = vmatpush1.msra.mxu0 0.0
        %1905 = vmatprep.subr.mxu0 0.0
        %1906 = vmatpush1.msra.mxu0 0.0
        %1907 = vmatprep.subr.mxu0 0.0
        %1908 = vmatpush1.msra.mxu0 0.0
        %1909 = vmatprep.subr.mxu0 0.0
        %1910 = vmatpush1.msra.mxu0 0.0
        %1911 = vmatprep.subr.mxu0 0.0
        %1912 = vmatpush1.msra.mxu0 0.0
        %1913 = vmatprep.subr.mxu0 0.0
        %1914 = vmatpush1.msra.mxu0 0.0
        %1915 = vmatprep.subr.mxu0 0.0
        %1916 = vmatpush1.msra.mxu0 0.0
        %1917 = vmatprep.subr.mxu0 0.0
        %1918 = vmatpush1.msra.mxu0 0.0
        %1919 = vmatprep.subr.mxu0 0.0
        %1920 = vmatpush1.msra.mxu0 0.0
        %1921 = vmatprep.subr.mxu0 0.0
        %1922 = vmatpush1.msra.mxu0 0.0
        %1923 = vmatprep.subr.mxu0 0.0
        %1924 = vmatpush1.msra.mxu0 0.0
        %1925 = vmatprep.subr.mxu0 0.0
        %1926 = vmatpush1.msra.mxu0 0.0
        %1927 = vmatprep.subr.mxu0 0.0
        %1928 = vmatpush1.msra.mxu0 0.0
        %1929 = vmatprep.subr.mxu0 0.0
        %1930 = vmatpush1.msra.mxu0 0.0
        %1931 = vmatprep.subr.mxu0 0.0
        %1932 = vmatpush1.msra.mxu0 0.0
        %1933 = vmatprep.subr.mxu0 0.0
        %1934 = vmatpush1.msra.mxu0 0.0
        %1935 = vmatprep.subr.mxu0 0.0
        %1936 = vmatpush1.msra.mxu0 0.0
        %1937 = vmatprep.subr.mxu0 0.0
        %1938 = vmatpush1.msra.mxu0 0.0
        %1939 = vmatprep.subr.mxu0 0.0
        %1940 = vmatpush1.msra.mxu0 0.0
        %1941 = vmatprep.subr.mxu0 0.0
        %1942 = vmatpush1.msra.mxu0 0.0
        %1943 = vmatprep.mubr.f32.mxu0 0.0
        %1944 = vmatmul.mubr.f32.gmra.mrb[0].mxu0 %v1877
        %v1945 = vpop.f32.mrb[0].mxu0
        %v1946 = vadd.f32 0.0, %v1945
        %v1947 = vpop.f32.mrb[0].mxu0
        %1948 = vdwg.mxu0
        %v1950 = vsel %vm848, %v1865, 0
        %1952 = vmatprep.subr.mxu0 0.0
        %1953 = vmatpush1.msra.mxu0 %v1873
        %1954 = vmatprep.subr.mxu0 0.0
        %1955 = vmatpush1.msra.mxu0 0.0
        %1956 = vmatprep.subr.mxu0 0.0
        %1957 = vmatpush1.msra.mxu0 0.0
        %1958 = vmatprep.subr.mxu0 0.0
        %1959 = vmatpush1.msra.mxu0 0.0
        %1960 = vmatprep.subr.mxu0 0.0
        %1961 = vmatpush1.msra.mxu0 0.0
        %1962 = vmatprep.subr.mxu0 0.0
        %1963 = vmatpush1.msra.mxu0 0.0
        %1964 = vmatprep.subr.mxu0 0.0
        %1965 = vmatpush1.msra.mxu0 0.0
        %1966 = vmatprep.subr.mxu0 0.0
        %1967 = vmatpush1.msra.mxu0 0.0
        %1968 = vmatprep.subr.mxu0 0.0
        %1969 = vmatpush1.msra.mxu0 0.0
        %1970 = vmatprep.subr.mxu0 0.0
        %1971 = vmatpush1.msra.mxu0 0.0
        %1972 = vmatprep.subr.mxu0 0.0
        %1973 = vmatpush1.msra.mxu0 0.0
        %1974 = vmatprep.subr.mxu0 0.0
        %1975 = vmatpush1.msra.mxu0 0.0
        %1976 = vmatprep.subr.mxu0 0.0
        %1977 = vmatpush1.msra.mxu0 0.0
        %1978 = vmatprep.subr.mxu0 0.0
        %1979 = vmatpush1.msra.mxu0 0.0
        %1980 = vmatprep.subr.mxu0 0.0
        %1981 = vmatpush1.msra.mxu0 0.0
        %1982 = vmatprep.subr.mxu0 0.0
        %1983 = vmatpush1.msra.mxu0 0.0
        %1984 = vmatprep.subr.mxu0 0.0
        %1985 = vmatpush1.msra.mxu0 0.0
        %1986 = vmatprep.subr.mxu0 0.0
        %1987 = vmatpush1.msra.mxu0 0.0
        %1988 = vmatprep.subr.mxu0 0.0
        %1989 = vmatpush1.msra.mxu0 0.0
        %1990 = vmatprep.subr.mxu0 0.0
        %1991 = vmatpush1.msra.mxu0 0.0
        %1992 = vmatprep.subr.mxu0 0.0
        %1993 = vmatpush1.msra.mxu0 0.0
        %1994 = vmatprep.subr.mxu0 0.0
        %1995 = vmatpush1.msra.mxu0 0.0
        %1996 = vmatprep.subr.mxu0 0.0
        %1997 = vmatpush1.msra.mxu0 0.0
        %1998 = vmatprep.subr.mxu0 0.0
        %1999 = vmatpush1.msra.mxu0 0.0
        %2000 = vmatprep.subr.mxu0 0.0
        %2001 = vmatpush1.msra.mxu0 0.0
        %2002 = vmatprep.subr.mxu0 0.0
        %2003 = vmatpush1.msra.mxu0 0.0
        %2004 = vmatprep.subr.mxu0 0.0
        %2005 = vmatpush1.msra.mxu0 0.0
        %2006 = vmatprep.subr.mxu0 0.0
        %2007 = vmatpush1.msra.mxu0 0.0
        %2008 = vmatprep.subr.mxu0 0.0
        %2009 = vmatpush1.msra.mxu0 0.0
        %2010 = vmatprep.subr.mxu0 0.0
        %2011 = vmatpush1.msra.mxu0 0.0
        %2012 = vmatprep.subr.mxu0 0.0
        %2013 = vmatpush1.msra.mxu0 0.0
        %2014 = vmatprep.subr.mxu0 0.0
        %2015 = vmatpush1.msra.mxu0 0.0
        %2016 = vmatprep.mubr.f32.mxu0 0.0
        %2017 = vmatmul.mubr.f32.gmra.mrb[0].mxu0 %v1950
        %v2018 = vpop.f32.mrb[0].mxu0
        %v2019 = vadd.f32 0.0, %v2018
        %v2020 = vpop.f32.mrb[0].mxu0
        %2021 = vdwg.mxu0
        %v2023 = vsel %vm848, %v1866, 0
        %2025 = vmatprep.subr.mxu0 0.0
        %2026 = vmatpush1.msra.mxu0 %v1874
        %2027 = vmatprep.subr.mxu0 0.0
        %2028 = vmatpush1.msra.mxu0 0.0
        %2029 = vmatprep.subr.mxu0 0.0
        %2030 = vmatpush1.msra.mxu0 0.0
        %2031 = vmatprep.subr.mxu0 0.0
        %2032 = vmatpush1.msra.mxu0 0.0
        %2033 = vmatprep.subr.mxu0 0.0
        %2034 = vmatpush1.msra.mxu0 0.0
        %2035 = vmatprep.subr.mxu0 0.0
        %2036 = vmatpush1.msra.mxu0 0.0
        %2037 = vmatprep.subr.mxu0 0.0
        %2038 = vmatpush1.msra.mxu0 0.0
        %2039 = vmatprep.subr.mxu0 0.0
        %2040 = vmatpush1.msra.mxu0 0.0
        %2041 = vmatprep.subr.mxu0 0.0
        %2042 = vmatpush1.msra.mxu0 0.0
        %2043 = vmatprep.subr.mxu0 0.0
        %2044 = vmatpush1.msra.mxu0 0.0
        %2045 = vmatprep.subr.mxu0 0.0
        %2046 = vmatpush1.msra.mxu0 0.0
        %2047 = vmatprep.subr.mxu0 0.0
        %2048 = vmatpush1.msra.mxu0 0.0
        %2049 = vmatprep.subr.mxu0 0.0
        %2050 = vmatpush1.msra.mxu0 0.0
        %2051 = vmatprep.subr.mxu0 0.0
        %2052 = vmatpush1.msra.mxu0 0.0
        %2053 = vmatprep.subr.mxu0 0.0
        %2054 = vmatpush1.msra.mxu0 0.0
        %2055 = vmatprep.subr.mxu0 0.0
        %2056 = vmatpush1.msra.mxu0 0.0
        %2057 = vmatprep.subr.mxu0 0.0
        %2058 = vmatpush1.msra.mxu0 0.0
        %2059 = vmatprep.subr.mxu0 0.0
        %2060 = vmatpush1.msra.mxu0 0.0
        %2061 = vmatprep.subr.mxu0 0.0
        %2062 = vmatpush1.msra.mxu0 0.0
        %2063 = vmatprep.subr.mxu0 0.0
        %2064 = vmatpush1.msra.mxu0 0.0
        %2065 = vmatprep.subr.mxu0 0.0
        %2066 = vmatpush1.msra.mxu0 0.0
        %2067 = vmatprep.subr.mxu0 0.0
        %2068 = vmatpush1.msra.mxu0 0.0
        %2069 = vmatprep.subr.mxu0 0.0
        %2070 = vmatpush1.msra.mxu0 0.0
        %2071 = vmatprep.subr.mxu0 0.0
        %2072 = vmatpush1.msra.mxu0 0.0
        %2073 = vmatprep.subr.mxu0 0.0
        %2074 = vmatpush1.msra.mxu0 0.0
        %2075 = vmatprep.subr.mxu0 0.0
        %2076 = vmatpush1.msra.mxu0 0.0
        %2077 = vmatprep.subr.mxu0 0.0
        %2078 = vmatpush1.msra.mxu0 0.0
        %2079 = vmatprep.subr.mxu0 0.0
        %2080 = vmatpush1.msra.mxu0 0.0
        %2081 = vmatprep.subr.mxu0 0.0
        %2082 = vmatpush1.msra.mxu0 0.0
        %2083 = vmatprep.subr.mxu0 0.0
        %2084 = vmatpush1.msra.mxu0 0.0
        %2085 = vmatprep.subr.mxu0 0.0
        %2086 = vmatpush1.msra.mxu0 0.0
        %2087 = vmatprep.subr.mxu0 0.0
        %2088 = vmatpush1.msra.mxu0 0.0
        %2089 = vmatprep.mubr.f32.mxu0 0.0
        %2090 = vmatmul.mubr.f32.gmra.mrb[0].mxu0 %v2023
        %v2091 = vpop.f32.mrb[0].mxu0
        %v2092 = vadd.f32 0.0, %v2091
        %v2093 = vpop.f32.mrb[0].mxu0
        %2094 = vdwg.mxu0
        %v2096 = vsel %vm848, %v1867, 0
        %2098 = vmatprep.subr.mxu0 0.0
        %2099 = vmatpush1.msra.mxu0 %v1875
        %2100 = vmatprep.subr.mxu0 0.0
        %2101 = vmatpush1.msra.mxu0 0.0
        %2102 = vmatprep.subr.mxu0 0.0
        %2103 = vmatpush1.msra.mxu0 0.0
        %2104 = vmatprep.subr.mxu0 0.0
        %2105 = vmatpush1.msra.mxu0 0.0
        %2106 = vmatprep.subr.mxu0 0.0
        %2107 = vmatpush1.msra.mxu0 0.0
        %2108 = vmatprep.subr.mxu0 0.0
        %2109 = vmatpush1.msra.mxu0 0.0
        %2110 = vmatprep.subr.mxu0 0.0
        %2111 = vmatpush1.msra.mxu0 0.0
        %2112 = vmatprep.subr.mxu0 0.0
        %2113 = vmatpush1.msra.mxu0 0.0
        %2114 = vmatprep.subr.mxu0 0.0
        %2115 = vmatpush1.msra.mxu0 0.0
        %2116 = vmatprep.subr.mxu0 0.0
        %2117 = vmatpush1.msra.mxu0 0.0
        %2118 = vmatprep.subr.mxu0 0.0
        %2119 = vmatpush1.msra.mxu0 0.0
        %2120 = vmatprep.subr.mxu0 0.0
        %2121 = vmatpush1.msra.mxu0 0.0
        %2122 = vmatprep.subr.mxu0 0.0
        %2123 = vmatpush1.msra.mxu0 0.0
        %2124 = vmatprep.subr.mxu0 0.0
        %2125 = vmatpush1.msra.mxu0 0.0
        %2126 = vmatprep.subr.mxu0 0.0
        %2127 = vmatpush1.msra.mxu0 0.0
        %2128 = vmatprep.subr.mxu0 0.0
        %2129 = vmatpush1.msra.mxu0 0.0
        %2130 = vmatprep.subr.mxu0 0.0
        %2131 = vmatpush1.msra.mxu0 0.0
        %2132 = vmatprep.subr.mxu0 0.0
        %2133 = vmatpush1.msra.mxu0 0.0
        %2134 = vmatprep.subr.mxu0 0.0
        %2135 = vmatpush1.msra.mxu0 0.0
        %2136 = vmatprep.subr.mxu0 0.0
        %2137 = vmatpush1.msra.mxu0 0.0
        %2138 = vmatprep.subr.mxu0 0.0
        %2139 = vmatpush1.msra.mxu0 0.0
        %2140 = vmatprep.subr.mxu0 0.0
        %2141 = vmatpush1.msra.mxu0 0.0
        %2142 = vmatprep.subr.mxu0 0.0
        %2143 = vmatpush1.msra.mxu0 0.0
        %2144 = vmatprep.subr.mxu0 0.0
        %2145 = vmatpush1.msra.mxu0 0.0
        %2146 = vmatprep.subr.mxu0 0.0
        %2147 = vmatpush1.msra.mxu0 0.0
        %2148 = vmatprep.subr.mxu0 0.0
        %2149 = vmatpush1.msra.mxu0 0.0
        %2150 = vmatprep.subr.mxu0 0.0
        %2151 = vmatpush1.msra.mxu0 0.0
        %2152 = vmatprep.subr.mxu0 0.0
        %2153 = vmatpush1.msra.mxu0 0.0
        %2154 = vmatprep.subr.mxu0 0.0
        %2155 = vmatpush1.msra.mxu0 0.0
        %2156 = vmatprep.subr.mxu0 0.0
        %2157 = vmatpush1.msra.mxu0 0.0
        %2158 = vmatprep.subr.mxu0 0.0
        %2159 = vmatpush1.msra.mxu0 0.0
        %2160 = vmatprep.subr.mxu0 0.0
        %2161 = vmatpush1.msra.mxu0 0.0
        %2162 = vmatprep.mubr.f32.mxu0 0.0
        %2163 = vmatmul.mubr.f32.gmra.mrb[0].mxu0 %v2096
        %v2164 = vpop.f32.mrb[0].mxu0
        %v2165 = vadd.f32 0.0, %v2164
        %v2166 = vpop.f32.mrb[0].mxu0
        %2167 = vdwg.mxu0
        %v2168 = vld [vmem:[%s8] sm:$0xff]
        %v2169 = vld [vmem:[%s8 + $0x8] sm:$0xff]
        %v2170 = vld [vmem:[%s8 + $0x10] sm:$0xff]
        %v2171 = vld [vmem:[%s8 + $0x18] sm:$0xff]
        %v2173 = vsel %vm848, %v1946, 0
        %2175 = vmatprep.subr.mxu0 0.0
        %2176 = vmatpush1.msra.mxu0 %v2168
        %2177 = vmatprep.subr.mxu0 0.0
        %2178 = vmatpush1.msra.mxu0 0.0
        %2179 = vmatprep.subr.mxu0 0.0
        %2180 = vmatpush1.msra.mxu0 0.0
        %2181 = vmatprep.subr.mxu0 0.0
        %2182 = vmatpush1.msra.mxu0 0.0
        %2183 = vmatprep.subr.mxu0 0.0
        %2184 = vmatpush1.msra.mxu0 0.0
        %2185 = vmatprep.subr.mxu0 0.0
        %2186 = vmatpush1.msra.mxu0 0.0
        %2187 = vmatprep.subr.mxu0 0.0
        %2188 = vmatpush1.msra.mxu0 0.0
        %2189 = vmatprep.subr.mxu0 0.0
        %2190 = vmatpush1.msra.mxu0 0.0
        %2191 = vmatprep.subr.mxu0 0.0
        %2192 = vmatpush1.msra.mxu0 0.0
        %2193 = vmatprep.subr.mxu0 0.0
        %2194 = vmatpush1.msra.mxu0 0.0
        %2195 = vmatprep.subr.mxu0 0.0
        %2196 = vmatpush1.msra.mxu0 0.0
        %2197 = vmatprep.subr.mxu0 0.0
        %2198 = vmatpush1.msra.mxu0 0.0
        %2199 = vmatprep.subr.mxu0 0.0
        %2200 = vmatpush1.msra.mxu0 0.0
        %2201 = vmatprep.subr.mxu0 0.0
        %2202 = vmatpush1.msra.mxu0 0.0
        %2203 = vmatprep.subr.mxu0 0.0
        %2204 = vmatpush1.msra.mxu0 0.0
        %2205 = vmatprep.subr.mxu0 0.0
        %2206 = vmatpush1.msra.mxu0 0.0
        %2207 = vmatprep.subr.mxu0 0.0
        %2208 = vmatpush1.msra.mxu0 0.0
        %2209 = vmatprep.subr.mxu0 0.0
        %2210 = vmatpush1.msra.mxu0 0.0
        %2211 = vmatprep.subr.mxu0 0.0
        %2212 = vmatpush1.msra.mxu0 0.0
        %2213 = vmatprep.subr.mxu0 0.0
        %2214 = vmatpush1.msra.mxu0 0.0
        %2215 = vmatprep.subr.mxu0 0.0
        %2216 = vmatpush1.msra.mxu0 0.0
        %2217 = vmatprep.subr.mxu0 0.0
        %2218 = vmatpush1.msra.mxu0 0.0
        %2219 = vmatprep.subr.mxu0 0.0
        %2220 = vmatpush1.msra.mxu0 0.0
        %2221 = vmatprep.subr.mxu0 0.0
        %2222 = vmatpush1.msra.mxu0 0.0
        %2223 = vmatprep.subr.mxu0 0.0
        %2224 = vmatpush1.msra.mxu0 0.0
        %2225 = vmatprep.subr.mxu0 0.0
        %2226 = vmatpush1.msra.mxu0 0.0
        %2227 = vmatprep.subr.mxu0 0.0
        %2228 = vmatpush1.msra.mxu0 0.0
        %2229 = vmatprep.subr.mxu0 0.0
        %2230 = vmatpush1.msra.mxu0 0.0
        %2231 = vmatprep.subr.mxu0 0.0
        %2232 = vmatpush1.msra.mxu0 0.0
        %2233 = vmatprep.subr.mxu0 0.0
        %2234 = vmatpush1.msra.mxu0 0.0
        %2235 = vmatprep.subr.mxu0 0.0
        %2236 = vmatpush1.msra.mxu0 0.0
        %2237 = vmatprep.subr.mxu0 0.0
        %2238 = vmatpush1.msra.mxu0 0.0
        %2239 = vmatprep.mubr.f32.mxu0 0.0
        %2240 = vmatmul.mubr.f32.gmra.mrb[0].mxu0 %v2173
        %v2241 = vpop.f32.mrb[0].mxu0
        %v2242 = vadd.f32 0.0, %v2241
        %v2243 = vpop.f32.mrb[0].mxu0
        %2244 = vdwg.mxu0
        %v2246 = vsel %vm848, %v2019, 0
        %2248 = vmatprep.subr.mxu0 0.0
        %2249 = vmatpush1.msra.mxu0 %v2169
        %2250 = vmatprep.subr.mxu0 0.0
        %2251 = vmatpush1.msra.mxu0 0.0
        %2252 = vmatprep.subr.mxu0 0.0
        %2253 = vmatpush1.msra.mxu0 0.0
        %2254 = vmatprep.subr.mxu0 0.0
        %2255 = vmatpush1.msra.mxu0 0.0
        %2256 = vmatprep.subr.mxu0 0.0
        %2257 = vmatpush1.msra.mxu0 0.0
        %2258 = vmatprep.subr.mxu0 0.0
        %2259 = vmatpush1.msra.mxu0 0.0
        %2260 = vmatprep.subr.mxu0 0.0
        %2261 = vmatpush1.msra.mxu0 0.0
        %2262 = vmatprep.subr.mxu0 0.0
        %2263 = vmatpush1.msra.mxu0 0.0
        %2264 = vmatprep.subr.mxu0 0.0
        %2265 = vmatpush1.msra.mxu0 0.0
        %2266 = vmatprep.subr.mxu0 0.0
        %2267 = vmatpush1.msra.mxu0 0.0
        %2268 = vmatprep.subr.mxu0 0.0
        %2269 = vmatpush1.msra.mxu0 0.0
        %2270 = vmatprep.subr.mxu0 0.0
        %2271 = vmatpush1.msra.mxu0 0.0
        %2272 = vmatprep.subr.mxu0 0.0
        %2273 = vmatpush1.msra.mxu0 0.0
        %2274 = vmatprep.subr.mxu0 0.0
        %2275 = vmatpush1.msra.mxu0 0.0
        %2276 = vmatprep.subr.mxu0 0.0
        %2277 = vmatpush1.msra.mxu0 0.0
        %2278 = vmatprep.subr.mxu0 0.0
        %2279 = vmatpush1.msra.mxu0 0.0
        %2280 = vmatprep.subr.mxu0 0.0
        %2281 = vmatpush1.msra.mxu0 0.0
        %2282 = vmatprep.subr.mxu0 0.0
        %2283 = vmatpush1.msra.mxu0 0.0
        %2284 = vmatprep.subr.mxu0 0.0
        %2285 = vmatpush1.msra.mxu0 0.0
        %2286 = vmatprep.subr.mxu0 0.0
        %2287 = vmatpush1.msra.mxu0 0.0
        %2288 = vmatprep.subr.mxu0 0.0
        %2289 = vmatpush1.msra.mxu0 0.0
        %2290 = vmatprep.subr.mxu0 0.0
        %2291 = vmatpush1.msra.mxu0 0.0
        %2292 = vmatprep.subr.mxu0 0.0
        %2293 = vmatpush1.msra.mxu0 0.0
        %2294 = vmatprep.subr.mxu0 0.0
        %2295 = vmatpush1.msra.mxu0 0.0
        %2296 = vmatprep.subr.mxu0 0.0
        %2297 = vmatpush1.msra.mxu0 0.0
        %2298 = vmatprep.subr.mxu0 0.0
        %2299 = vmatpush1.msra.mxu0 0.0
        %2300 = vmatprep.subr.mxu0 0.0
        %2301 = vmatpush1.msra.mxu0 0.0
        %2302 = vmatprep.subr.mxu0 0.0
        %2303 = vmatpush1.msra.mxu0 0.0
        %2304 = vmatprep.subr.mxu0 0.0
        %2305 = vmatpush1.msra.mxu0 0.0
        %2306 = vmatprep.subr.mxu0 0.0
        %2307 = vmatpush1.msra.mxu0 0.0
        %2308 = vmatprep.subr.mxu0 0.0
        %2309 = vmatpush1.msra.mxu0 0.0
        %2310 = vmatprep.subr.mxu0 0.0
        %2311 = vmatpush1.msra.mxu0 0.0
        %2312 = vmatprep.mubr.f32.mxu0 0.0
        %2313 = vmatmul.mubr.f32.gmra.mrb[0].mxu0 %v2246
        %v2314 = vpop.f32.mrb[0].mxu0
        %v2315 = vadd.f32 0.0, %v2314
        %v2316 = vpop.f32.mrb[0].mxu0
        %2317 = vdwg.mxu0
        %v2319 = vsel %vm848, %v2092, 0
        %2321 = vmatprep.subr.mxu0 0.0
        %2322 = vmatpush1.msra.mxu0 %v2170
        %2323 = vmatprep.subr.mxu0 0.0
        %2324 = vmatpush1.msra.mxu0 0.0
        %2325 = vmatprep.subr.mxu0 0.0
        %2326 = vmatpush1.msra.mxu0 0.0
        %2327 = vmatprep.subr.mxu0 0.0
        %2328 = vmatpush1.msra.mxu0 0.0
        %2329 = vmatprep.subr.mxu0 0.0
        %2330 = vmatpush1.msra.mxu0 0.0
        %2331 = vmatprep.subr.mxu0 0.0
        %2332 = vmatpush1.msra.mxu0 0.0
        %2333 = vmatprep.subr.mxu0 0.0
        %2334 = vmatpush1.msra.mxu0 0.0
        %2335 = vmatprep.subr.mxu0 0.0
        %2336 = vmatpush1.msra.mxu0 0.0
        %2337 = vmatprep.subr.mxu0 0.0
        %2338 = vmatpush1.msra.mxu0 0.0
        %2339 = vmatprep.subr.mxu0 0.0
        %2340 = vmatpush1.msra.mxu0 0.0
        %2341 = vmatprep.subr.mxu0 0.0
        %2342 = vmatpush1.msra.mxu0 0.0
        %2343 = vmatprep.subr.mxu0 0.0
        %2344 = vmatpush1.msra.mxu0 0.0
        %2345 = vmatprep.subr.mxu0 0.0
        %2346 = vmatpush1.msra.mxu0 0.0
        %2347 = vmatprep.subr.mxu0 0.0
        %2348 = vmatpush1.msra.mxu0 0.0
        %2349 = vmatprep.subr.mxu0 0.0
        %2350 = vmatpush1.msra.mxu0 0.0
        %2351 = vmatprep.subr.mxu0 0.0
        %2352 = vmatpush1.msra.mxu0 0.0
        %2353 = vmatprep.subr.mxu0 0.0
        %2354 = vmatpush1.msra.mxu0 0.0
        %2355 = vmatprep.subr.mxu0 0.0
        %2356 = vmatpush1.msra.mxu0 0.0
        %2357 = vmatprep.subr.mxu0 0.0
        %2358 = vmatpush1.msra.mxu0 0.0
        %2359 = vmatprep.subr.mxu0 0.0
        %2360 = vmatpush1.msra.mxu0 0.0
        %2361 = vmatprep.subr.mxu0 0.0
        %2362 = vmatpush1.msra.mxu0 0.0
        %2363 = vmatprep.subr.mxu0 0.0
        %2364 = vmatpush1.msra.mxu0 0.0
        %2365 = vmatprep.subr.mxu0 0.0
        %2366 = vmatpush1.msra.mxu0 0.0
        %2367 = vmatprep.subr.mxu0 0.0
        %2368 = vmatpush1.msra.mxu0 0.0
        %2369 = vmatprep.subr.mxu0 0.0
        %2370 = vmatpush1.msra.mxu0 0.0
        %2371 = vmatprep.subr.mxu0 0.0
        %2372 = vmatpush1.msra.mxu0 0.0
        %2373 = vmatprep.subr.mxu0 0.0
        %2374 = vmatpush1.msra.mxu0 0.0
        %2375 = vmatprep.subr.mxu0 0.0
        %2376 = vmatpush1.msra.mxu0 0.0
        %2377 = vmatprep.subr.mxu0 0.0
        %2378 = vmatpush1.msra.mxu0 0.0
        %2379 = vmatprep.subr.mxu0 0.0
        %2380 = vmatpush1.msra.mxu0 0.0
        %2381 = vmatprep.subr.mxu0 0.0
        %2382 = vmatpush1.msra.mxu0 0.0
        %2383 = vmatprep.subr.mxu0 0.0
        %2384 = vmatpush1.msra.mxu0 0.0
        %2385 = vmatprep.mubr.f32.mxu0 0.0
        %2386 = vmatmul.mubr.f32.gmra.mrb[0].mxu0 %v2319
        %v2387 = vpop.f32.mrb[0].mxu0
        %v2388 = vadd.f32 0.0, %v2387
        %v2389 = vpop.f32.mrb[0].mxu0
        %2390 = vdwg.mxu0
        %v2392 = vsel %vm848, %v2165, 0
        %2394 = vmatprep.subr.mxu0 0.0
        %2395 = vmatpush1.msra.mxu0 %v2171
        %2396 = vmatprep.subr.mxu0 0.0
        %2397 = vmatpush1.msra.mxu0 0.0
        %2398 = vmatprep.subr.mxu0 0.0
        %2399 = vmatpush1.msra.mxu0 0.0
        %2400 = vmatprep.subr.mxu0 0.0
        %2401 = vmatpush1.msra.mxu0 0.0
        %2402 = vmatprep.subr.mxu0 0.0
        %2403 = vmatpush1.msra.mxu0 0.0
        %2404 = vmatprep.subr.mxu0 0.0
        %2405 = vmatpush1.msra.mxu0 0.0
        %2406 = vmatprep.subr.mxu0 0.0
        %2407 = vmatpush1.msra.mxu0 0.0
        %2408 = vmatprep.subr.mxu0 0.0
        %2409 = vmatpush1.msra.mxu0 0.0
        %2410 = vmatprep.subr.mxu0 0.0
        %2411 = vmatpush1.msra.mxu0 0.0
        %2412 = vmatprep.subr.mxu0 0.0
        %2413 = vmatpush1.msra.mxu0 0.0
        %2414 = vmatprep.subr.mxu0 0.0
        %2415 = vmatpush1.msra.mxu0 0.0
        %2416 = vmatprep.subr.mxu0 0.0
        %2417 = vmatpush1.msra.mxu0 0.0
        %2418 = vmatprep.subr.mxu0 0.0
        %2419 = vmatpush1.msra.mxu0 0.0
        %2420 = vmatprep.subr.mxu0 0.0
        %2421 = vmatpush1.msra.mxu0 0.0
        %2422 = vmatprep.subr.mxu0 0.0
        %2423 = vmatpush1.msra.mxu0 0.0
        %2424 = vmatprep.subr.mxu0 0.0
        %2425 = vmatpush1.msra.mxu0 0.0
        %2426 = vmatprep.subr.mxu0 0.0
        %2427 = vmatpush1.msra.mxu0 0.0
        %2428 = vmatprep.subr.mxu0 0.0
        %2429 = vmatpush1.msra.mxu0 0.0
        %2430 = vmatprep.subr.mxu0 0.0
        %2431 = vmatpush1.msra.mxu0 0.0
        %2432 = vmatprep.subr.mxu0 0.0
        %2433 = vmatpush1.msra.mxu0 0.0
        %2434 = vmatprep.subr.mxu0 0.0
        %2435 = vmatpush1.msra.mxu0 0.0
        %2436 = vmatprep.subr.mxu0 0.0
        %2437 = vmatpush1.msra.mxu0 0.0
        %2438 = vmatprep.subr.mxu0 0.0
        %2439 = vmatpush1.msra.mxu0 0.0
        %2440 = vmatprep.subr.mxu0 0.0
        %2441 = vmatpush1.msra.mxu0 0.0
        %2442 = vmatprep.subr.mxu0 0.0
        %2443 = vmatpush1.msra.mxu0 0.0
        %2444 = vmatprep.subr.mxu0 0.0
        %2445 = vmatpush1.msra.mxu0 0.0
        %2446 = vmatprep.subr.mxu0 0.0
        %2447 = vmatpush1.msra.mxu0 0.0
        %2448 = vmatprep.subr.mxu0 0.0
        %2449 = vmatpush1.msra.mxu0 0.0
        %2450 = vmatprep.subr.mxu0 0.0
        %2451 = vmatpush1.msra.mxu0 0.0
        %2452 = vmatprep.subr.mxu0 0.0
        %2453 = vmatpush1.msra.mxu0 0.0
        %2454 = vmatprep.subr.mxu0 0.0
        %2455 = vmatpush1.msra.mxu0 0.0
        %2456 = vmatprep.subr.mxu0 0.0
        %2457 = vmatpush1.msra.mxu0 0.0
        %2458 = vmatprep.mubr.f32.mxu0 0.0
        %2459 = vmatmul.mubr.f32.gmra.mrb[0].mxu0 %v2392
        %v2460 = vpop.f32.mrb[0].mxu0
        %v2461 = vadd.f32 0.0, %v2460
        %v2462 = vpop.f32.mrb[0].mxu0
        %2463 = vdwg.mxu0
        %v2464 = vsel %vm496, %v2242, 0.0
        %v2465 = vsel %vm496, %v2315, 0.0
        %v2466 = vadd.f32 %v2464, %v2465
        %v2467 = vsel %vm496, %v2388, 0.0
        %v2468 = vadd.f32 %v2466, %v2467
        %v2469 = vsel %vm496, %v2461, 0.0
        %v2470 = vadd.f32 %v2468, %v2469
        %v2471 = vld [vmem:[%s9] sm:$0x1]
        %v2473 = vlaneseq
        %v2474 = vshrl.u32 %v2473, 7
        %v2475 = vsub.s32 0, %v2474
        %v2476 = vrot.slane %v2471, %v2475
        %v2478 = vadd.f32 %v2470, %v2476
        %v2479 = vadd.f32 %v460, %v2478
        %v2480 = vsel %vm496, %v2479, 0.0
        %2481 = vadd.xlane.f32.xlu0 %v2480
        %v2482 = vpop.xlane.xlu0 %2481
        %v2483 = vrcp.pop 32.0
        %v2484 = vmul.f32 %v2482, %v2483
        %v2485 = vsub.f32 %v2479, %v2484
        %v2486 = vmul.f32 %v2485, %v2485
        %v2487 = vsel %vm496, %v2486, 0.0
        %2488 = vadd.xlane.f32.xlu0 %v2487
        %v2489 = vpop.xlane.xlu0 %2488
        %v2490 = vmul.f32 %v2489, %v2483
        %v2491 = vadd.f32 %v2490, 1e-05
        %v2492 = vrsqrt.pop %v2491
        %v2493 = vmul.f32 %v2485, %v2492
        %v2494 = vld [vmem:[%s10] sm:$0x1]
        %v2496 = vlaneseq
        %v2497 = vshrl.u32 %v2496, 7
        %v2498 = vsub.s32 0, %v2497
        %v2499 = vrot.slane %v2494, %v2498
        %v2501 = vmul.f32 %v2493, %v2499
        %v2502 = vld [vmem:[%s11] sm:$0x1]
        %v2504 = vlaneseq
        %v2505 = vshrl.u32 %v2504, 7
        %v2506 = vsub.s32 0, %v2505
        %v2507 = vrot.slane %v2502, %v2506
        %v2509 = vadd.f32 %v2501, %v2507
        %s2510 = scalar_lea.vmem %s2, 128
        %v2511 = vld [vmem:[%s2510] sm:$0xff]
        %v2512 = vld [vmem:[%s2510 + $0x8] sm:$0xff]
        %v2513 = vld [vmem:[%s2510 + $0x10] sm:$0xff]
        %v2514 = vld [vmem:[%s2510 + $0x18] sm:$0xff]
        %v2515 = vld [vmem:[%s2510 + $0x20] sm:$0xff]
        %v2516 = vld [vmem:[%s2510 + $0x28] sm:$0xff]
        %v2517 = vld [vmem:[%s2510 + $0x30] sm:$0xff]
        %v2518 = vld [vmem:[%s2510 + $0x38] sm:$0xff]
        %v2519 = vld [vmem:[%s2510 + $0x40] sm:$0xff]
        %v2520 = vld [vmem:[%s2510 + $0x48] sm:$0xff]
        %v2521 = vld [vmem:[%s2510 + $0x50] sm:$0xff]
        %v2522 = vld [vmem:[%s2510 + $0x58] sm:$0xff]
        %v2523 = vld [vmem:[%s2510 + $0x60] sm:$0xff]
        %v2524 = vld [vmem:[%s2510 + $0x68] sm:$0xff]
        %v2525 = vld [vmem:[%s2510 + $0x70] sm:$0xff]
        %v2526 = vld [vmem:[%s2510 + $0x78] sm:$0xff]
        %v2528 = vsel %vm496, %v2509, 0
        %2530 = vmatprep.subr.mxu0 0.0
        %2531 = vmatpush1.msra.mxu0 %v2511
        %2532 = vmatprep.subr.mxu0 0.0
        %2533 = vmatpush1.msra.mxu0 %v2512
        %2534 = vmatprep.subr.mxu0 0.0
        %2535 = vmatpush1.msra.mxu0 %v2513
        %2536 = vmatprep.subr.mxu0 0.0
        %2537 = vmatpush1.msra.mxu0 %v2514
        %2538 = vmatprep.subr.mxu0 0.0
        %2539 = vmatpush1.msra.mxu0 0.0
        %2540 = vmatprep.subr.mxu0 0.0
        %2541 = vmatpush1.msra.mxu0 0.0
        %2542 = vmatprep.subr.mxu0 0.0
        %2543 = vmatpush1.msra.mxu0 0.0
        %2544 = vmatprep.subr.mxu0 0.0
        %2545 = vmatpush1.msra.mxu0 0.0
        %2546 = vmatprep.subr.mxu0 0.0
        %2547 = vmatpush1.msra.mxu0 0.0
        %2548 = vmatprep.subr.mxu0 0.0
        %2549 = vmatpush1.msra.mxu0 0.0
        %2550 = vmatprep.subr.mxu0 0.0
        %2551 = vmatpush1.msra.mxu0 0.0
        %2552 = vmatprep.subr.mxu0 0.0
        %2553 = vmatpush1.msra.mxu0 0.0
        %2554 = vmatprep.subr.mxu0 0.0
        %2555 = vmatpush1.msra.mxu0 0.0
        %2556 = vmatprep.subr.mxu0 0.0
        %2557 = vmatpush1.msra.mxu0 0.0
        %2558 = vmatprep.subr.mxu0 0.0
        %2559 = vmatpush1.msra.mxu0 0.0
        %2560 = vmatprep.subr.mxu0 0.0
        %2561 = vmatpush1.msra.mxu0 0.0
        %2562 = vmatprep.subr.mxu0 0.0
        %2563 = vmatpush1.msra.mxu0 0.0
        %2564 = vmatprep.subr.mxu0 0.0
        %2565 = vmatpush1.msra.mxu0 0.0
        %2566 = vmatprep.subr.mxu0 0.0
        %2567 = vmatpush1.msra.mxu0 0.0
        %2568 = vmatprep.subr.mxu0 0.0
        %2569 = vmatpush1.msra.mxu0 0.0
        %2570 = vmatprep.subr.mxu0 0.0
        %2571 = vmatpush1.msra.mxu0 0.0
        %2572 = vmatprep.subr.mxu0 0.0
        %2573 = vmatpush1.msra.mxu0 0.0
        %2574 = vmatprep.subr.mxu0 0.0
        %2575 = vmatpush1.msra.mxu0 0.0
        %2576 = vmatprep.subr.mxu0 0.0
        %2577 = vmatpush1.msra.mxu0 0.0
        %2578 = vmatprep.subr.mxu0 0.0
        %2579 = vmatpush1.msra.mxu0 0.0
        %2580 = vmatprep.subr.mxu0 0.0
        %2581 = vmatpush1.msra.mxu0 0.0
        %2582 = vmatprep.subr.mxu0 0.0
        %2583 = vmatpush1.msra.mxu0 0.0
        %2584 = vmatprep.subr.mxu0 0.0
        %2585 = vmatpush1.msra.mxu0 0.0
        %2586 = vmatprep.subr.mxu0 0.0
        %2587 = vmatpush1.msra.mxu0 0.0
        %2588 = vmatprep.subr.mxu0 0.0
        %2589 = vmatpush1.msra.mxu0 0.0
        %2590 = vmatprep.subr.mxu0 0.0
        %2591 = vmatpush1.msra.mxu0 0.0
        %2592 = vmatprep.subr.mxu0 0.0
        %2593 = vmatpush1.msra.mxu0 0.0
        %2594 = vmatprep.mubr.f32.mxu0 0.0
        %2595 = vmatmul.mubr.f32.gmra.mrb[0].mxu0 %v2528
        %v2596 = vpop.f32.mrb[0].mxu0
        %v2597 = vadd.f32 0.0, %v2596
        %v2598 = vpop.f32.mrb[0].mxu0
        %2599 = vdwg.mxu0
        %2600 = vmatprep.subr.mxu0 0.0
        %2601 = vmatpush1.msra.mxu0 %v2515
        %2602 = vmatprep.subr.mxu0 0.0
        %2603 = vmatpush1.msra.mxu0 %v2516
        %2604 = vmatprep.subr.mxu0 0.0
        %2605 = vmatpush1.msra.mxu0 %v2517
        %2606 = vmatprep.subr.mxu0 0.0
        %2607 = vmatpush1.msra.mxu0 %v2518
        %2608 = vmatprep.subr.mxu0 0.0
        %2609 = vmatpush1.msra.mxu0 0.0
        %2610 = vmatprep.subr.mxu0 0.0
        %2611 = vmatpush1.msra.mxu0 0.0
        %2612 = vmatprep.subr.mxu0 0.0
        %2613 = vmatpush1.msra.mxu0 0.0
        %2614 = vmatprep.subr.mxu0 0.0
        %2615 = vmatpush1.msra.mxu0 0.0
        %2616 = vmatprep.subr.mxu0 0.0
        %2617 = vmatpush1.msra.mxu0 0.0
        %2618 = vmatprep.subr.mxu0 0.0
        %2619 = vmatpush1.msra.mxu0 0.0
        %2620 = vmatprep.subr.mxu0 0.0
        %2621 = vmatpush1.msra.mxu0 0.0
        %2622 = vmatprep.subr.mxu0 0.0
        %2623 = vmatpush1.msra.mxu0 0.0
        %2624 = vmatprep.subr.mxu0 0.0
        %2625 = vmatpush1.msra.mxu0 0.0
        %2626 = vmatprep.subr.mxu0 0.0
        %2627 = vmatpush1.msra.mxu0 0.0
        %2628 = vmatprep.subr.mxu0 0.0
        %2629 = vmatpush1.msra.mxu0 0.0
        %2630 = vmatprep.subr.mxu0 0.0
        %2631 = vmatpush1.msra.mxu0 0.0
        %2632 = vmatprep.subr.mxu0 0.0
        %2633 = vmatpush1.msra.mxu0 0.0
        %2634 = vmatprep.subr.mxu0 0.0
        %2635 = vmatpush1.msra.mxu0 0.0
        %2636 = vmatprep.subr.mxu0 0.0
        %2637 = vmatpush1.msra.mxu0 0.0
        %2638 = vmatprep.subr.mxu0 0.0
        %2639 = vmatpush1.msra.mxu0 0.0
        %2640 = vmatprep.subr.mxu0 0.0
        %2641 = vmatpush1.msra.mxu0 0.0
        %2642 = vmatprep.subr.mxu0 0.0
        %2643 = vmatpush1.msra.mxu0 0.0
        %2644 = vmatprep.subr.mxu0 0.0
        %2645 = vmatpush1.msra.mxu0 0.0
        %2646 = vmatprep.subr.mxu0 0.0
        %2647 = vmatpush1.msra.mxu0 0.0
        %2648 = vmatprep.subr.mxu0 0.0
        %2649 = vmatpush1.msra.mxu0 0.0
        %2650 = vmatprep.subr.mxu0 0.0
        %2651 = vmatpush1.msra.mxu0 0.0
        %2652 = vmatprep.subr.mxu0 0.0
        %2653 = vmatpush1.msra.mxu0 0.0
        %2654 = vmatprep.subr.mxu0 0.0
        %2655 = vmatpush1.msra.mxu0 0.0
        %2656 = vmatprep.subr.mxu0 0.0
        %2657 = vmatpush1.msra.mxu0 0.0
        %2658 = vmatprep.subr.mxu0 0.0
        %2659 = vmatpush1.msra.mxu0 0.0
        %2660 = vmatprep.subr.mxu0 0.0
        %2661 = vmatpush1.msra.mxu0 0.0
        %2662 = vmatprep.subr.mxu0 0.0
        %2663 = vmatpush1.msra.mxu0 0.0
        %2664 = vmatprep.mubr.f32.mxu0 0.0
        %2665 = vmatmul.mubr.f32.gmra.mrb[0].mxu0 %v2528
        %v2666 = vpop.f32.mrb[0].mxu0
        %v2667 = vadd.f32 0.0, %v2666
        %v2668 = vpop.f32.mrb[0].mxu0
        %2669 = vdwg.mxu0
        %2670 = vmatprep.subr.mxu0 0.0
        %2671 = vmatpush1.msra.mxu0 %v2519
        %2672 = vmatprep.subr.mxu0 0.0
        %2673 = vmatpush1.msra.mxu0 %v2520
        %2674 = vmatprep.subr.mxu0 0.0
        %2675 = vmatpush1.msra.mxu0 %v2521
        %2676 = vmatprep.subr.mxu0 0.0
        %2677 = vmatpush1.msra.mxu0 %v2522
        %2678 = vmatprep.subr.mxu0 0.0
        %2679 = vmatpush1.msra.mxu0 0.0
        %2680 = vmatprep.subr.mxu0 0.0
        %2681 = vmatpush1.msra.mxu0 0.0
        %2682 = vmatprep.subr.mxu0 0.0
        %2683 = vmatpush1.msra.mxu0 0.0
        %2684 = vmatprep.subr.mxu0 0.0
        %2685 = vmatpush1.msra.mxu0 0.0
        %2686 = vmatprep.subr.mxu0 0.0
        %2687 = vmatpush1.msra.mxu0 0.0
        %2688 = vmatprep.subr.mxu0 0.0
        %2689 = vmatpush1.msra.mxu0 0.0
        %2690 = vmatprep.subr.mxu0 0.0
        %2691 = vmatpush1.msra.mxu0 0.0
        %2692 = vmatprep.subr.mxu0 0.0
        %2693 = vmatpush1.msra.mxu0 0.0
        %2694 = vmatprep.subr.mxu0 0.0
        %2695 = vmatpush1.msra.mxu0 0.0
        %2696 = vmatprep.subr.mxu0 0.0
        %2697 = vmatpush1.msra.mxu0 0.0
        %2698 = vmatprep.subr.mxu0 0.0
        %2699 = vmatpush1.msra.mxu0 0.0
        %2700 = vmatprep.subr.mxu0 0.0
        %2701 = vmatpush1.msra.mxu0 0.0
        %2702 = vmatprep.subr.mxu0 0.0
        %2703 = vmatpush1.msra.mxu0 0.0
        %2704 = vmatprep.subr.mxu0 0.0
        %2705 = vmatpush1.msra.mxu0 0.0
        %2706 = vmatprep.subr.mxu0 0.0
        %2707 = vmatpush1.msra.mxu0 0.0
        %2708 = vmatprep.subr.mxu0 0.0
        %2709 = vmatpush1.msra.mxu0 0.0
        %2710 = vmatprep.subr.mxu0 0.0
        %2711 = vmatpush1.msra.mxu0 0.0
        %2712 = vmatprep.subr.mxu0 0.0
        %2713 = vmatpush1.msra.mxu0 0.0
        %2714 = vmatprep.subr.mxu0 0.0
        %2715 = vmatpush1.msra.mxu0 0.0
        %2716 = vmatprep.subr.mxu0 0.0
        %2717 = vmatpush1.msra.mxu0 0.0
        %2718 = vmatprep.subr.mxu0 0.0
        %2719 = vmatpush1.msra.mxu0 0.0
        %2720 = vmatprep.subr.mxu0 0.0
        %2721 = vmatpush1.msra.mxu0 0.0
        %2722 = vmatprep.subr.mxu0 0.0
        %2723 = vmatpush1.msra.mxu0 0.0
        %2724 = vmatprep.subr.mxu0 0.0
        %2725 = vmatpush1.msra.mxu0 0.0
        %2726 = vmatprep.subr.mxu0 0.0
        %2727 = vmatpush1.msra.mxu0 0.0
        %2728 = vmatprep.subr.mxu0 0.0
        %2729 = vmatpush1.msra.mxu0 0.0
        %2730 = vmatprep.subr.mxu0 0.0
        %2731 = vmatpush1.msra.mxu0 0.0
        %2732 = vmatprep.subr.mxu0 0.0
        %2733 = vmatpush1.msra.mxu0 0.0
        %2734 = vmatprep.mubr.f32.mxu0 0.0
        %2735 = vmatmul.mubr.f32.gmra.mrb[0].mxu0 %v2528
        %v2736 = vpop.f32.mrb[0].mxu0
        %v2737 = vadd.f32 0.0, %v2736
        %v2738 = vpop.f32.mrb[0].mxu0
        %2739 = vdwg.mxu0
        %2740 = vmatprep.subr.mxu0 0.0
        %2741 = vmatpush1.msra.mxu0 %v2523
        %2742 = vmatprep.subr.mxu0 0.0
        %2743 = vmatpush1.msra.mxu0 %v2524
        %2744 = vmatprep.subr.mxu0 0.0
        %2745 = vmatpush1.msra.mxu0 %v2525
        %2746 = vmatprep.subr.mxu0 0.0
        %2747 = vmatpush1.msra.mxu0 %v2526
        %2748 = vmatprep.subr.mxu0 0.0
        %2749 = vmatpush1.msra.mxu0 0.0
        %2750 = vmatprep.subr.mxu0 0.0
        %2751 = vmatpush1.msra.mxu0 0.0
        %2752 = vmatprep.subr.mxu0 0.0
        %2753 = vmatpush1.msra.mxu0 0.0
        %2754 = vmatprep.subr.mxu0 0.0
        %2755 = vmatpush1.msra.mxu0 0.0
        %2756 = vmatprep.subr.mxu0 0.0
        %2757 = vmatpush1.msra.mxu0 0.0
        %2758 = vmatprep.subr.mxu0 0.0
        %2759 = vmatpush1.msra.mxu0 0.0
        %2760 = vmatprep.subr.mxu0 0.0
        %2761 = vmatpush1.msra.mxu0 0.0
        %2762 = vmatprep.subr.mxu0 0.0
        %2763 = vmatpush1.msra.mxu0 0.0
        %2764 = vmatprep.subr.mxu0 0.0
        %2765 = vmatpush1.msra.mxu0 0.0
        %2766 = vmatprep.subr.mxu0 0.0
        %2767 = vmatpush1.msra.mxu0 0.0
        %2768 = vmatprep.subr.mxu0 0.0
        %2769 = vmatpush1.msra.mxu0 0.0
        %2770 = vmatprep.subr.mxu0 0.0
        %2771 = vmatpush1.msra.mxu0 0.0
        %2772 = vmatprep.subr.mxu0 0.0
        %2773 = vmatpush1.msra.mxu0 0.0
        %2774 = vmatprep.subr.mxu0 0.0
        %2775 = vmatpush1.msra.mxu0 0.0
        %2776 = vmatprep.subr.mxu0 0.0
        %2777 = vmatpush1.msra.mxu0 0.0
        %2778 = vmatprep.subr.mxu0 0.0
        %2779 = vmatpush1.msra.mxu0 0.0
        %2780 = vmatprep.subr.mxu0 0.0
        %2781 = vmatpush1.msra.mxu0 0.0
        %2782 = vmatprep.subr.mxu0 0.0
        %2783 = vmatpush1.msra.mxu0 0.0
        %2784 = vmatprep.subr.mxu0 0.0
        %2785 = vmatpush1.msra.mxu0 0.0
        %2786 = vmatprep.subr.mxu0 0.0
        %2787 = vmatpush1.msra.mxu0 0.0
        %2788 = vmatprep.subr.mxu0 0.0
        %2789 = vmatpush1.msra.mxu0 0.0
        %2790 = vmatprep.subr.mxu0 0.0
        %2791 = vmatpush1.msra.mxu0 0.0
        %2792 = vmatprep.subr.mxu0 0.0
        %2793 = vmatpush1.msra.mxu0 0.0
        %2794 = vmatprep.subr.mxu0 0.0
        %2795 = vmatpush1.msra.mxu0 0.0
        %2796 = vmatprep.subr.mxu0 0.0
        %2797 = vmatpush1.msra.mxu0 0.0
        %2798 = vmatprep.subr.mxu0 0.0
        %2799 = vmatpush1.msra.mxu0 0.0
        %2800 = vmatprep.subr.mxu0 0.0
        %2801 = vmatpush1.msra.mxu0 0.0
        %2802 = vmatprep.subr.mxu0 0.0
        %2803 = vmatpush1.msra.mxu0 0.0
        %2804 = vmatprep.mubr.f32.mxu0 0.0
        %2805 = vmatmul.mubr.f32.gmra.mrb[0].mxu0 %v2528
        %v2806 = vpop.f32.mrb[0].mxu0
        %v2807 = vadd.f32 0.0, %v2806
        %v2808 = vpop.f32.mrb[0].mxu0
        %2809 = vdwg.mxu0
        %s2810 = scalar_lea.vmem %s3, 4
        %v2811 = vld [vmem:[%s2810] sm:$0x1]
        %v2812 = vld [vmem:[%s2810 + $0x1] sm:$0x1]
        %v2813 = vld [vmem:[%s2810 + $0x2] sm:$0x1]
        %v2814 = vld [vmem:[%s2810 + $0x3] sm:$0x1]
        %v2819 = vlaneseq
        %v2820 = vshrl.u32 %v2819, 7
        %v2821 = vsub.s32 0, %v2820
        %v2822 = vrot.slane %v2811, %v2821
        %v2823 = vlaneseq
        %v2824 = vshrl.u32 %v2823, 7
        %v2825 = vsub.s32 0, %v2824
        %v2826 = vrot.slane %v2812, %v2825
        %v2827 = vlaneseq
        %v2828 = vshrl.u32 %v2827, 7
        %v2829 = vsub.s32 0, %v2828
        %v2830 = vrot.slane %v2813, %v2829
        %v2831 = vlaneseq
        %v2832 = vshrl.u32 %v2831, 7
        %v2833 = vsub.s32 0, %v2832
        %v2834 = vrot.slane %v2814, %v2833
        %v2839 = vadd.f32 %v2597, %v2822
        %v2840 = vadd.f32 %v2667, %v2826
        %v2841 = vadd.f32 %v2737, %v2830
        %v2842 = vadd.f32 %v2807, %v2834
        %s2843 = scalar_lea.vmem %s4, 4
        %v2844 = vld [vmem:[%s2843] sm:$0x1]
        %v2845 = vld [vmem:[%s2843 + $0x1] sm:$0x1]
        %v2846 = vld [vmem:[%s2843 + $0x2] sm:$0x1]
        %v2847 = vld [vmem:[%s2843 + $0x3] sm:$0x1]
        %v2852 = vlaneseq
        %v2853 = vshrl.u32 %v2852, 7
        %v2854 = vsub.s32 0, %v2853
        %v2855 = vrot.slane %v2844, %v2854
        %v2856 = vlaneseq
        %v2857 = vshrl.u32 %v2856, 7
        %v2858 = vsub.s32 0, %v2857
        %v2859 = vrot.slane %v2845, %v2858
        %v2860 = vlaneseq
        %v2861 = vshrl.u32 %v2860, 7
        %v2862 = vsub.s32 0, %v2861
        %v2863 = vrot.slane %v2846, %v2862
        %v2864 = vlaneseq
        %v2865 = vshrl.u32 %v2864, 7
        %v2866 = vsub.s32 0, %v2865
        %v2867 = vrot.slane %v2847, %v2866
        %v2872 = vadd.f32 %v2597, %v2855
        %v2873 = vadd.f32 %v2667, %v2859
        %v2874 = vadd.f32 %v2737, %v2863
        %v2875 = vadd.f32 %v2807, %v2867
        %s2876 = scalar_lea.vmem %s5, 32
        %v2877 = vld [vmem:[%s2876] sm:$0xff]
        %v2878 = vld [vmem:[%s2876 + $0x8] sm:$0xff]
        %v2879 = vld [vmem:[%s2876 + $0x10] sm:$0xff]
        %v2880 = vld [vmem:[%s2876 + $0x18] sm:$0xff]
        %v2882 = vsel %vm848, %v2839, 0
        %v2885 = vsel %vm848, %v2877, 0
        %2887 = vmatprep.subr.mxu0 0.0
        %2888 = vmatpush1.xpose.msra.mxu0 %v2885
        %2889 = vmatprep.subr.mxu0 0.0
        %2890 = vmatpush1.xpose.msra.mxu0 0.0
        %2891 = vmatprep.subr.mxu0 0.0
        %2892 = vmatpush1.xpose.msra.mxu0 0.0
        %2893 = vmatprep.subr.mxu0 0.0
        %2894 = vmatpush1.xpose.msra.mxu0 0.0
        %2895 = vmatprep.subr.mxu0 0.0
        %2896 = vmatpush1.xpose.msra.mxu0 0.0
        %2897 = vmatprep.subr.mxu0 0.0
        %2898 = vmatpush1.xpose.msra.mxu0 0.0
        %2899 = vmatprep.subr.mxu0 0.0
        %2900 = vmatpush1.xpose.msra.mxu0 0.0
        %2901 = vmatprep.subr.mxu0 0.0
        %2902 = vmatpush1.xpose.msra.mxu0 0.0
        %2903 = vmatprep.subr.mxu0 0.0
        %2904 = vmatpush1.xpose.msra.mxu0 0.0
        %2905 = vmatprep.subr.mxu0 0.0
        %2906 = vmatpush1.xpose.msra.mxu0 0.0
        %2907 = vmatprep.subr.mxu0 0.0
        %2908 = vmatpush1.xpose.msra.mxu0 0.0
        %2909 = vmatprep.subr.mxu0 0.0
        %2910 = vmatpush1.xpose.msra.mxu0 0.0
        %2911 = vmatprep.subr.mxu0 0.0
        %2912 = vmatpush1.xpose.msra.mxu0 0.0
        %2913 = vmatprep.subr.mxu0 0.0
        %2914 = vmatpush1.xpose.msra.mxu0 0.0
        %2915 = vmatprep.subr.mxu0 0.0
        %2916 = vmatpush1.xpose.msra.mxu0 0.0
        %2917 = vmatprep.subr.mxu0 0.0
        %2918 = vmatpush1.xpose.msra.mxu0 0.0
        %2919 = vmatprep.subr.mxu0 0.0
        %2920 = vmatpush1.xpose.msra.mxu0 0.0
        %2921 = vmatprep.subr.mxu0 0.0
        %2922 = vmatpush1.xpose.msra.mxu0 0.0
        %2923 = vmatprep.subr.mxu0 0.0
        %2924 = vmatpush1.xpose.msra.mxu0 0.0
        %2925 = vmatprep.subr.mxu0 0.0
        %2926 = vmatpush1.xpose.msra.mxu0 0.0
        %2927 = vmatprep.subr.mxu0 0.0
        %2928 = vmatpush1.xpose.msra.mxu0 0.0
        %2929 = vmatprep.subr.mxu0 0.0
        %2930 = vmatpush1.xpose.msra.mxu0 0.0
        %2931 = vmatprep.subr.mxu0 0.0
        %2932 = vmatpush1.xpose.msra.mxu0 0.0
        %2933 = vmatprep.subr.mxu0 0.0
        %2934 = vmatpush1.xpose.msra.mxu0 0.0
        %2935 = vmatprep.subr.mxu0 0.0
        %2936 = vmatpush1.xpose.msra.mxu0 0.0
        %2937 = vmatprep.subr.mxu0 0.0
        %2938 = vmatpush1.xpose.msra.mxu0 0.0
        %2939 = vmatprep.subr.mxu0 0.0
        %2940 = vmatpush1.xpose.msra.mxu0 0.0
        %2941 = vmatprep.subr.mxu0 0.0
        %2942 = vmatpush1.xpose.msra.mxu0 0.0
        %2943 = vmatprep.subr.mxu0 0.0
        %2944 = vmatpush1.xpose.msra.mxu0 0.0
        %2945 = vmatprep.subr.mxu0 0.0
        %2946 = vmatpush1.xpose.msra.mxu0 0.0
        %2947 = vmatprep.subr.mxu0 0.0
        %2948 = vmatpush1.xpose.msra.mxu0 0.0
        %2949 = vmatprep.subr.mxu0 0.0
        %2950 = vmatpush1.xpose.msra.mxu0 0.0
        %2951 = vmatprep.mubr.f32.mxu0 0.0
        %2952 = vmatmul.mubr.f32.gmra.mrb[0].mxu0 %v2882
        %v2953 = vpop.f32.mrb[0].mxu0
        %v2954 = vadd.f32 0.0, %v2953
        %v2955 = vpop.f32.mrb[0].mxu0
        %2956 = vdwg.mxu0
        %v2958 = vsel %vm848, %v2840, 0
        %v2961 = vsel %vm848, %v2878, 0
        %2963 = vmatprep.subr.mxu0 0.0
        %2964 = vmatpush1.xpose.msra.mxu0 %v2961
        %2965 = vmatprep.subr.mxu0 0.0
        %2966 = vmatpush1.xpose.msra.mxu0 0.0
        %2967 = vmatprep.subr.mxu0 0.0
        %2968 = vmatpush1.xpose.msra.mxu0 0.0
        %2969 = vmatprep.subr.mxu0 0.0
        %2970 = vmatpush1.xpose.msra.mxu0 0.0
        %2971 = vmatprep.subr.mxu0 0.0
        %2972 = vmatpush1.xpose.msra.mxu0 0.0
        %2973 = vmatprep.subr.mxu0 0.0
        %2974 = vmatpush1.xpose.msra.mxu0 0.0
        %2975 = vmatprep.subr.mxu0 0.0
        %2976 = vmatpush1.xpose.msra.mxu0 0.0
        %2977 = vmatprep.subr.mxu0 0.0
        %2978 = vmatpush1.xpose.msra.mxu0 0.0
        %2979 = vmatprep.subr.mxu0 0.0
        %2980 = vmatpush1.xpose.msra.mxu0 0.0
        %2981 = vmatprep.subr.mxu0 0.0
        %2982 = vmatpush1.xpose.msra.mxu0 0.0
        %2983 = vmatprep.subr.mxu0 0.0
        %2984 = vmatpush1.xpose.msra.mxu0 0.0
        %2985 = vmatprep.subr.mxu0 0.0
        %2986 = vmatpush1.xpose.msra.mxu0 0.0
        %2987 = vmatprep.subr.mxu0 0.0
        %2988 = vmatpush1.xpose.msra.mxu0 0.0
        %2989 = vmatprep.subr.mxu0 0.0
        %2990 = vmatpush1.xpose.msra.mxu0 0.0
        %2991 = vmatprep.subr.mxu0 0.0
        %2992 = vmatpush1.xpose.msra.mxu0 0.0
        %2993 = vmatprep.subr.mxu0 0.0
        %2994 = vmatpush1.xpose.msra.mxu0 0.0
        %2995 = vmatprep.subr.mxu0 0.0
        %2996 = vmatpush1.xpose.msra.mxu0 0.0
        %2997 = vmatprep.subr.mxu0 0.0
        %2998 = vmatpush1.xpose.msra.mxu0 0.0
        %2999 = vmatprep.subr.mxu0 0.0
        %3000 = vmatpush1.xpose.msra.mxu0 0.0
        %3001 = vmatprep.subr.mxu0 0.0
        %3002 = vmatpush1.xpose.msra.mxu0 0.0
        %3003 = vmatprep.subr.mxu0 0.0
        %3004 = vmatpush1.xpose.msra.mxu0 0.0
        %3005 = vmatprep.subr.mxu0 0.0
        %3006 = vmatpush1.xpose.msra.mxu0 0.0
        %3007 = vmatprep.subr.mxu0 0.0
        %3008 = vmatpush1.xpose.msra.mxu0 0.0
        %3009 = vmatprep.subr.mxu0 0.0
        %3010 = vmatpush1.xpose.msra.mxu0 0.0
        %3011 = vmatprep.subr.mxu0 0.0
        %3012 = vmatpush1.xpose.msra.mxu0 0.0
        %3013 = vmatprep.subr.mxu0 0.0
        %3014 = vmatpush1.xpose.msra.mxu0 0.0
        %3015 = vmatprep.subr.mxu0 0.0
        %3016 = vmatpush1.xpose.msra.mxu0 0.0
        %3017 = vmatprep.subr.mxu0 0.0
        %3018 = vmatpush1.xpose.msra.mxu0 0.0
        %3019 = vmatprep.subr.mxu0 0.0
        %3020 = vmatpush1.xpose.msra.mxu0 0.0
        %3021 = vmatprep.subr.mxu0 0.0
        %3022 = vmatpush1.xpose.msra.mxu0 0.0
        %3023 = vmatprep.subr.mxu0 0.0
        %3024 = vmatpush1.xpose.msra.mxu0 0.0
        %3025 = vmatprep.subr.mxu0 0.0
        %3026 = vmatpush1.xpose.msra.mxu0 0.0
        %3027 = vmatprep.mubr.f32.mxu0 0.0
        %3028 = vmatmul.mubr.f32.gmra.mrb[0].mxu0 %v2958
        %v3029 = vpop.f32.mrb[0].mxu0
        %v3030 = vadd.f32 0.0, %v3029
        %v3031 = vpop.f32.mrb[0].mxu0
        %3032 = vdwg.mxu0
        %v3034 = vsel %vm848, %v2841, 0
        %v3037 = vsel %vm848, %v2879, 0
        %3039 = vmatprep.subr.mxu0 0.0
        %3040 = vmatpush1.xpose.msra.mxu0 %v3037
        %3041 = vmatprep.subr.mxu0 0.0
        %3042 = vmatpush1.xpose.msra.mxu0 0.0
        %3043 = vmatprep.subr.mxu0 0.0
        %3044 = vmatpush1.xpose.msra.mxu0 0.0
        %3045 = vmatprep.subr.mxu0 0.0
        %3046 = vmatpush1.xpose.msra.mxu0 0.0
        %3047 = vmatprep.subr.mxu0 0.0
        %3048 = vmatpush1.xpose.msra.mxu0 0.0
        %3049 = vmatprep.subr.mxu0 0.0
        %3050 = vmatpush1.xpose.msra.mxu0 0.0
        %3051 = vmatprep.subr.mxu0 0.0
        %3052 = vmatpush1.xpose.msra.mxu0 0.0
        %3053 = vmatprep.subr.mxu0 0.0
        %3054 = vmatpush1.xpose.msra.mxu0 0.0
        %3055 = vmatprep.subr.mxu0 0.0
        %3056 = vmatpush1.xpose.msra.mxu0 0.0
        %3057 = vmatprep.subr.mxu0 0.0
        %3058 = vmatpush1.xpose.msra.mxu0 0.0
        %3059 = vmatprep.subr.mxu0 0.0
        %3060 = vmatpush1.xpose.msra.mxu0 0.0
        %3061 = vmatprep.subr.mxu0 0.0
        %3062 = vmatpush1.xpose.msra.mxu0 0.0
        %3063 = vmatprep.subr.mxu0 0.0
        %3064 = vmatpush1.xpose.msra.mxu0 0.0
        %3065 = vmatprep.subr.mxu0 0.0
        %3066 = vmatpush1.xpose.msra.mxu0 0.0
        %3067 = vmatprep.subr.mxu0 0.0
        %3068 = vmatpush1.xpose.msra.mxu0 0.0
        %3069 = vmatprep.subr.mxu0 0.0
        %3070 = vmatpush1.xpose.msra.mxu0 0.0
        %3071 = vmatprep.subr.mxu0 0.0
        %3072 = vmatpush1.xpose.msra.mxu0 0.0
        %3073 = vmatprep.subr.mxu0 0.0
        %3074 = vmatpush1.xpose.msra.mxu0 0.0
        %3075 = vmatprep.subr.mxu0 0.0
        %3076 = vmatpush1.xpose.msra.mxu0 0.0
        %3077 = vmatprep.subr.mxu0 0.0
        %3078 = vmatpush1.xpose.msra.mxu0 0.0
        %3079 = vmatprep.subr.mxu0 0.0
        %3080 = vmatpush1.xpose.msra.mxu0 0.0
        %3081 = vmatprep.subr.mxu0 0.0
        %3082 = vmatpush1.xpose.msra.mxu0 0.0
        %3083 = vmatprep.subr.mxu0 0.0
        %3084 = vmatpush1.xpose.msra.mxu0 0.0
        %3085 = vmatprep.subr.mxu0 0.0
        %3086 = vmatpush1.xpose.msra.mxu0 0.0
        %3087 = vmatprep.subr.mxu0 0.0
        %3088 = vmatpush1.xpose.msra.mxu0 0.0
        %3089 = vmatprep.subr.mxu0 0.0
        %3090 = vmatpush1.xpose.msra.mxu0 0.0
        %3091 = vmatprep.subr.mxu0 0.0
        %3092 = vmatpush1.xpose.msra.mxu0 0.0
        %3093 = vmatprep.subr.mxu0 0.0
        %3094 = vmatpush1.xpose.msra.mxu0 0.0
        %3095 = vmatprep.subr.mxu0 0.0
        %3096 = vmatpush1.xpose.msra.mxu0 0.0
        %3097 = vmatprep.subr.mxu0 0.0
        %3098 = vmatpush1.xpose.msra.mxu0 0.0
        %3099 = vmatprep.subr.mxu0 0.0
        %3100 = vmatpush1.xpose.msra.mxu0 0.0
        %3101 = vmatprep.subr.mxu0 0.0
        %3102 = vmatpush1.xpose.msra.mxu0 0.0
        %3103 = vmatprep.mubr.f32.mxu0 0.0
        %3104 = vmatmul.mubr.f32.gmra.mrb[0].mxu0 %v3034
        %v3105 = vpop.f32.mrb[0].mxu0
        %v3106 = vadd.f32 0.0, %v3105
        %v3107 = vpop.f32.mrb[0].mxu0
        %3108 = vdwg.mxu0
        %v3110 = vsel %vm848, %v2842, 0
        %v3113 = vsel %vm848, %v2880, 0
        %3115 = vmatprep.subr.mxu0 0.0
        %3116 = vmatpush1.xpose.msra.mxu0 %v3113
        %3117 = vmatprep.subr.mxu0 0.0
        %3118 = vmatpush1.xpose.msra.mxu0 0.0
        %3119 = vmatprep.subr.mxu0 0.0
        %3120 = vmatpush1.xpose.msra.mxu0 0.0
        %3121 = vmatprep.subr.mxu0 0.0
        %3122 = vmatpush1.xpose.msra.mxu0 0.0
        %3123 = vmatprep.subr.mxu0 0.0
        %3124 = vmatpush1.xpose.msra.mxu0 0.0
        %3125 = vmatprep.subr.mxu0 0.0
        %3126 = vmatpush1.xpose.msra.mxu0 0.0
        %3127 = vmatprep.subr.mxu0 0.0
        %3128 = vmatpush1.xpose.msra.mxu0 0.0
        %3129 = vmatprep.subr.mxu0 0.0
        %3130 = vmatpush1.xpose.msra.mxu0 0.0
        %3131 = vmatprep.subr.mxu0 0.0
        %3132 = vmatpush1.xpose.msra.mxu0 0.0
        %3133 = vmatprep.subr.mxu0 0.0
        %3134 = vmatpush1.xpose.msra.mxu0 0.0
        %3135 = vmatprep.subr.mxu0 0.0
        %3136 = vmatpush1.xpose.msra.mxu0 0.0
        %3137 = vmatprep.subr.mxu0 0.0
        %3138 = vmatpush1.xpose.msra.mxu0 0.0
        %3139 = vmatprep.subr.mxu0 0.0
        %3140 = vmatpush1.xpose.msra.mxu0 0.0
        %3141 = vmatprep.subr.mxu0 0.0
        %3142 = vmatpush1.xpose.msra.mxu0 0.0
        %3143 = vmatprep.subr.mxu0 0.0
        %3144 = vmatpush1.xpose.msra.mxu0 0.0
        %3145 = vmatprep.subr.mxu0 0.0
        %3146 = vmatpush1.xpose.msra.mxu0 0.0
        %3147 = vmatprep.subr.mxu0 0.0
        %3148 = vmatpush1.xpose.msra.mxu0 0.0
        %3149 = vmatprep.subr.mxu0 0.0
        %3150 = vmatpush1.xpose.msra.mxu0 0.0
        %3151 = vmatprep.subr.mxu0 0.0
        %3152 = vmatpush1.xpose.msra.mxu0 0.0
        %3153 = vmatprep.subr.mxu0 0.0
        %3154 = vmatpush1.xpose.msra.mxu0 0.0
        %3155 = vmatprep.subr.mxu0 0.0
        %3156 = vmatpush1.xpose.msra.mxu0 0.0
        %3157 = vmatprep.subr.mxu0 0.0
        %3158 = vmatpush1.xpose.msra.mxu0 0.0
        %3159 = vmatprep.subr.mxu0 0.0
        %3160 = vmatpush1.xpose.msra.mxu0 0.0
        %3161 = vmatprep.subr.mxu0 0.0
        %3162 = vmatpush1.xpose.msra.mxu0 0.0
        %3163 = vmatprep.subr.mxu0 0.0
        %3164 = vmatpush1.xpose.msra.mxu0 0.0
        %3165 = vmatprep.subr.mxu0 0.0
        %3166 = vmatpush1.xpose.msra.mxu0 0.0
        %3167 = vmatprep.subr.mxu0 0.0
        %3168 = vmatpush1.xpose.msra.mxu0 0.0
        %3169 = vmatprep.subr.mxu0 0.0
        %3170 = vmatpush1.xpose.msra.mxu0 0.0
        %3171 = vmatprep.subr.mxu0 0.0
        %3172 = vmatpush1.xpose.msra.mxu0 0.0
        %3173 = vmatprep.subr.mxu0 0.0
        %3174 = vmatpush1.xpose.msra.mxu0 0.0
        %3175 = vmatprep.subr.mxu0 0.0
        %3176 = vmatpush1.xpose.msra.mxu0 0.0
        %3177 = vmatprep.subr.mxu0 0.0
        %3178 = vmatpush1.xpose.msra.mxu0 0.0
        %3179 = vmatprep.mubr.f32.mxu0 0.0
        %3180 = vmatmul.mubr.f32.gmra.mrb[0].mxu0 %v3110
        %v3181 = vpop.f32.mrb[0].mxu0
        %v3182 = vadd.f32 0.0, %v3181
        %v3183 = vpop.f32.mrb[0].mxu0
        %3184 = vdwg.mxu0
        %s3185 = scalar_lea.vmem %s7, 512
        %v3186 = vld [vmem:[%s3185] sm:$0xff]
        %v3187 = vld [vmem:[%s3185 + $0x8] sm:$0xff]
        %v3188 = vld [vmem:[%s3185 + $0x10] sm:$0xff]
        %v3189 = vld [vmem:[%s3185 + $0x18] sm:$0xff]
        %v3190 = vld [vmem:[%s3185 + $0x20] sm:$0xff]
        %v3191 = vld [vmem:[%s3185 + $0x28] sm:$0xff]
        %v3192 = vld [vmem:[%s3185 + $0x30] sm:$0xff]
        %v3193 = vld [vmem:[%s3185 + $0x38] sm:$0xff]
        %v3194 = vld [vmem:[%s3185 + $0x40] sm:$0xff]
        %v3195 = vld [vmem:[%s3185 + $0x48] sm:$0xff]
        %v3196 = vld [vmem:[%s3185 + $0x50] sm:$0xff]
        %v3197 = vld [vmem:[%s3185 + $0x58] sm:$0xff]
        %v3198 = vld [vmem:[%s3185 + $0x60] sm:$0xff]
        %v3199 = vld [vmem:[%s3185 + $0x68] sm:$0xff]
        %v3200 = vld [vmem:[%s3185 + $0x70] sm:$0xff]
        %v3201 = vld [vmem:[%s3185 + $0x78] sm:$0xff]
        %v3202 = vld [vmem:[%s3185 + $0x80] sm:$0xff]
        %v3203 = vld [vmem:[%s3185 + $0x88] sm:$0xff]
        %v3204 = vld [vmem:[%s3185 + $0x90] sm:$0xff]
        %v3205 = vld [vmem:[%s3185 + $0x98] sm:$0xff]
        %v3206 = vld [vmem:[%s3185 + $0xa0] sm:$0xff]
        %v3207 = vld [vmem:[%s3185 + $0xa8] sm:$0xff]
        %v3208 = vld [vmem:[%s3185 + $0xb0] sm:$0xff]
        %v3209 = vld [vmem:[%s3185 + $0xb8] sm:$0xff]
        %v3210 = vld [vmem:[%s3185 + $0xc0] sm:$0xff]
        %v3211 = vld [vmem:[%s3185 + $0xc8] sm:$0xff]
        %v3212 = vld [vmem:[%s3185 + $0xd0] sm:$0xff]
        %v3213 = vld [vmem:[%s3185 + $0xd8] sm:$0xff]
        %v3214 = vld [vmem:[%s3185 + $0xe0] sm:$0xff]
        %v3215 = vld [vmem:[%s3185 + $0xe8] sm:$0xff]
        %v3216 = vld [vmem:[%s3185 + $0xf0] sm:$0xff]
        %v3217 = vld [vmem:[%s3185 + $0xf8] sm:$0xff]
        %v3218 = vld [vmem:[%s3185 + $0x100] sm:$0xff]
        %v3219 = vld [vmem:[%s3185 + $0x108] sm:$0xff]
        %v3220 = vld [vmem:[%s3185 + $0x110] sm:$0xff]
        %v3221 = vld [vmem:[%s3185 + $0x118] sm:$0xff]
        %v3222 = vld [vmem:[%s3185 + $0x120] sm:$0xff]
        %v3223 = vld [vmem:[%s3185 + $0x128] sm:$0xff]
        %v3224 = vld [vmem:[%s3185 + $0x130] sm:$0xff]
        %v3225 = vld [vmem:[%s3185 + $0x138] sm:$0xff]
        %v3226 = vld [vmem:[%s3185 + $0x140] sm:$0xff]
        %v3227 = vld [vmem:[%s3185 + $0x148] sm:$0xff]
        %v3228 = vld [vmem:[%s3185 + $0x150] sm:$0xff]
        %v3229 = vld [vmem:[%s3185 + $0x158] sm:$0xff]
        %v3230 = vld [vmem:[%s3185 + $0x160] sm:$0xff]
        %v3231 = vld [vmem:[%s3185 + $0x168] sm:$0xff]
        %v3232 = vld [vmem:[%s3185 + $0x170] sm:$0xff]
        %v3233 = vld [vmem:[%s3185 + $0x178] sm:$0xff]
        %v3234 = vld [vmem:[%s3185 + $0x180] sm:$0xff]
        %v3235 = vld [vmem:[%s3185 + $0x188] sm:$0xff]
        %v3236 = vld [vmem:[%s3185 + $0x190] sm:$0xff]
        %v3237 = vld [vmem:[%s3185 + $0x198] sm:$0xff]
        %v3238 = vld [vmem:[%s3185 + $0x1a0] sm:$0xff]
        %v3239 = vld [vmem:[%s3185 + $0x1a8] sm:$0xff]
        %v3240 = vld [vmem:[%s3185 + $0x1b0] sm:$0xff]
        %v3241 = vld [vmem:[%s3185 + $0x1b8] sm:$0xff]
        %v3242 = vld [vmem:[%s3185 + $0x1c0] sm:$0xff]
        %v3243 = vld [vmem:[%s3185 + $0x1c8] sm:$0xff]
        %v3244 = vld [vmem:[%s3185 + $0x1d0] sm:$0xff]
        %v3245 = vld [vmem:[%s3185 + $0x1d8] sm:$0xff]
        %v3246 = vld [vmem:[%s3185 + $0x1e0] sm:$0xff]
        %v3247 = vld [vmem:[%s3185 + $0x1e8] sm:$0xff]
        %v3248 = vld [vmem:[%s3185 + $0x1f0] sm:$0xff]
        %v3249 = vld [vmem:[%s3185 + $0x1f8] sm:$0xff]
        %v3251 = vsel %vm848, %v2872, 0
        %v3254 = vsel %vm848, %v3186, 0
        %v3257 = vsel %vm848, %v3187, 0
        %v3260 = vsel %vm848, %v3188, 0
        %v3263 = vsel %vm848, %v3189, 0
        %v3266 = vsel %vm848, %v3190, 0
        %v3269 = vsel %vm848, %v3191, 0
        %v3272 = vsel %vm848, %v3192, 0
        %v3275 = vsel %vm848, %v3193, 0
        %v3278 = vsel %vm848, %v3194, 0
        %v3281 = vsel %vm848, %v3195, 0
        %v3284 = vsel %vm848, %v3196, 0
        %v3287 = vsel %vm848, %v3197, 0
        %v3290 = vsel %vm848, %v3198, 0
        %v3293 = vsel %vm848, %v3199, 0
        %v3296 = vsel %vm848, %v3200, 0
        %v3299 = vsel %vm848, %v3201, 0
        %3301 = vmatprep.subr.mxu0 0.0
        %3302 = vmatpush1.xpose.msra.mxu0 %v3254
        %3303 = vmatprep.subr.mxu0 0.0
        %3304 = vmatpush1.xpose.msra.mxu0 %v3257
        %3305 = vmatprep.subr.mxu0 0.0
        %3306 = vmatpush1.xpose.msra.mxu0 %v3260
        %3307 = vmatprep.subr.mxu0 0.0
        %3308 = vmatpush1.xpose.msra.mxu0 %v3263
        %3309 = vmatprep.subr.mxu0 0.0
        %3310 = vmatpush1.xpose.msra.mxu0 %v3266
        %3311 = vmatprep.subr.mxu0 0.0
        %3312 = vmatpush1.xpose.msra.mxu0 %v3269
        %3313 = vmatprep.subr.mxu0 0.0
        %3314 = vmatpush1.xpose.msra.mxu0 %v3272
        %3315 = vmatprep.subr.mxu0 0.0
        %3316 = vmatpush1.xpose.msra.mxu0 %v3275
        %3317 = vmatprep.subr.mxu0 0.0
        %3318 = vmatpush1.xpose.msra.mxu0 %v3278
        %3319 = vmatprep.subr.mxu0 0.0
        %3320 = vmatpush1.xpose.msra.mxu0 %v3281
        %3321 = vmatprep.subr.mxu0 0.0
        %3322 = vmatpush1.xpose.msra.mxu0 %v3284
        %3323 = vmatprep.subr.mxu0 0.0
        %3324 = vmatpush1.xpose.msra.mxu0 %v3287
        %3325 = vmatprep.subr.mxu0 0.0
        %3326 = vmatpush1.xpose.msra.mxu0 %v3290
        %3327 = vmatprep.subr.mxu0 0.0
        %3328 = vmatpush1.xpose.msra.mxu0 %v3293
        %3329 = vmatprep.subr.mxu0 0.0
        %3330 = vmatpush1.xpose.msra.mxu0 %v3296
        %3331 = vmatprep.subr.mxu0 0.0
        %3332 = vmatpush1.xpose.msra.mxu0 %v3299
        %3333 = vmatprep.subr.mxu0 0.0
        %3334 = vmatpush1.xpose.msra.mxu0 0.0
        %3335 = vmatprep.subr.mxu0 0.0
        %3336 = vmatpush1.xpose.msra.mxu0 0.0
        %3337 = vmatprep.subr.mxu0 0.0
        %3338 = vmatpush1.xpose.msra.mxu0 0.0
        %3339 = vmatprep.subr.mxu0 0.0
        %3340 = vmatpush1.xpose.msra.mxu0 0.0
        %3341 = vmatprep.subr.mxu0 0.0
        %3342 = vmatpush1.xpose.msra.mxu0 0.0
        %3343 = vmatprep.subr.mxu0 0.0
        %3344 = vmatpush1.xpose.msra.mxu0 0.0
        %3345 = vmatprep.subr.mxu0 0.0
        %3346 = vmatpush1.xpose.msra.mxu0 0.0
        %3347 = vmatprep.subr.mxu0 0.0
        %3348 = vmatpush1.xpose.msra.mxu0 0.0
        %3349 = vmatprep.subr.mxu0 0.0
        %3350 = vmatpush1.xpose.msra.mxu0 0.0
        %3351 = vmatprep.subr.mxu0 0.0
        %3352 = vmatpush1.xpose.msra.mxu0 0.0
        %3353 = vmatprep.subr.mxu0 0.0
        %3354 = vmatpush1.xpose.msra.mxu0 0.0
        %3355 = vmatprep.subr.mxu0 0.0
        %3356 = vmatpush1.xpose.msra.mxu0 0.0
        %3357 = vmatprep.subr.mxu0 0.0
        %3358 = vmatpush1.xpose.msra.mxu0 0.0
        %3359 = vmatprep.subr.mxu0 0.0
        %3360 = vmatpush1.xpose.msra.mxu0 0.0
        %3361 = vmatprep.subr.mxu0 0.0
        %3362 = vmatpush1.xpose.msra.mxu0 0.0
        %3363 = vmatprep.subr.mxu0 0.0
        %3364 = vmatpush1.xpose.msra.mxu0 0.0
        %3365 = vmatprep.mubr.f32.mxu0 0.0
        %3366 = vmatmul.mubr.f32.gmra.mrb[0].mxu0 %v3251
        %v3367 = vpop.f32.mrb[0].mxu0
        %v3368 = vadd.f32 0.0, %v3367
        %v3369 = vpop.f32.mrb[0].mxu0
        %3370 = vdwg.mxu0
        %v3372 = vsel %vm848, %v2873, 0
        %v3375 = vsel %vm848, %v3202, 0
        %v3378 = vsel %vm848, %v3203, 0
        %v3381 = vsel %vm848, %v3204, 0
        %v3384 = vsel %vm848, %v3205, 0
        %v3387 = vsel %vm848, %v3206, 0
        %v3390 = vsel %vm848, %v3207, 0
        %v3393 = vsel %vm848, %v3208, 0
        %v3396 = vsel %vm848, %v3209, 0
        %v3399 = vsel %vm848, %v3210, 0
        %v3402 = vsel %vm848, %v3211, 0
        %v3405 = vsel %vm848, %v3212, 0
        %v3408 = vsel %vm848, %v3213, 0
        %v3411 = vsel %vm848, %v3214, 0
        %v3414 = vsel %vm848, %v3215, 0
        %v3417 = vsel %vm848, %v3216, 0
        %v3420 = vsel %vm848, %v3217, 0
        %3422 = vmatprep.subr.mxu0 0.0
        %3423 = vmatpush1.xpose.msra.mxu0 %v3375
        %3424 = vmatprep.subr.mxu0 0.0
        %3425 = vmatpush1.xpose.msra.mxu0 %v3378
        %3426 = vmatprep.subr.mxu0 0.0
        %3427 = vmatpush1.xpose.msra.mxu0 %v3381
        %3428 = vmatprep.subr.mxu0 0.0
        %3429 = vmatpush1.xpose.msra.mxu0 %v3384
        %3430 = vmatprep.subr.mxu0 0.0
        %3431 = vmatpush1.xpose.msra.mxu0 %v3387
        %3432 = vmatprep.subr.mxu0 0.0
        %3433 = vmatpush1.xpose.msra.mxu0 %v3390
        %3434 = vmatprep.subr.mxu0 0.0
        %3435 = vmatpush1.xpose.msra.mxu0 %v3393
        %3436 = vmatprep.subr.mxu0 0.0
        %3437 = vmatpush1.xpose.msra.mxu0 %v3396
        %3438 = vmatprep.subr.mxu0 0.0
        %3439 = vmatpush1.xpose.msra.mxu0 %v3399
        %3440 = vmatprep.subr.mxu0 0.0
        %3441 = vmatpush1.xpose.msra.mxu0 %v3402
        %3442 = vmatprep.subr.mxu0 0.0
        %3443 = vmatpush1.xpose.msra.mxu0 %v3405
        %3444 = vmatprep.subr.mxu0 0.0
        %3445 = vmatpush1.xpose.msra.mxu0 %v3408
        %3446 = vmatprep.subr.mxu0 0.0
        %3447 = vmatpush1.xpose.msra.mxu0 %v3411
        %3448 = vmatprep.subr.mxu0 0.0
        %3449 = vmatpush1.xpose.msra.mxu0 %v3414
        %3450 = vmatprep.subr.mxu0 0.0
        %3451 = vmatpush1.xpose.msra.mxu0 %v3417
        %3452 = vmatprep.subr.mxu0 0.0
        %3453 = vmatpush1.xpose.msra.mxu0 %v3420
        %3454 = vmatprep.subr.mxu0 0.0
        %3455 = vmatpush1.xpose.msra.mxu0 0.0
        %3456 = vmatprep.subr.mxu0 0.0
        %3457 = vmatpush1.xpose.msra.mxu0 0.0
        %3458 = vmatprep.subr.mxu0 0.0
        %3459 = vmatpush1.xpose.msra.mxu0 0.0
        %3460 = vmatprep.subr.mxu0 0.0
        %3461 = vmatpush1.xpose.msra.mxu0 0.0
        %3462 = vmatprep.subr.mxu0 0.0
        %3463 = vmatpush1.xpose.msra.mxu0 0.0
        %3464 = vmatprep.subr.mxu0 0.0
        %3465 = vmatpush1.xpose.msra.mxu0 0.0
        %3466 = vmatprep.subr.mxu0 0.0
        %3467 = vmatpush1.xpose.msra.mxu0 0.0
        %3468 = vmatprep.subr.mxu0 0.0
        %3469 = vmatpush1.xpose.msra.mxu0 0.0
        %3470 = vmatprep.subr.mxu0 0.0
        %3471 = vmatpush1.xpose.msra.mxu0 0.0
        %3472 = vmatprep.subr.mxu0 0.0
        %3473 = vmatpush1.xpose.msra.mxu0 0.0
        %3474 = vmatprep.subr.mxu0 0.0
        %3475 = vmatpush1.xpose.msra.mxu0 0.0
        %3476 = vmatprep.subr.mxu0 0.0
        %3477 = vmatpush1.xpose.msra.mxu0 0.0
        %3478 = vmatprep.subr.mxu0 0.0
        %3479 = vmatpush1.xpose.msra.mxu0 0.0
        %3480 = vmatprep.subr.mxu0 0.0
        %3481 = vmatpush1.xpose.msra.mxu0 0.0
        %3482 = vmatprep.subr.mxu0 0.0
        %3483 = vmatpush1.xpose.msra.mxu0 0.0
        %3484 = vmatprep.subr.mxu0 0.0
        %3485 = vmatpush1.xpose.msra.mxu0 0.0
        %3486 = vmatprep.mubr.f32.mxu0 0.0
        %3487 = vmatmul.mubr.f32.gmra.mrb[0].mxu0 %v3372
        %v3488 = vpop.f32.mrb[0].mxu0
        %v3489 = vadd.f32 0.0, %v3488
        %v3490 = vpop.f32.mrb[0].mxu0
        %3491 = vdwg.mxu0
        %v3493 = vsel %vm848, %v2874, 0
        %v3496 = vsel %vm848, %v3218, 0
        %v3499 = vsel %vm848, %v3219, 0
        %v3502 = vsel %vm848, %v3220, 0
        %v3505 = vsel %vm848, %v3221, 0
        %v3508 = vsel %vm848, %v3222, 0
        %v3511 = vsel %vm848, %v3223, 0
        %v3514 = vsel %vm848, %v3224, 0
        %v3517 = vsel %vm848, %v3225, 0
        %v3520 = vsel %vm848, %v3226, 0
        %v3523 = vsel %vm848, %v3227, 0
        %v3526 = vsel %vm848, %v3228, 0
        %v3529 = vsel %vm848, %v3229, 0
        %v3532 = vsel %vm848, %v3230, 0
        %v3535 = vsel %vm848, %v3231, 0
        %v3538 = vsel %vm848, %v3232, 0
        %v3541 = vsel %vm848, %v3233, 0
        %3543 = vmatprep.subr.mxu0 0.0
        %3544 = vmatpush1.xpose.msra.mxu0 %v3496
        %3545 = vmatprep.subr.mxu0 0.0
        %3546 = vmatpush1.xpose.msra.mxu0 %v3499
        %3547 = vmatprep.subr.mxu0 0.0
        %3548 = vmatpush1.xpose.msra.mxu0 %v3502
        %3549 = vmatprep.subr.mxu0 0.0
        %3550 = vmatpush1.xpose.msra.mxu0 %v3505
        %3551 = vmatprep.subr.mxu0 0.0
        %3552 = vmatpush1.xpose.msra.mxu0 %v3508
        %3553 = vmatprep.subr.mxu0 0.0
        %3554 = vmatpush1.xpose.msra.mxu0 %v3511
        %3555 = vmatprep.subr.mxu0 0.0
        %3556 = vmatpush1.xpose.msra.mxu0 %v3514
        %3557 = vmatprep.subr.mxu0 0.0
        %3558 = vmatpush1.xpose.msra.mxu0 %v3517
        %3559 = vmatprep.subr.mxu0 0.0
        %3560 = vmatpush1.xpose.msra.mxu0 %v3520
        %3561 = vmatprep.subr.mxu0 0.0
        %3562 = vmatpush1.xpose.msra.mxu0 %v3523
        %3563 = vmatprep.subr.mxu0 0.0
        %3564 = vmatpush1.xpose.msra.mxu0 %v3526
        %3565 = vmatprep.subr.mxu0 0.0
        %3566 = vmatpush1.xpose.msra.mxu0 %v3529
        %3567 = vmatprep.subr.mxu0 0.0
        %3568 = vmatpush1.xpose.msra.mxu0 %v3532
        %3569 = vmatprep.subr.mxu0 0.0
        %3570 = vmatpush1.xpose.msra.mxu0 %v3535
        %3571 = vmatprep.subr.mxu0 0.0
        %3572 = vmatpush1.xpose.msra.mxu0 %v3538
        %3573 = vmatprep.subr.mxu0 0.0
        %3574 = vmatpush1.xpose.msra.mxu0 %v3541
        %3575 = vmatprep.subr.mxu0 0.0
        %3576 = vmatpush1.xpose.msra.mxu0 0.0
        %3577 = vmatprep.subr.mxu0 0.0
        %3578 = vmatpush1.xpose.msra.mxu0 0.0
        %3579 = vmatprep.subr.mxu0 0.0
        %3580 = vmatpush1.xpose.msra.mxu0 0.0
        %3581 = vmatprep.subr.mxu0 0.0
        %3582 = vmatpush1.xpose.msra.mxu0 0.0
        %3583 = vmatprep.subr.mxu0 0.0
        %3584 = vmatpush1.xpose.msra.mxu0 0.0
        %3585 = vmatprep.subr.mxu0 0.0
        %3586 = vmatpush1.xpose.msra.mxu0 0.0
        %3587 = vmatprep.subr.mxu0 0.0
        %3588 = vmatpush1.xpose.msra.mxu0 0.0
        %3589 = vmatprep.subr.mxu0 0.0
        %3590 = vmatpush1.xpose.msra.mxu0 0.0
        %3591 = vmatprep.subr.mxu0 0.0
        %3592 = vmatpush1.xpose.msra.mxu0 0.0
        %3593 = vmatprep.subr.mxu0 0.0
        %3594 = vmatpush1.xpose.msra.mxu0 0.0
        %3595 = vmatprep.subr.mxu0 0.0
        %3596 = vmatpush1.xpose.msra.mxu0 0.0
        %3597 = vmatprep.subr.mxu0 0.0
        %3598 = vmatpush1.xpose.msra.mxu0 0.0
        %3599 = vmatprep.subr.mxu0 0.0
        %3600 = vmatpush1.xpose.msra.mxu0 0.0
        %3601 = vmatprep.subr.mxu0 0.0
        %3602 = vmatpush1.xpose.msra.mxu0 0.0
        %3603 = vmatprep.subr.mxu0 0.0
        %3604 = vmatpush1.xpose.msra.mxu0 0.0
        %3605 = vmatprep.subr.mxu0 0.0
        %3606 = vmatpush1.xpose.msra.mxu0 0.0
        %3607 = vmatprep.mubr.f32.mxu0 0.0
        %3608 = vmatmul.mubr.f32.gmra.mrb[0].mxu0 %v3493
        %v3609 = vpop.f32.mrb[0].mxu0
        %v3610 = vadd.f32 0.0, %v3609
        %v3611 = vpop.f32.mrb[0].mxu0
        %3612 = vdwg.mxu0
        %v3614 = vsel %vm848, %v2875, 0
        %v3617 = vsel %vm848, %v3234, 0
        %v3620 = vsel %vm848, %v3235, 0
        %v3623 = vsel %vm848, %v3236, 0
        %v3626 = vsel %vm848, %v3237, 0
        %v3629 = vsel %vm848, %v3238, 0
        %v3632 = vsel %vm848, %v3239, 0
        %v3635 = vsel %vm848, %v3240, 0
        %v3638 = vsel %vm848, %v3241, 0
        %v3641 = vsel %vm848, %v3242, 0
        %v3644 = vsel %vm848, %v3243, 0
        %v3647 = vsel %vm848, %v3244, 0
        %v3650 = vsel %vm848, %v3245, 0
        %v3653 = vsel %vm848, %v3246, 0
        %v3656 = vsel %vm848, %v3247, 0
        %v3659 = vsel %vm848, %v3248, 0
        %v3662 = vsel %vm848, %v3249, 0
        %3664 = vmatprep.subr.mxu0 0.0
        %3665 = vmatpush1.xpose.msra.mxu0 %v3617
        %3666 = vmatprep.subr.mxu0 0.0
        %3667 = vmatpush1.xpose.msra.mxu0 %v3620
        %3668 = vmatprep.subr.mxu0 0.0
        %3669 = vmatpush1.xpose.msra.mxu0 %v3623
        %3670 = vmatprep.subr.mxu0 0.0
        %3671 = vmatpush1.xpose.msra.mxu0 %v3626
        %3672 = vmatprep.subr.mxu0 0.0
        %3673 = vmatpush1.xpose.msra.mxu0 %v3629
        %3674 = vmatprep.subr.mxu0 0.0
        %3675 = vmatpush1.xpose.msra.mxu0 %v3632
        %3676 = vmatprep.subr.mxu0 0.0
        %3677 = vmatpush1.xpose.msra.mxu0 %v3635
        %3678 = vmatprep.subr.mxu0 0.0
        %3679 = vmatpush1.xpose.msra.mxu0 %v3638
        %3680 = vmatprep.subr.mxu0 0.0
        %3681 = vmatpush1.xpose.msra.mxu0 %v3641
        %3682 = vmatprep.subr.mxu0 0.0
        %3683 = vmatpush1.xpose.msra.mxu0 %v3644
        %3684 = vmatprep.subr.mxu0 0.0
        %3685 = vmatpush1.xpose.msra.mxu0 %v3647
        %3686 = vmatprep.subr.mxu0 0.0
        %3687 = vmatpush1.xpose.msra.mxu0 %v3650
        %3688 = vmatprep.subr.mxu0 0.0
        %3689 = vmatpush1.xpose.msra.mxu0 %v3653
        %3690 = vmatprep.subr.mxu0 0.0
        %3691 = vmatpush1.xpose.msra.mxu0 %v3656
        %3692 = vmatprep.subr.mxu0 0.0
        %3693 = vmatpush1.xpose.msra.mxu0 %v3659
        %3694 = vmatprep.subr.mxu0 0.0
        %3695 = vmatpush1.xpose.msra.mxu0 %v3662
        %3696 = vmatprep.subr.mxu0 0.0
        %3697 = vmatpush1.xpose.msra.mxu0 0.0
        %3698 = vmatprep.subr.mxu0 0.0
        %3699 = vmatpush1.xpose.msra.mxu0 0.0
        %3700 = vmatprep.subr.mxu0 0.0
        %3701 = vmatpush1.xpose.msra.mxu0 0.0
        %3702 = vmatprep.subr.mxu0 0.0
        %3703 = vmatpush1.xpose.msra.mxu0 0.0
        %3704 = vmatprep.subr.mxu0 0.0
        %3705 = vmatpush1.xpose.msra.mxu0 0.0
        %3706 = vmatprep.subr.mxu0 0.0
        %3707 = vmatpush1.xpose.msra.mxu0 0.0
        %3708 = vmatprep.subr.mxu0 0.0
        %3709 = vmatpush1.xpose.msra.mxu0 0.0
        %3710 = vmatprep.subr.mxu0 0.0
        %3711 = vmatpush1.xpose.msra.mxu0 0.0
        %3712 = vmatprep.subr.mxu0 0.0
        %3713 = vmatpush1.xpose.msra.mxu0 0.0
        %3714 = vmatprep.subr.mxu0 0.0
        %3715 = vmatpush1.xpose.msra.mxu0 0.0
        %3716 = vmatprep.subr.mxu0 0.0
        %3717 = vmatpush1.xpose.msra.mxu0 0.0
        %3718 = vmatprep.subr.mxu0 0.0
        %3719 = vmatpush1.xpose.msra.mxu0 0.0
        %3720 = vmatprep.subr.mxu0 0.0
        %3721 = vmatpush1.xpose.msra.mxu0 0.0
        %3722 = vmatprep.subr.mxu0 0.0
        %3723 = vmatpush1.xpose.msra.mxu0 0.0
        %3724 = vmatprep.subr.mxu0 0.0
        %3725 = vmatpush1.xpose.msra.mxu0 0.0
        %3726 = vmatprep.subr.mxu0 0.0
        %3727 = vmatpush1.xpose.msra.mxu0 0.0
        %3728 = vmatprep.mubr.f32.mxu0 0.0
        %3729 = vmatmul.mubr.f32.gmra.mrb[0].mxu0 %v3614
        %v3730 = vpop.f32.mrb[0].mxu0
        %v3731 = vadd.f32 0.0, %v3730
        %v3732 = vpop.f32.mrb[0].mxu0
        %3733 = vdwg.mxu0
        %3738 = vrot.lane.b32.xlu0 %v3368, 1
        %v3739 = vpop.permute.xlu0 %3738
        %3740 = vrot.lane.b32.xlu0 %v3489, 1
        %v3741 = vpop.permute.xlu0 %3740
        %3742 = vrot.lane.b32.xlu0 %v3610, 1
        %v3743 = vpop.permute.xlu0 %3742
        %3744 = vrot.lane.b32.xlu0 %v3731, 1
        %v3745 = vpop.permute.xlu0 %3744
        %v3750 = vsel %vm1718, %v3739, %v3368
        %v3751 = vsel %vm1718, %v3741, %v3489
        %v3752 = vsel %vm1718, %v3743, %v3610
        %v3753 = vsel %vm1718, %v3745, %v3731
        %3758 = vrot.lane.b32.xlu0 %v3750, 2
        %v3759 = vpop.permute.xlu0 %3758
        %3760 = vrot.lane.b32.xlu0 %v3751, 2
        %v3761 = vpop.permute.xlu0 %3760
        %3762 = vrot.lane.b32.xlu0 %v3752, 2
        %v3763 = vpop.permute.xlu0 %3762
        %3764 = vrot.lane.b32.xlu0 %v3753, 2
        %v3765 = vpop.permute.xlu0 %3764
        %v3770 = vsel %vm1740, %v3759, %v3750
        %v3771 = vsel %vm1740, %v3761, %v3751
        %v3772 = vsel %vm1740, %v3763, %v3752
        %v3773 = vsel %vm1740, %v3765, %v3753
        %3778 = vrot.lane.b32.xlu0 %v3770, 4
        %v3779 = vpop.permute.xlu0 %3778
        %3780 = vrot.lane.b32.xlu0 %v3771, 4
        %v3781 = vpop.permute.xlu0 %3780
        %3782 = vrot.lane.b32.xlu0 %v3772, 4
        %v3783 = vpop.permute.xlu0 %3782
        %3784 = vrot.lane.b32.xlu0 %v3773, 4
        %v3785 = vpop.permute.xlu0 %3784
        %v3790 = vsel %vm1762, %v3779, %v3770
        %v3791 = vsel %vm1762, %v3781, %v3771
        %v3792 = vsel %vm1762, %v3783, %v3772
        %v3793 = vsel %vm1762, %v3785, %v3773
        %v3794 = vmax.f32 %v2954, -65504.0
        %v3795 = vmax.f32 %v3030, -65504.0
        %v3796 = vmax.f32 %v3106, -65504.0
        %v3797 = vmax.f32 %v3182, -65504.0
        %v3798 = vmin.f32 %v3794, 65504.0
        %v3799 = vmin.f32 %v3795, 65504.0
        %v3800 = vmin.f32 %v3796, 65504.0
        %v3801 = vmin.f32 %v3797, 65504.0
        %v3802 = vmul.f32 %v3798, 0.35355338
        %v3803 = vmul.f32 %v3799, 0.35355338
        %v3804 = vmul.f32 %v3800, 0.35355338
        %v3805 = vmul.f32 %v3801, 0.35355338
        %v3806 = vmax.f32 %v3790, -65504.0
        %v3807 = vmax.f32 %v3791, -65504.0
        %v3808 = vmax.f32 %v3792, -65504.0
        %v3809 = vmax.f32 %v3793, -65504.0
        %v3810 = vmin.f32 %v3806, 65504.0
        %v3811 = vmin.f32 %v3807, 65504.0
        %v3812 = vmin.f32 %v3808, 65504.0
        %v3813 = vmin.f32 %v3809, 65504.0
        %v3814 = vmul.f32 %v3810, 0.35355338
        %v3815 = vmul.f32 %v3811, 0.35355338
        %v3816 = vmul.f32 %v3812, 0.35355338
        %v3817 = vmul.f32 %v3813, 0.35355338
        %3822 = vrot.lane.b32.xlu0 %v3814, 121
        %v3823 = vpop.permute.xlu0 %3822
        %3824 = vrot.lane.b32.xlu0 %v3815, 121
        %v3825 = vpop.permute.xlu0 %3824
        %3826 = vrot.lane.b32.xlu0 %v3816, 121
        %v3827 = vpop.permute.xlu0 %3826
        %3828 = vrot.lane.b32.xlu0 %v3817, 121
        %v3829 = vpop.permute.xlu0 %3828
        %v3834 = vadd.f32 %v3802, %v3823
        %v3835 = vadd.f32 %v3803, %v3825
        %v3836 = vadd.f32 %v3804, %v3827
        %v3837 = vadd.f32 %v3805, %v3829
        %v3838 = vsel %vm1815, -3.4028235e+38, %v3834
        %v3839 = vsel %vm1815, -3.4028235e+38, %v3835
        %v3840 = vsel %vm1815, -3.4028235e+38, %v3836
        %v3841 = vsel %vm1815, -3.4028235e+38, %v3837
        %v3842 = vsel %vm848, %v3838, -inf
        %3843 = vmax.xlane.f32.xlu0 %v3842
        %v3844 = vpop.xlane.xlu0 %3843
        %v3845 = vsel %vm848, %v3839, -inf
        %3846 = vmax.xlane.f32.xlu0 %v3845
        %v3847 = vpop.xlane.xlu0 %3846
        %v3848 = vsel %vm848, %v3840, -inf
        %3849 = vmax.xlane.f32.xlu0 %v3848
        %v3850 = vpop.xlane.xlu0 %3849
        %v3851 = vsel %vm848, %v3841, -inf
        %3852 = vmax.xlane.f32.xlu0 %v3851
        %v3853 = vpop.xlane.xlu0 %3852
        %v3854 = vsub.f32 %v3838, %v3844
        %v3855 = vsub.f32 %v3839, %v3847
        %v3856 = vsub.f32 %v3840, %v3850
        %v3857 = vsub.f32 %v3841, %v3853
        %v3858 = vmul.f32 %v3854, 1.442695
        %v3859 = vpow.pop %v3858
        %v3860 = vmul.f32 %v3855, 1.442695
        %v3861 = vpow.pop %v3860
        %v3862 = vmul.f32 %v3856, 1.442695
        %v3863 = vpow.pop %v3862
        %v3864 = vmul.f32 %v3857, 1.442695
        %v3865 = vpow.pop %v3864
        %v3866 = vsel %vm848, %v3859, 0.0
        %3867 = vadd.xlane.f32.xlu0 %v3866
        %v3868 = vpop.xlane.xlu0 %3867
        %v3869 = vsel %vm848, %v3861, 0.0
        %3870 = vadd.xlane.f32.xlu0 %v3869
        %v3871 = vpop.xlane.xlu0 %3870
        %v3872 = vsel %vm848, %v3863, 0.0
        %3873 = vadd.xlane.f32.xlu0 %v3872
        %v3874 = vpop.xlane.xlu0 %3873
        %v3875 = vsel %vm848, %v3865, 0.0
        %3876 = vadd.xlane.f32.xlu0 %v3875
        %v3877 = vpop.xlane.xlu0 %3876
        %v3878 = vrcp.pop %v3868
        %v3879 = vrcp.pop %v3871
        %v3880 = vrcp.pop %v3874
        %v3881 = vrcp.pop %v3877
        %v3882 = vmul.f32 %v3859, %v3878
        %v3883 = vmul.f32 %v3861, %v3879
        %v3884 = vmul.f32 %v3863, %v3880
        %v3885 = vmul.f32 %v3865, %v3881
        %v3886 = vsel %vm1815, 0.0, %v3882
        %v3887 = vsel %vm1815, 0.0, %v3883
        %v3888 = vsel %vm1815, 0.0, %v3884
        %v3889 = vsel %vm1815, 0.0, %v3885
        %s3890 = scalar_lea.vmem %s451, 32 [#allocation4]
        %3891 = vst.msk [vmem:[%s3890] sm:$0xff] %vm848, %v3886
        %3892 = vst.msk [vmem:[%s3890 + $0x8] sm:$0xff] %vm848, %v3887
        %3893 = vst.msk [vmem:[%s3890 + $0x10] sm:$0xff] %vm848, %v3888
        %3894 = vst.msk [vmem:[%s3890 + $0x18] sm:$0xff] %vm848, %v3889
        %s3895 = scalar_lea.vmem %s6, 32
        %v3896 = vld [vmem:[%s3895] sm:$0xff]
        %v3897 = vld [vmem:[%s3895 + $0x8] sm:$0xff]
        %v3898 = vld [vmem:[%s3895 + $0x10] sm:$0xff]
        %v3899 = vld [vmem:[%s3895 + $0x18] sm:$0xff]
        %v3901 = vsel %vm848, %v3886, 0
        %3903 = vmatprep.subr.mxu0 0.0
        %3904 = vmatpush1.msra.mxu0 %v3896
        %3905 = vmatprep.subr.mxu0 0.0
        %3906 = vmatpush1.msra.mxu0 0.0
        %3907 = vmatprep.subr.mxu0 0.0
        %3908 = vmatpush1.msra.mxu0 0.0
        %3909 = vmatprep.subr.mxu0 0.0
        %3910 = vmatpush1.msra.mxu0 0.0
        %3911 = vmatprep.subr.mxu0 0.0
        %3912 = vmatpush1.msra.mxu0 0.0
        %3913 = vmatprep.subr.mxu0 0.0
        %3914 = vmatpush1.msra.mxu0 0.0
        %3915 = vmatprep.subr.mxu0 0.0
        %3916 = vmatpush1.msra.mxu0 0.0
        %3917 = vmatprep.subr.mxu0 0.0
        %3918 = vmatpush1.msra.mxu0 0.0
        %3919 = vmatprep.subr.mxu0 0.0
        %3920 = vmatpush1.msra.mxu0 0.0
        %3921 = vmatprep.subr.mxu0 0.0
        %3922 = vmatpush1.msra.mxu0 0.0
        %3923 = vmatprep.subr.mxu0 0.0
        %3924 = vmatpush1.msra.mxu0 0.0
        %3925 = vmatprep.subr.mxu0 0.0
        %3926 = vmatpush1.msra.mxu0 0.0
        %3927 = vmatprep.subr.mxu0 0.0
        %3928 = vmatpush1.msra.mxu0 0.0
        %3929 = vmatprep.subr.mxu0 0.0
        %3930 = vmatpush1.msra.mxu0 0.0
        %3931 = vmatprep.subr.mxu0 0.0
        %3932 = vmatpush1.msra.mxu0 0.0
        %3933 = vmatprep.subr.mxu0 0.0
        %3934 = vmatpush1.msra.mxu0 0.0
        %3935 = vmatprep.subr.mxu0 0.0
        %3936 = vmatpush1.msra.mxu0 0.0
        %3937 = vmatprep.subr.mxu0 0.0
        %3938 = vmatpush1.msra.mxu0 0.0
        %3939 = vmatprep.subr.mxu0 0.0
        %3940 = vmatpush1.msra.mxu0 0.0
        %3941 = vmatprep.subr.mxu0 0.0
        %3942 = vmatpush1.msra.mxu0 0.0
        %3943 = vmatprep.subr.mxu0 0.0
        %3944 = vmatpush1.msra.mxu0 0.0
        %3945 = vmatprep.subr.mxu0 0.0
        %3946 = vmatpush1.msra.mxu0 0.0
        %3947 = vmatprep.subr.mxu0 0.0
        %3948 = vmatpush1.msra.mxu0 0.0
        %3949 = vmatprep.subr.mxu0 0.0
        %3950 = vmatpush1.msra.mxu0 0.0
        %3951 = vmatprep.subr.mxu0 0.0
        %3952 = vmatpush1.msra.mxu0 0.0
        %3953 = vmatprep.subr.mxu0 0.0
        %3954 = vmatpush1.msra.mxu0 0.0
        %3955 = vmatprep.subr.mxu0 0.0
        %3956 = vmatpush1.msra.mxu0 0.0
        %3957 = vmatprep.subr.mxu0 0.0
        %3958 = vmatpush1.msra.mxu0 0.0
        %3959 = vmatprep.subr.mxu0 0.0
        %3960 = vmatpush1.msra.mxu0 0.0
        %3961 = vmatprep.subr.mxu0 0.0
        %3962 = vmatpush1.msra.mxu0 0.0
        %3963 = vmatprep.subr.mxu0 0.0
        %3964 = vmatpush1.msra.mxu0 0.0
        %3965 = vmatprep.subr.mxu0 0.0
        %3966 = vmatpush1.msra.mxu0 0.0
        %3967 = vmatprep.mubr.f32.mxu0 0.0
        %3968 = vmatmul.mubr.f32.gmra.mrb[0].mxu0 %v3901
        %v3969 = vpop.f32.mrb[0].mxu0
        %v3970 = vadd.f32 0.0, %v3969
        %v3971 = vpop.f32.mrb[0].mxu0
        %3972 = vdwg.mxu0
        %v3974 = vsel %vm848, %v3887, 0
        %3976 = vmatprep.subr.mxu0 0.0
        %3977 = vmatpush1.msra.mxu0 %v3897
        %3978 = vmatprep.subr.mxu0 0.0
        %3979 = vmatpush1.msra.mxu0 0.0
        %3980 = vmatprep.subr.mxu0 0.0
        %3981 = vmatpush1.msra.mxu0 0.0
        %3982 = vmatprep.subr.mxu0 0.0
        %3983 = vmatpush1.msra.mxu0 0.0
        %3984 = vmatprep.subr.mxu0 0.0
        %3985 = vmatpush1.msra.mxu0 0.0
        %3986 = vmatprep.subr.mxu0 0.0
        %3987 = vmatpush1.msra.mxu0 0.0
        %3988 = vmatprep.subr.mxu0 0.0
        %3989 = vmatpush1.msra.mxu0 0.0
        %3990 = vmatprep.subr.mxu0 0.0
        %3991 = vmatpush1.msra.mxu0 0.0
        %3992 = vmatprep.subr.mxu0 0.0
        %3993 = vmatpush1.msra.mxu0 0.0
        %3994 = vmatprep.subr.mxu0 0.0
        %3995 = vmatpush1.msra.mxu0 0.0
        %3996 = vmatprep.subr.mxu0 0.0
        %3997 = vmatpush1.msra.mxu0 0.0
        %3998 = vmatprep.subr.mxu0 0.0
        %3999 = vmatpush1.msra.mxu0 0.0
        %4000 = vmatprep.subr.mxu0 0.0
        %4001 = vmatpush1.msra.mxu0 0.0
        %4002 = vmatprep.subr.mxu0 0.0
        %4003 = vmatpush1.msra.mxu0 0.0
        %4004 = vmatprep.subr.mxu0 0.0
        %4005 = vmatpush1.msra.mxu0 0.0
        %4006 = vmatprep.subr.mxu0 0.0
        %4007 = vmatpush1.msra.mxu0 0.0
        %4008 = vmatprep.subr.mxu0 0.0
        %4009 = vmatpush1.msra.mxu0 0.0
        %4010 = vmatprep.subr.mxu0 0.0
        %4011 = vmatpush1.msra.mxu0 0.0
        %4012 = vmatprep.subr.mxu0 0.0
        %4013 = vmatpush1.msra.mxu0 0.0
        %4014 = vmatprep.subr.mxu0 0.0
        %4015 = vmatpush1.msra.mxu0 0.0
        %4016 = vmatprep.subr.mxu0 0.0
        %4017 = vmatpush1.msra.mxu0 0.0
        %4018 = vmatprep.subr.mxu0 0.0
        %4019 = vmatpush1.msra.mxu0 0.0
        %4020 = vmatprep.subr.mxu0 0.0
        %4021 = vmatpush1.msra.mxu0 0.0
        %4022 = vmatprep.subr.mxu0 0.0
        %4023 = vmatpush1.msra.mxu0 0.0
        %4024 = vmatprep.subr.mxu0 0.0
        %4025 = vmatpush1.msra.mxu0 0.0
        %4026 = vmatprep.subr.mxu0 0.0
        %4027 = vmatpush1.msra.mxu0 0.0
        %4028 = vmatprep.subr.mxu0 0.0
        %4029 = vmatpush1.msra.mxu0 0.0
        %4030 = vmatprep.subr.mxu0 0.0
        %4031 = vmatpush1.msra.mxu0 0.0
        %4032 = vmatprep.subr.mxu0 0.0
        %4033 = vmatpush1.msra.mxu0 0.0
        %4034 = vmatprep.subr.mxu0 0.0
        %4035 = vmatpush1.msra.mxu0 0.0
        %4036 = vmatprep.subr.mxu0 0.0
        %4037 = vmatpush1.msra.mxu0 0.0
        %4038 = vmatprep.subr.mxu0 0.0
        %4039 = vmatpush1.msra.mxu0 0.0
        %4040 = vmatprep.mubr.f32.mxu0 0.0
        %4041 = vmatmul.mubr.f32.gmra.mrb[0].mxu0 %v3974
        %v4042 = vpop.f32.mrb[0].mxu0
        %v4043 = vadd.f32 0.0, %v4042
        %v4044 = vpop.f32.mrb[0].mxu0
        %4045 = vdwg.mxu0
        %v4047 = vsel %vm848, %v3888, 0
        %4049 = vmatprep.subr.mxu0 0.0
        %4050 = vmatpush1.msra.mxu0 %v3898
        %4051 = vmatprep.subr.mxu0 0.0
        %4052 = vmatpush1.msra.mxu0 0.0
        %4053 = vmatprep.subr.mxu0 0.0
        %4054 = vmatpush1.msra.mxu0 0.0
        %4055 = vmatprep.subr.mxu0 0.0
        %4056 = vmatpush1.msra.mxu0 0.0
        %4057 = vmatprep.subr.mxu0 0.0
        %4058 = vmatpush1.msra.mxu0 0.0
        %4059 = vmatprep.subr.mxu0 0.0
        %4060 = vmatpush1.msra.mxu0 0.0
        %4061 = vmatprep.subr.mxu0 0.0
        %4062 = vmatpush1.msra.mxu0 0.0
        %4063 = vmatprep.subr.mxu0 0.0
        %4064 = vmatpush1.msra.mxu0 0.0
        %4065 = vmatprep.subr.mxu0 0.0
        %4066 = vmatpush1.msra.mxu0 0.0
        %4067 = vmatprep.subr.mxu0 0.0
        %4068 = vmatpush1.msra.mxu0 0.0
        %4069 = vmatprep.subr.mxu0 0.0
        %4070 = vmatpush1.msra.mxu0 0.0
        %4071 = vmatprep.subr.mxu0 0.0
        %4072 = vmatpush1.msra.mxu0 0.0
        %4073 = vmatprep.subr.mxu0 0.0
        %4074 = vmatpush1.msra.mxu0 0.0
        %4075 = vmatprep.subr.mxu0 0.0
        %4076 = vmatpush1.msra.mxu0 0.0
        %4077 = vmatprep.subr.mxu0 0.0
        %4078 = vmatpush1.msra.mxu0 0.0
        %4079 = vmatprep.subr.mxu0 0.0
        %4080 = vmatpush1.msra.mxu0 0.0
        %4081 = vmatprep.subr.mxu0 0.0
        %4082 = vmatpush1.msra.mxu0 0.0
        %4083 = vmatprep.subr.mxu0 0.0
        %4084 = vmatpush1.msra.mxu0 0.0
        %4085 = vmatprep.subr.mxu0 0.0
        %4086 = vmatpush1.msra.mxu0 0.0
        %4087 = vmatprep.subr.mxu0 0.0
        %4088 = vmatpush1.msra.mxu0 0.0
        %4089 = vmatprep.subr.mxu0 0.0
        %4090 = vmatpush1.msra.mxu0 0.0
        %4091 = vmatprep.subr.mxu0 0.0
        %4092 = vmatpush1.msra.mxu0 0.0
        %4093 = vmatprep.subr.mxu0 0.0
        %4094 = vmatpush1.msra.mxu0 0.0
        %4095 = vmatprep.subr.mxu0 0.0
        %4096 = vmatpush1.msra.mxu0 0.0
        %4097 = vmatprep.subr.mxu0 0.0
        %4098 = vmatpush1.msra.mxu0 0.0
        %4099 = vmatprep.subr.mxu0 0.0
        %4100 = vmatpush1.msra.mxu0 0.0
        %4101 = vmatprep.subr.mxu0 0.0
        %4102 = vmatpush1.msra.mxu0 0.0
        %4103 = vmatprep.subr.mxu0 0.0
        %4104 = vmatpush1.msra.mxu0 0.0
        %4105 = vmatprep.subr.mxu0 0.0
        %4106 = vmatpush1.msra.mxu0 0.0
        %4107 = vmatprep.subr.mxu0 0.0
        %4108 = vmatpush1.msra.mxu0 0.0
        %4109 = vmatprep.subr.mxu0 0.0
        %4110 = vmatpush1.msra.mxu0 0.0
        %4111 = vmatprep.subr.mxu0 0.0
        %4112 = vmatpush1.msra.mxu0 0.0
        %4113 = vmatprep.mubr.f32.mxu0 0.0
        %4114 = vmatmul.mubr.f32.gmra.mrb[0].mxu0 %v4047
        %v4115 = vpop.f32.mrb[0].mxu0
        %v4116 = vadd.f32 0.0, %v4115
        %v4117 = vpop.f32.mrb[0].mxu0
        %4118 = vdwg.mxu0
        %v4120 = vsel %vm848, %v3889, 0
        %4122 = vmatprep.subr.mxu0 0.0
        %4123 = vmatpush1.msra.mxu0 %v3899
        %4124 = vmatprep.subr.mxu0 0.0
        %4125 = vmatpush1.msra.mxu0 0.0
        %4126 = vmatprep.subr.mxu0 0.0
        %4127 = vmatpush1.msra.mxu0 0.0
        %4128 = vmatprep.subr.mxu0 0.0
        %4129 = vmatpush1.msra.mxu0 0.0
        %4130 = vmatprep.subr.mxu0 0.0
        %4131 = vmatpush1.msra.mxu0 0.0
        %4132 = vmatprep.subr.mxu0 0.0
        %4133 = vmatpush1.msra.mxu0 0.0
        %4134 = vmatprep.subr.mxu0 0.0
        %4135 = vmatpush1.msra.mxu0 0.0
        %4136 = vmatprep.subr.mxu0 0.0
        %4137 = vmatpush1.msra.mxu0 0.0
        %4138 = vmatprep.subr.mxu0 0.0
        %4139 = vmatpush1.msra.mxu0 0.0
        %4140 = vmatprep.subr.mxu0 0.0
        %4141 = vmatpush1.msra.mxu0 0.0
        %4142 = vmatprep.subr.mxu0 0.0
        %4143 = vmatpush1.msra.mxu0 0.0
        %4144 = vmatprep.subr.mxu0 0.0
        %4145 = vmatpush1.msra.mxu0 0.0
        %4146 = vmatprep.subr.mxu0 0.0
        %4147 = vmatpush1.msra.mxu0 0.0
        %4148 = vmatprep.subr.mxu0 0.0
        %4149 = vmatpush1.msra.mxu0 0.0
        %4150 = vmatprep.subr.mxu0 0.0
        %4151 = vmatpush1.msra.mxu0 0.0
        %4152 = vmatprep.subr.mxu0 0.0
        %4153 = vmatpush1.msra.mxu0 0.0
        %4154 = vmatprep.subr.mxu0 0.0
        %4155 = vmatpush1.msra.mxu0 0.0
        %4156 = vmatprep.subr.mxu0 0.0
        %4157 = vmatpush1.msra.mxu0 0.0
        %4158 = vmatprep.subr.mxu0 0.0
        %4159 = vmatpush1.msra.mxu0 0.0
        %4160 = vmatprep.subr.mxu0 0.0
        %4161 = vmatpush1.msra.mxu0 0.0
        %4162 = vmatprep.subr.mxu0 0.0
        %4163 = vmatpush1.msra.mxu0 0.0
        %4164 = vmatprep.subr.mxu0 0.0
        %4165 = vmatpush1.msra.mxu0 0.0
        %4166 = vmatprep.subr.mxu0 0.0
        %4167 = vmatpush1.msra.mxu0 0.0
        %4168 = vmatprep.subr.mxu0 0.0
        %4169 = vmatpush1.msra.mxu0 0.0
        %4170 = vmatprep.subr.mxu0 0.0
        %4171 = vmatpush1.msra.mxu0 0.0
        %4172 = vmatprep.subr.mxu0 0.0
        %4173 = vmatpush1.msra.mxu0 0.0
        %4174 = vmatprep.subr.mxu0 0.0
        %4175 = vmatpush1.msra.mxu0 0.0
        %4176 = vmatprep.subr.mxu0 0.0
        %4177 = vmatpush1.msra.mxu0 0.0
        %4178 = vmatprep.subr.mxu0 0.0
        %4179 = vmatpush1.msra.mxu0 0.0
        %4180 = vmatprep.subr.mxu0 0.0
        %4181 = vmatpush1.msra.mxu0 0.0
        %4182 = vmatprep.subr.mxu0 0.0
        %4183 = vmatpush1.msra.mxu0 0.0
        %4184 = vmatprep.subr.mxu0 0.0
        %4185 = vmatpush1.msra.mxu0 0.0
        %4186 = vmatprep.mubr.f32.mxu0 0.0
        %4187 = vmatmul.mubr.f32.gmra.mrb[0].mxu0 %v4120
        %v4188 = vpop.f32.mrb[0].mxu0
        %v4189 = vadd.f32 0.0, %v4188
        %v4190 = vpop.f32.mrb[0].mxu0
        %4191 = vdwg.mxu0
        %s4192 = scalar_lea.vmem %s8, 32
        %v4193 = vld [vmem:[%s4192] sm:$0xff]
        %v4194 = vld [vmem:[%s4192 + $0x8] sm:$0xff]
        %v4195 = vld [vmem:[%s4192 + $0x10] sm:$0xff]
        %v4196 = vld [vmem:[%s4192 + $0x18] sm:$0xff]
        %v4198 = vsel %vm848, %v3970, 0
        %4200 = vmatprep.subr.mxu0 0.0
        %4201 = vmatpush1.msra.mxu0 %v4193
        %4202 = vmatprep.subr.mxu0 0.0
        %4203 = vmatpush1.msra.mxu0 0.0
        %4204 = vmatprep.subr.mxu0 0.0
        %4205 = vmatpush1.msra.mxu0 0.0
        %4206 = vmatprep.subr.mxu0 0.0
        %4207 = vmatpush1.msra.mxu0 0.0
        %4208 = vmatprep.subr.mxu0 0.0
        %4209 = vmatpush1.msra.mxu0 0.0
        %4210 = vmatprep.subr.mxu0 0.0
        %4211 = vmatpush1.msra.mxu0 0.0
        %4212 = vmatprep.subr.mxu0 0.0
        %4213 = vmatpush1.msra.mxu0 0.0
        %4214 = vmatprep.subr.mxu0 0.0
        %4215 = vmatpush1.msra.mxu0 0.0
        %4216 = vmatprep.subr.mxu0 0.0
        %4217 = vmatpush1.msra.mxu0 0.0
        %4218 = vmatprep.subr.mxu0 0.0
        %4219 = vmatpush1.msra.mxu0 0.0
        %4220 = vmatprep.subr.mxu0 0.0
        %4221 = vmatpush1.msra.mxu0 0.0
        %4222 = vmatprep.subr.mxu0 0.0
        %4223 = vmatpush1.msra.mxu0 0.0
        %4224 = vmatprep.subr.mxu0 0.0
        %4225 = vmatpush1.msra.mxu0 0.0
        %4226 = vmatprep.subr.mxu0 0.0
        %4227 = vmatpush1.msra.mxu0 0.0
        %4228 = vmatprep.subr.mxu0 0.0
        %4229 = vmatpush1.msra.mxu0 0.0
        %4230 = vmatprep.subr.mxu0 0.0
        %4231 = vmatpush1.msra.mxu0 0.0
        %4232 = vmatprep.subr.mxu0 0.0
        %4233 = vmatpush1.msra.mxu0 0.0
        %4234 = vmatprep.subr.mxu0 0.0
        %4235 = vmatpush1.msra.mxu0 0.0
        %4236 = vmatprep.subr.mxu0 0.0
        %4237 = vmatpush1.msra.mxu0 0.0
        %4238 = vmatprep.subr.mxu0 0.0
        %4239 = vmatpush1.msra.mxu0 0.0
        %4240 = vmatprep.subr.mxu0 0.0
        %4241 = vmatpush1.msra.mxu0 0.0
        %4242 = vmatprep.subr.mxu0 0.0
        %4243 = vmatpush1.msra.mxu0 0.0
        %4244 = vmatprep.subr.mxu0 0.0
        %4245 = vmatpush1.msra.mxu0 0.0
        %4246 = vmatprep.subr.mxu0 0.0
        %4247 = vmatpush1.msra.mxu0 0.0
        %4248 = vmatprep.subr.mxu0 0.0
        %4249 = vmatpush1.msra.mxu0 0.0
        %4250 = vmatprep.subr.mxu0 0.0
        %4251 = vmatpush1.msra.mxu0 0.0
        %4252 = vmatprep.subr.mxu0 0.0
        %4253 = vmatpush1.msra.mxu0 0.0
        %4254 = vmatprep.subr.mxu0 0.0
        %4255 = vmatpush1.msra.mxu0 0.0
        %4256 = vmatprep.subr.mxu0 0.0
        %4257 = vmatpush1.msra.mxu0 0.0
        %4258 = vmatprep.subr.mxu0 0.0
        %4259 = vmatpush1.msra.mxu0 0.0
        %4260 = vmatprep.subr.mxu0 0.0
        %4261 = vmatpush1.msra.mxu0 0.0
        %4262 = vmatprep.subr.mxu0 0.0
        %4263 = vmatpush1.msra.mxu0 0.0
        %4264 = vmatprep.mubr.f32.mxu0 0.0
        %4265 = vmatmul.mubr.f32.gmra.mrb[0].mxu0 %v4198
        %v4266 = vpop.f32.mrb[0].mxu0
        %v4267 = vadd.f32 0.0, %v4266
        %v4268 = vpop.f32.mrb[0].mxu0
        %4269 = vdwg.mxu0
        %v4271 = vsel %vm848, %v4043, 0
        %4273 = vmatprep.subr.mxu0 0.0
        %4274 = vmatpush1.msra.mxu0 %v4194
        %4275 = vmatprep.subr.mxu0 0.0
        %4276 = vmatpush1.msra.mxu0 0.0
        %4277 = vmatprep.subr.mxu0 0.0
        %4278 = vmatpush1.msra.mxu0 0.0
        %4279 = vmatprep.subr.mxu0 0.0
        %4280 = vmatpush1.msra.mxu0 0.0
        %4281 = vmatprep.subr.mxu0 0.0
        %4282 = vmatpush1.msra.mxu0 0.0
        %4283 = vmatprep.subr.mxu0 0.0
        %4284 = vmatpush1.msra.mxu0 0.0
        %4285 = vmatprep.subr.mxu0 0.0
        %4286 = vmatpush1.msra.mxu0 0.0
        %4287 = vmatprep.subr.mxu0 0.0
        %4288 = vmatpush1.msra.mxu0 0.0
        %4289 = vmatprep.subr.mxu0 0.0
        %4290 = vmatpush1.msra.mxu0 0.0
        %4291 = vmatprep.subr.mxu0 0.0
        %4292 = vmatpush1.msra.mxu0 0.0
        %4293 = vmatprep.subr.mxu0 0.0
        %4294 = vmatpush1.msra.mxu0 0.0
        %4295 = vmatprep.subr.mxu0 0.0
        %4296 = vmatpush1.msra.mxu0 0.0
        %4297 = vmatprep.subr.mxu0 0.0
        %4298 = vmatpush1.msra.mxu0 0.0
        %4299 = vmatprep.subr.mxu0 0.0
        %4300 = vmatpush1.msra.mxu0 0.0
        %4301 = vmatprep.subr.mxu0 0.0
        %4302 = vmatpush1.msra.mxu0 0.0
        %4303 = vmatprep.subr.mxu0 0.0
        %4304 = vmatpush1.msra.mxu0 0.0
        %4305 = vmatprep.subr.mxu0 0.0
        %4306 = vmatpush1.msra.mxu0 0.0
        %4307 = vmatprep.subr.mxu0 0.0
        %4308 = vmatpush1.msra.mxu0 0.0
        %4309 = vmatprep.subr.mxu0 0.0
        %4310 = vmatpush1.msra.mxu0 0.0
        %4311 = vmatprep.subr.mxu0 0.0
        %4312 = vmatpush1.msra.mxu0 0.0
        %4313 = vmatprep.subr.mxu0 0.0
        %4314 = vmatpush1.msra.mxu0 0.0
        %4315 = vmatprep.subr.mxu0 0.0
        %4316 = vmatpush1.msra.mxu0 0.0
        %4317 = vmatprep.subr.mxu0 0.0
        %4318 = vmatpush1.msra.mxu0 0.0
        %4319 = vmatprep.subr.mxu0 0.0
        %4320 = vmatpush1.msra.mxu0 0.0
        %4321 = vmatprep.subr.mxu0 0.0
        %4322 = vmatpush1.msra.mxu0 0.0
        %4323 = vmatprep.subr.mxu0 0.0
        %4324 = vmatpush1.msra.mxu0 0.0
        %4325 = vmatprep.subr.mxu0 0.0
        %4326 = vmatpush1.msra.mxu0 0.0
        %4327 = vmatprep.subr.mxu0 0.0
        %4328 = vmatpush1.msra.mxu0 0.0
        %4329 = vmatprep.subr.mxu0 0.0
        %4330 = vmatpush1.msra.mxu0 0.0
        %4331 = vmatprep.subr.mxu0 0.0
        %4332 = vmatpush1.msra.mxu0 0.0
        %4333 = vmatprep.subr.mxu0 0.0
        %4334 = vmatpush1.msra.mxu0 0.0
        %4335 = vmatprep.subr.mxu0 0.0
        %4336 = vmatpush1.msra.mxu0 0.0
        %4337 = vmatprep.mubr.f32.mxu0 0.0
        %4338 = vmatmul.mubr.f32.gmra.mrb[0].mxu0 %v4271
        %v4339 = vpop.f32.mrb[0].mxu0
        %v4340 = vadd.f32 0.0, %v4339
        %v4341 = vpop.f32.mrb[0].mxu0
        %4342 = vdwg.mxu0
        %v4344 = vsel %vm848, %v4116, 0
        %4346 = vmatprep.subr.mxu0 0.0
        %4347 = vmatpush1.msra.mxu0 %v4195
        %4348 = vmatprep.subr.mxu0 0.0
        %4349 = vmatpush1.msra.mxu0 0.0
        %4350 = vmatprep.subr.mxu0 0.0
        %4351 = vmatpush1.msra.mxu0 0.0
        %4352 = vmatprep.subr.mxu0 0.0
        %4353 = vmatpush1.msra.mxu0 0.0
        %4354 = vmatprep.subr.mxu0 0.0
        %4355 = vmatpush1.msra.mxu0 0.0
        %4356 = vmatprep.subr.mxu0 0.0
        %4357 = vmatpush1.msra.mxu0 0.0
        %4358 = vmatprep.subr.mxu0 0.0
        %4359 = vmatpush1.msra.mxu0 0.0
        %4360 = vmatprep.subr.mxu0 0.0
        %4361 = vmatpush1.msra.mxu0 0.0
        %4362 = vmatprep.subr.mxu0 0.0
        %4363 = vmatpush1.msra.mxu0 0.0
        %4364 = vmatprep.subr.mxu0 0.0
        %4365 = vmatpush1.msra.mxu0 0.0
        %4366 = vmatprep.subr.mxu0 0.0
        %4367 = vmatpush1.msra.mxu0 0.0
        %4368 = vmatprep.subr.mxu0 0.0
        %4369 = vmatpush1.msra.mxu0 0.0
        %4370 = vmatprep.subr.mxu0 0.0
        %4371 = vmatpush1.msra.mxu0 0.0
        %4372 = vmatprep.subr.mxu0 0.0
        %4373 = vmatpush1.msra.mxu0 0.0
        %4374 = vmatprep.subr.mxu0 0.0
        %4375 = vmatpush1.msra.mxu0 0.0
        %4376 = vmatprep.subr.mxu0 0.0
        %4377 = vmatpush1.msra.mxu0 0.0
        %4378 = vmatprep.subr.mxu0 0.0
        %4379 = vmatpush1.msra.mxu0 0.0
        %4380 = vmatprep.subr.mxu0 0.0
        %4381 = vmatpush1.msra.mxu0 0.0
        %4382 = vmatprep.subr.mxu0 0.0
        %4383 = vmatpush1.msra.mxu0 0.0
        %4384 = vmatprep.subr.mxu0 0.0
        %4385 = vmatpush1.msra.mxu0 0.0
        %4386 = vmatprep.subr.mxu0 0.0
        %4387 = vmatpush1.msra.mxu0 0.0
        %4388 = vmatprep.subr.mxu0 0.0
        %4389 = vmatpush1.msra.mxu0 0.0
        %4390 = vmatprep.subr.mxu0 0.0
        %4391 = vmatpush1.msra.mxu0 0.0
        %4392 = vmatprep.subr.mxu0 0.0
        %4393 = vmatpush1.msra.mxu0 0.0
        %4394 = vmatprep.subr.mxu0 0.0
        %4395 = vmatpush1.msra.mxu0 0.0
        %4396 = vmatprep.subr.mxu0 0.0
        %4397 = vmatpush1.msra.mxu0 0.0
        %4398 = vmatprep.subr.mxu0 0.0
        %4399 = vmatpush1.msra.mxu0 0.0
        %4400 = vmatprep.subr.mxu0 0.0
        %4401 = vmatpush1.msra.mxu0 0.0
        %4402 = vmatprep.subr.mxu0 0.0
        %4403 = vmatpush1.msra.mxu0 0.0
        %4404 = vmatprep.subr.mxu0 0.0
        %4405 = vmatpush1.msra.mxu0 0.0
        %4406 = vmatprep.subr.mxu0 0.0
        %4407 = vmatpush1.msra.mxu0 0.0
        %4408 = vmatprep.subr.mxu0 0.0
        %4409 = vmatpush1.msra.mxu0 0.0
        %4410 = vmatprep.mubr.f32.mxu0 0.0
        %4411 = vmatmul.mubr.f32.gmra.mrb[0].mxu0 %v4344
        %v4412 = vpop.f32.mrb[0].mxu0
        %v4413 = vadd.f32 0.0, %v4412
        %v4414 = vpop.f32.mrb[0].mxu0
        %4415 = vdwg.mxu0
        %v4417 = vsel %vm848, %v4189, 0
        %4419 = vmatprep.subr.mxu0 0.0
        %4420 = vmatpush1.msra.mxu0 %v4196
        %4421 = vmatprep.subr.mxu0 0.0
        %4422 = vmatpush1.msra.mxu0 0.0
        %4423 = vmatprep.subr.mxu0 0.0
        %4424 = vmatpush1.msra.mxu0 0.0
        %4425 = vmatprep.subr.mxu0 0.0
        %4426 = vmatpush1.msra.mxu0 0.0
        %4427 = vmatprep.subr.mxu0 0.0
        %4428 = vmatpush1.msra.mxu0 0.0
        %4429 = vmatprep.subr.mxu0 0.0
        %4430 = vmatpush1.msra.mxu0 0.0
        %4431 = vmatprep.subr.mxu0 0.0
        %4432 = vmatpush1.msra.mxu0 0.0
        %4433 = vmatprep.subr.mxu0 0.0
        %4434 = vmatpush1.msra.mxu0 0.0
        %4435 = vmatprep.subr.mxu0 0.0
        %4436 = vmatpush1.msra.mxu0 0.0
        %4437 = vmatprep.subr.mxu0 0.0
        %4438 = vmatpush1.msra.mxu0 0.0
        %4439 = vmatprep.subr.mxu0 0.0
        %4440 = vmatpush1.msra.mxu0 0.0
        %4441 = vmatprep.subr.mxu0 0.0
        %4442 = vmatpush1.msra.mxu0 0.0
        %4443 = vmatprep.subr.mxu0 0.0
        %4444 = vmatpush1.msra.mxu0 0.0
        %4445 = vmatprep.subr.mxu0 0.0
        %4446 = vmatpush1.msra.mxu0 0.0
        %4447 = vmatprep.subr.mxu0 0.0
        %4448 = vmatpush1.msra.mxu0 0.0
        %4449 = vmatprep.subr.mxu0 0.0
        %4450 = vmatpush1.msra.mxu0 0.0
        %4451 = vmatprep.subr.mxu0 0.0
        %4452 = vmatpush1.msra.mxu0 0.0
        %4453 = vmatprep.subr.mxu0 0.0
        %4454 = vmatpush1.msra.mxu0 0.0
        %4455 = vmatprep.subr.mxu0 0.0
        %4456 = vmatpush1.msra.mxu0 0.0
        %4457 = vmatprep.subr.mxu0 0.0
        %4458 = vmatpush1.msra.mxu0 0.0
        %4459 = vmatprep.subr.mxu0 0.0
        %4460 = vmatpush1.msra.mxu0 0.0
        %4461 = vmatprep.subr.mxu0 0.0
        %4462 = vmatpush1.msra.mxu0 0.0
        %4463 = vmatprep.subr.mxu0 0.0
        %4464 = vmatpush1.msra.mxu0 0.0
        %4465 = vmatprep.subr.mxu0 0.0
        %4466 = vmatpush1.msra.mxu0 0.0
        %4467 = vmatprep.subr.mxu0 0.0
        %4468 = vmatpush1.msra.mxu0 0.0
        %4469 = vmatprep.subr.mxu0 0.0
        %4470 = vmatpush1.msra.mxu0 0.0
        %4471 = vmatprep.subr.mxu0 0.0
        %4472 = vmatpush1.msra.mxu0 0.0
        %4473 = vmatprep.subr.mxu0 0.0
        %4474 = vmatpush1.msra.mxu0 0.0
        %4475 = vmatprep.subr.mxu0 0.0
        %4476 = vmatpush1.msra.mxu0 0.0
        %4477 = vmatprep.subr.mxu0 0.0
        %4478 = vmatpush1.msra.mxu0 0.0
        %4479 = vmatprep.subr.mxu0 0.0
        %4480 = vmatpush1.msra.mxu0 0.0
        %4481 = vmatprep.subr.mxu0 0.0
        %4482 = vmatpush1.msra.mxu0 0.0
        %4483 = vmatprep.mubr.f32.mxu0 0.0
        %4484 = vmatmul.mubr.f32.gmra.mrb[0].mxu0 %v4417
        %v4485 = vpop.f32.mrb[0].mxu0
        %v4486 = vadd.f32 0.0, %v4485
        %v4487 = vpop.f32.mrb[0].mxu0
        %4488 = vdwg.mxu0
        %v4489 = vsel %vm496, %v4267, 0.0
        %v4490 = vsel %vm496, %v4340, 0.0
        %v4491 = vadd.f32 %v4489, %v4490
        %v4492 = vsel %vm496, %v4413, 0.0
        %v4493 = vadd.f32 %v4491, %v4492
        %v4494 = vsel %vm496, %v4486, 0.0
        %v4495 = vadd.f32 %v4493, %v4494
        %s4496 = scalar_lea.vmem %s9, 1
        %v4497 = vld [vmem:[%s4496] sm:$0x1]
        %v4499 = vlaneseq
        %v4500 = vshrl.u32 %v4499, 7
        %v4501 = vsub.s32 0, %v4500
        %v4502 = vrot.slane %v4497, %v4501
        %v4504 = vadd.f32 %v4495, %v4502
        %v4505 = vadd.f32 %v2509, %v4504
        %v4506 = vsel %vm496, %v4505, 0.0
        %4507 = vadd.xlane.f32.xlu0 %v4506
        %v4508 = vpop.xlane.xlu0 %4507
        %v4509 = vmul.f32 %v4508, %v2483
        %v4510 = vsub.f32 %v4505, %v4509
        %v4511 = vmul.f32 %v4510, %v4510
        %v4512 = vsel %vm496, %v4511, 0.0
        %4513 = vadd.xlane.f32.xlu0 %v4512
        %v4514 = vpop.xlane.xlu0 %4513
        %v4515 = vmul.f32 %v4514, %v2483
        %v4516 = vadd.f32 %v4515, 1e-05
        %v4517 = vrsqrt.pop %v4516
        %v4518 = vmul.f32 %v4510, %v4517
        %s4519 = scalar_lea.vmem %s10, 1
        %v4520 = vld [vmem:[%s4519] sm:$0x1]
        %v4522 = vlaneseq
        %v4523 = vshrl.u32 %v4522, 7
        %v4524 = vsub.s32 0, %v4523
        %v4525 = vrot.slane %v4520, %v4524
        %v4527 = vmul.f32 %v4518, %v4525
        %s4528 = scalar_lea.vmem %s11, 1
        %v4529 = vld [vmem:[%s4528] sm:$0x1]
        %v4531 = vlaneseq
        %v4532 = vshrl.u32 %v4531, 7
        %v4533 = vsub.s32 0, %v4532
        %v4534 = vrot.slane %v4529, %v4533
        %v4536 = vadd.f32 %v4527, %v4534
        %4537 = vst.msk [vmem:[%s445] sm:$0xff] %vm496, %v4536
        %s4538 = sand.u32 %s298, 1
        %s4539 = scalar_lea.sflag [#allocation3], %s4538
        %s4540 = sand.u32 %s298, 1
        %s4541 = smul.addr %s4540, 8
        %s4542 = scalar_lea.vmem [#allocation2], %s4541
        %s4543 = sand.u32 %s324, 1
        %s4544 = sand.u32 %s324, 1
        %s4545 = smul.addr %s4544, 64
        %s4546 = scalar_lea.vmem [#allocation4], %s4545
        // Predicated region
        $region69: #{tpu_custom_call.1} parent=67 // pred_check
          %p4547 = pneg %p308
        $region70: #{tpu_custom_call.1} parent=67 // pred_check_branch
          %4549 = sbr.rel (%p4547) target = $region72
        $region71: #{tpu_custom_call.1} parent=67 // pred_region
          %s4551 = ssub.s32 128, 128
          %4552 = vsyncadd %s4539, %s4551
          %s4553 = smul.addr %s28, 128
          %s4554 = scalar_lea.hbm %s12, %s4553
          %s4556 = sshll.u32 %s4542, 4
          %s4557 = int_to_ptr.vmem [resolvable:$true] %s4556
          %4559 = dma.vmem_to_hbm [thread:$0]  %s4557, 128, %s4554, %s4539
        $region72: #{tpu_custom_call.1} parent=67 // pred_fallthru
          _
        // Predicated region
        $region73: #{tpu_custom_call.1} parent=67 // pred_check
          %p4560 = pneg %p334
        $region74: #{tpu_custom_call.1} parent=67 // pred_check_branch
          %4562 = sbr.rel (%p4560) target = $region76
        $region75: #{tpu_custom_call.1} parent=67 // pred_region
          %s4563 = smul.addr %s28, 8
          %s4564 = scalar_lea.vmem %s13, %s4563
          // Predicated region
          $region77: #{tpu_custom_call.1} parent=75 // pred_check
            _
          $region78: #{tpu_custom_call.1} parent=75 // pred_check_branch
            %4566 = sbr.rel (0) target = $region80
          $region79: #{tpu_custom_call.1} parent=75 // pred_region
            // Predicated region
            $region81: #{tpu_custom_call.1} parent=79 // pred_check
              _
            $region82: #{tpu_custom_call.1} parent=79 // pred_check_branch
              %4568 = sbr.rel (0) target = $region84
            $region83: #{tpu_custom_call.1} parent=79 // pred_region
              // Predicated region
              $region96: #{tpu_custom_call.1} parent=83 // pred_check
                _
              $region97: #{tpu_custom_call.1} parent=83 // pred_check_branch
                %4597 = sbr.rel (0) target = $region99
              $region98: #{tpu_custom_call.1} parent=83 // pred_region
                loop: start=0, step=1, limit=1
                $region100: #{tpu_custom_call.1} parent=98 // loop_pre_header
                  _
                $region101: #{tpu_custom_call.1} parent=98 // loop_header
                  %s4599 = sphi 0, %s4603
                  %p4600 = scmp.ge.s32.totalorder %s4599, 1
                  %s4604 = sphi %s4546, %s4546
                  %s4605 = sphi %s4564, %s4564
                $region102: #{tpu_custom_call.1} parent=98 // loop_header_branch
                  %4602 = sbr.rel (%p4600) target = $region106
                $region103: #{tpu_custom_call.1} parent=98 // loop_body
                  %v4606 = vld [vmem:[%s4604] sm:$0xff]
                  %4607 = vst [vmem:[%s4605] sm:$0xff] %v4606
                  %v4608 = vld [vmem:[%s4604 + $0x8] sm:$0xff]
                  %4609 = vst [vmem:[%s4605 + $0x10] sm:$0xff] %v4608
                  %v4610 = vld [vmem:[%s4604 + $0x10] sm:$0xff]
                  %4611 = vst [vmem:[%s4605 + $0x20] sm:$0xff] %v4610
                  %v4612 = vld [vmem:[%s4604 + $0x18] sm:$0xff]
                  %4613 = vst [vmem:[%s4605 + $0x30] sm:$0xff] %v4612
                  %v4614 = vld [vmem:[%s4604 + $0x20] sm:$0xff]
                  %4615 = vst [vmem:[%s4605 + $0x40] sm:$0xff] %v4614
                  %v4616 = vld [vmem:[%s4604 + $0x28] sm:$0xff]
                  %4617 = vst [vmem:[%s4605 + $0x50] sm:$0xff] %v4616
                  %v4618 = vld [vmem:[%s4604 + $0x30] sm:$0xff]
                  %4619 = vst [vmem:[%s4605 + $0x60] sm:$0xff] %v4618
                  %v4620 = vld [vmem:[%s4604 + $0x38] sm:$0xff]
                  %4621 = vst [vmem:[%s4605 + $0x70] sm:$0xff] %v4620
                $region104: #{tpu_custom_call.1} parent=98 // loop_footer
                  %s4603 = sadd.s32 1, %s4599
                $region105: #{tpu_custom_call.1} parent=98 // loop_footer_branch
                  %4598 = sbr.rel target = $region101
                $region106: #{tpu_custom_call.1} parent=98 // loop_exit
                  _
              $region99: #{tpu_custom_call.1} parent=83 // pred_fallthru
                _
              // Predicated region
              $region107: #{tpu_custom_call.1} parent=83 // pred_check
                _
              $region108: #{tpu_custom_call.1} parent=83 // pred_check_branch
                %4623 = sbr.rel target = $region110
              $region109: #{tpu_custom_call.1} parent=83 // pred_region
                _
              $region110: #{tpu_custom_call.1} parent=83 // pred_fallthru
                _
            $region84: #{tpu_custom_call.1} parent=79 // pred_fallthru
              _
            // Predicated region
            $region85: #{tpu_custom_call.1} parent=79 // pred_check
              _
            $region86: #{tpu_custom_call.1} parent=79 // pred_check_branch
              %4570 = sbr.rel target = $region88
            $region87: #{tpu_custom_call.1} parent=79 // pred_region
              loop: start=0, step=1, limit=1
              $region89: #{tpu_custom_call.1} parent=87 // loop_pre_header
                _
              $region90: #{tpu_custom_call.1} parent=87 // loop_header
                %s4573 = sphi 0, %s4577
                %p4574 = scmp.ge.s32.totalorder %s4573, 1
                %s4578 = sphi %s4546, %s4546
                %s4579 = sphi %s4564, %s4564
              $region91: #{tpu_custom_call.1} parent=87 // loop_header_branch
                %4576 = sbr.rel (%p4574) target = $region95
              $region92: #{tpu_custom_call.1} parent=87 // loop_body
                %v4580 = vld [vmem:[%s4578] sm:$0xff]
                %4581 = vst [vmem:[%s4579] sm:$0xff] %v4580
                %v4582 = vld [vmem:[%s4578 + $0x8] sm:$0xff]
                %4583 = vst [vmem:[%s4579 + $0x10] sm:$0xff] %v4582
                %v4584 = vld [vmem:[%s4578 + $0x10] sm:$0xff]
                %4585 = vst [vmem:[%s4579 + $0x20] sm:$0xff] %v4584
                %v4586 = vld [vmem:[%s4578 + $0x18] sm:$0xff]
                %4587 = vst [vmem:[%s4579 + $0x30] sm:$0xff] %v4586
                %v4588 = vld [vmem:[%s4578 + $0x20] sm:$0xff]
                %4589 = vst [vmem:[%s4579 + $0x40] sm:$0xff] %v4588
                %v4590 = vld [vmem:[%s4578 + $0x28] sm:$0xff]
                %4591 = vst [vmem:[%s4579 + $0x50] sm:$0xff] %v4590
                %v4592 = vld [vmem:[%s4578 + $0x30] sm:$0xff]
                %4593 = vst [vmem:[%s4579 + $0x60] sm:$0xff] %v4592
                %v4594 = vld [vmem:[%s4578 + $0x38] sm:$0xff]
                %4595 = vst [vmem:[%s4579 + $0x70] sm:$0xff] %v4594
              $region93: #{tpu_custom_call.1} parent=87 // loop_footer
                %s4577 = sadd.s32 1, %s4573
              $region94: #{tpu_custom_call.1} parent=87 // loop_footer_branch
                %4572 = sbr.rel target = $region90
              $region95: #{tpu_custom_call.1} parent=87 // loop_exit
                _
            $region88: #{tpu_custom_call.1} parent=79 // pred_fallthru
              _
          $region80: #{tpu_custom_call.1} parent=75 // pred_fallthru
            _
          %4624 = vnop
        $region76: #{tpu_custom_call.1} parent=67 // pred_fallthru
          _
      $region68: #{tpu_custom_call.1} parent=5 // pred_fallthru
        _
      %p4625 = scmp.le.s32.totalorder 2, %s23
      // Predicated region
      $region111: #{tpu_custom_call.1} parent=5 // pred_check
        %p4626 = pneg %p4625
      $region112: #{tpu_custom_call.1} parent=5 // pred_check_branch
        %4628 = sbr.rel (%p4626) target = $region114
      $region113: #{tpu_custom_call.1} parent=5 // pred_region
        %s4629 = ssub.s32 %s23, 2
        // Predicated region
        $region115: #{tpu_custom_call.1} parent=113 // pred_check
          %p4630 = pneg %p314
        $region116: #{tpu_custom_call.1} parent=113 // pred_check_branch
          %4632 = sbr.rel (%p4630) target = $region118
        $region117: #{tpu_custom_call.1} parent=113 // pred_region
          %s4633 = sand.u32 %s299, 1
          %s4634 = scalar_lea.sflag [#allocation3], %s4633
          %s4635 = sand.u32 %s299, 1
          %s4636 = smul.addr %s4635, 8
          %s4637 = scalar_lea.vmem [#allocation2], %s4636
          %4638 = dma.done %s4634, 128
        $region118: #{tpu_custom_call.1} parent=113 // pred_fallthru
          _
        // Predicated region
        $region119: #{tpu_custom_call.1} parent=113 // pred_check
          %p4639 = pneg %p340
        $region120: #{tpu_custom_call.1} parent=113 // pred_check_branch
          %4641 = sbr.rel (%p4639) target = $region122
        $region121: #{tpu_custom_call.1} parent=113 // pred_region
          %s4642 = sand.u32 %s325, 1
          %s4643 = sand.u32 %s325, 1
          %s4644 = smul.addr %s4643, 64
          %s4645 = scalar_lea.vmem [#allocation4], %s4644
        $region122: #{tpu_custom_call.1} parent=113 // pred_fallthru
          _
      $region114: #{tpu_custom_call.1} parent=5 // pred_fallthru
        _
    $region6: #{tpu_custom_call.1} parent=1 // loop_footer
      %s27 = sadd.s32 1, %s23
    $region7: #{tpu_custom_call.1} parent=1 // loop_footer_branch
      %22 = sbr.rel target = $region3
    $region8: #{tpu_custom_call.1} parent=1 // loop_exit
      _
    %4646 = vsyncpa [#allocation3], 1
    %s4647 = scalar_lea.sflag [#allocation3], 1
    %4648 = vsyncpa %s4647, 1

</llo_original>
